<compile_context>
chip_gen: v5e
topology: v5e:2x2
jax: 0.10.0
libtpu: 0.0.40
codegen_flags: <defaults>
</compile_context>

<pallas_src>
import functools

import jax
import jax.numpy as jnp
from jax import lax
from jax.experimental import pallas as pl
from jax.experimental.pallas import tpu as pltpu


def init_conv_stem_params(key, embed_dim=32):
    """Deterministic synthetic parameters (eval-mode BN, fresh running stats).

    Conv weights stored HWIO (kh, kw, Cin, Cout); PyTorch stores OIHW --
    equivalent up to this fixed transpose.  The 1x1 projection is stored as
    (Cin, Cout) plus bias.
    """
    c0, c1, c2 = 3, embed_dim // 8, embed_dim // 4  # in_chans hardcoded to 3
    ks = jax.random.split(key, 8)
    p = {}
    p["w1"] = 0.1 * jax.random.normal(ks[0], (3, 3, c0, c1), jnp.float32)
    p["bn1_gamma"] = 1.0 + 0.1 * jax.random.normal(ks[1], (c1,), jnp.float32)
    p["bn1_beta"] = 0.1 * jax.random.normal(ks[2], (c1,), jnp.float32)
    p["bn1_mean"] = jnp.zeros((c1,), jnp.float32)
    p["bn1_var"] = jnp.ones((c1,), jnp.float32)
    p["w2"] = 0.1 * jax.random.normal(ks[3], (3, 3, c1, c2), jnp.float32)
    p["bn2_gamma"] = 1.0 + 0.1 * jax.random.normal(ks[4], (c2,), jnp.float32)
    p["bn2_beta"] = 0.1 * jax.random.normal(ks[5], (c2,), jnp.float32)
    p["bn2_mean"] = jnp.zeros((c2,), jnp.float32)
    p["bn2_var"] = jnp.ones((c2,), jnp.float32)
    p["w3"] = 0.1 * jax.random.normal(ks[6], (c2, embed_dim), jnp.float32)
    p["b3"] = 0.1 * jax.random.normal(ks[7], (embed_dim,), jnp.float32)
    return p


def _pack_conv1_groups(w1):
    """Regroup the 3x3/s2 conv-1 taps for the space-to-depth-by-4 input layout.

    The kernel computes conv-1 directly in "zero-padded, 2x2-phase" output
    form (exactly what conv-2 consumes).  For output phase (pp, qq), tap
    (kh, kw) reads S2D4 row-phase r = (2*pp+kh) % 4 at row shift
    da = (2*pp+kh) // 4 (same for columns).  Taps sharing (da, db) are merged
    into one (16*C, C1) weight with each tap placed at its phase-channel
    offset (zeros elsewhere), so the kernel never slices the lane dimension.

    Returns (groups, w1g): groups is a static tuple of
    (pp, qq, ((da, db, widx), ...)); w1g is a stacked (9, 16*C, C1) array.
    """
    C, C1 = w1.shape[2], w1.shape[3]
    groups = []
    mats = []
    for pp in (0, 1):
        for qq in (0, 1):
            by_shift = {}
            for kh in range(3):
                for kw in range(3):
                    tr, tc = 2 * pp + kh, 2 * qq + kw
                    da, r = divmod(tr, 4)
                    db, s = divmod(tc, 4)
                    if (da, db) not in by_shift:
                        by_shift[(da, db)] = jnp.zeros((16 * C, C1), jnp.float32)
                    blk = (r * 4 + s) * C
                    by_shift[(da, db)] = (
                        by_shift[(da, db)].at[blk:blk + C, :].set(w1[kh, kw]))
            taps = []
            for (da, db), m in by_shift.items():
                taps.append((da, db, len(mats)))
                mats.append(m)
            groups.append((pp, qq, tuple(taps)))
    return tuple(groups), jnp.stack(mats)


def _padded_bytes(shape, itemsize):
    """Rough VMEM footprint of a buffer after (8, 128) tile padding."""
    sub = max(8, ((shape[-2] + 7) // 8) * 8) if len(shape) >= 2 else 8
    lane = ((shape[-1] + 127) // 128) * 128
    lead = 1
    for d in shape[:-2]:
        lead *= d
    return lead * sub * lane * itemsize


@functools.partial(jax.jit, static_argnames=("embed_dim", "eps"))
def conv_stem_forward(params, x_nchw, embed_dim=32, eps=1e-5):
    B, C, H, W = x_nchw.shape
    assert H % 4 == 0 and W % 4 == 0, "ConvStem needs spatial dims divisible by 4"
    H2, W2 = H // 4, W // 4
    M2 = H2 * W2
    C1, C2 = embed_dim // 8, embed_dim // 4
    Npad = ((embed_dim + 127) // 128) * 128          # lane-dense output width

    # ---- fold eval-mode BatchNorm into per-channel scale/shift --------------
    inv1 = params["bn1_gamma"] / jnp.sqrt(params["bn1_var"] + eps)
    s1 = inv1.reshape(1, C1)
    t1 = (params["bn1_beta"] - params["bn1_mean"] * inv1).reshape(1, C1)
    inv2 = params["bn2_gamma"] / jnp.sqrt(params["bn2_var"] + eps)
    s2 = inv2.reshape(1, C2)
    t2 = (params["bn2_beta"] - params["bn2_mean"] * inv2).reshape(1, C2)

    # ---- input layout: NCHW -> NHWC, pad(3,1), space-to-depth by 4, bf16 ----
    # One fused XLA pass over the input (same byte count; NOT an im2col blowup).
    x = jnp.transpose(x_nchw, (0, 2, 3, 1))
    xp = jnp.pad(x, ((0, 0), (3, 1), (3, 1), (0, 0)))
    xq = (xp.reshape(B, H2 + 1, 4, W2 + 1, 4, C)
            .transpose(0, 1, 3, 2, 4, 5)
            .reshape(B, H2 + 1, W2 + 1, 16 * C)
            .astype(jnp.bfloat16))

    # ---- weights -------------------------------------------------------------
    groups, w1g = _pack_conv1_groups(params["w1"])
    w1g = w1g.astype(jnp.bfloat16)                                 # (9, 16C, C1)
    w2f = params["w2"].reshape(9, C1, C2).astype(jnp.bfloat16)     # (9, C1, C2)
    w3p = (jnp.zeros((C2, Npad), jnp.float32)
              .at[:, :embed_dim].set(params["w3"]).astype(jnp.bfloat16))
    b3p = (jnp.zeros((1, Npad), jnp.float32)
              .at[:, :embed_dim].set(params["b3"].reshape(1, -1)))
    NG = w1g.shape[0]

    def kernel(xq_ref, w1g_ref, w2_ref, s1_ref, t1_ref, s2_ref, t2_ref,
               w3_ref, b3_ref, out_ref, y1p_ref):
        # -- zero ONLY the never-written halo row/col of each phase buffer.
        # These strips are conv-2's zero padding; the interior is fully
        # overwritten below, so a full memset every step would be wasted vst.
        for pp, qq, _ in groups:
            ph = 2 * pp + qq
            zr = pp * H2          # unwritten row: 0 for pp=0, H2 for pp=1
            zc = qq * W2          # unwritten col: 0 for qq=0, W2 for qq=1
            y1p_ref[ph, zr:zr + 1, :, :] = jnp.zeros((1, W2 + 1, C1),
                                                     y1p_ref.dtype)
            y1p_ref[ph, :, zc:zc + 1, :] = jnp.zeros((H2 + 1, 1, C1),
                                                     y1p_ref.dtype)

        # -- dedup the 4 distinct shifted input windows (shared by all taps) --
        wins = {}
        for oa in (0, 1):
            for ob in (0, 1):
                wins[(oa, ob)] = (
                    xq_ref[0, oa:oa + H2, ob:ob + W2, :].reshape(M2, 16 * C))

        s1v, t1v = s1_ref[...], t1_ref[...]
        s2v, t2v = s2_ref[...], t2_ref[...]
        b3v = b3_ref[...]

        # -- stage 1: Conv3x3/s2/p1 + BN + ReLU, written in padded-phase form --
        for pp, qq, taps in groups:
            a0, b0 = 1 - pp, 1 - qq
            acc = None
            for da, db, widx in taps:
                part = jnp.dot(wins[(a0 + da, b0 + db)], w1g_ref[widx],
                               preferred_element_type=jnp.float32)
                acc = part if acc is None else acc + part
            y1 = jnp.maximum(acc * s1v + t1v, 0.0)
            y1p_ref[2 * pp + qq, a0:a0 + H2, b0:b0 + W2, :] = (
                y1.reshape(H2, W2, C1).astype(y1p_ref.dtype))

        # -- stage 2: Conv3x3/s2/p1 + BN + ReLU: 9 accumulating dots over shifts
        acc2 = None
        for kh in range(3):
            for kw in range(3):
                pp, dh = kh % 2, kh // 2
                qq, dw = kw % 2, kw // 2
                ys = y1p_ref[2 * pp + qq, dh:dh + H2, dw:dw + W2, :]
                part = jnp.dot(ys.reshape(M2, C1), w2_ref[kh * 3 + kw],
                               preferred_element_type=jnp.float32)
                acc2 = part if acc2 is None else acc2 + part
        y2 = jnp.maximum(acc2 * s2v + t2v, 0.0)

        # -- stage 3: Conv1x1 + bias (lane-dense, Npad % 128 == 0) --------------
        z = jnp.dot(y2.astype(jnp.bfloat16), w3_ref[...],
                    preferred_element_type=jnp.float32) + b3v
        out_ref[0] = z.astype(out_ref.dtype)

    # VMEM budget (tile-padded, with double-buffered in/out blocks) + margin.
    est = (2 * _padded_bytes((1, H2 + 1, W2 + 1, 16 * C), 2)
           + 2 * _padded_bytes((1, M2, Npad), 4)
           + _padded_bytes((NG, 16 * C, C1), 2)
           + _padded_bytes((9, C1, C2), 2)
           + _padded_bytes((C2, Npad), 2)
           + _padded_bytes((1, Npad), 4)
           + _padded_bytes((4, H2 + 1, W2 + 1, C1), 2)
           + 4 * _padded_bytes((M2, 16 * C), 2)
           + 4 * _padded_bytes((M2, max(C2, Npad)), 4))
    vmem_limit = int(min(max(2 * est, 16 << 20), 48 << 20))

    flops = 2 * B * M2 * (NG * 16 * C * C1 + 9 * C1 * C2 + C2 * Npad)
    bytes_accessed = int(xq.size * 2 + B * M2 * Npad * 4
                         + w1g.size * 2 + w2f.size * 2 + w3p.size * 2 + Npad * 4)

    out = pl.pallas_call(
        kernel,
        out_shape=jax.ShapeDtypeStruct((B, M2, Npad), jnp.float32),
        grid_spec=pltpu.PrefetchScalarGridSpec(
            num_scalar_prefetch=0,
            grid=(B,),
            in_specs=[
                pl.BlockSpec((1, H2 + 1, W2 + 1, 16 * C), lambda b: (b, 0, 0, 0)),
                # weights / affine vectors: constant index maps -> VMEM-resident
                pl.BlockSpec((NG, 16 * C, C1), lambda b: (0, 0, 0)),
                pl.BlockSpec((9, C1, C2), lambda b: (0, 0, 0)),
                pl.BlockSpec((1, C1), lambda b: (0, 0)),
                pl.BlockSpec((1, C1), lambda b: (0, 0)),
                pl.BlockSpec((1, C2), lambda b: (0, 0)),
                pl.BlockSpec((1, C2), lambda b: (0, 0)),
                pl.BlockSpec((C2, Npad), lambda b: (0, 0)),
                pl.BlockSpec((1, Npad), lambda b: (0, 0)),
            ],
            out_specs=pl.BlockSpec((1, M2, Npad), lambda b: (b, 0, 0)),
            scratch_shapes=[pltpu.VMEM((4, H2 + 1, W2 + 1, C1), jnp.bfloat16)],
        ),
        compiler_params=pltpu.CompilerParams(
            dimension_semantics=("parallel",),
            vmem_limit_bytes=vmem_limit,
        ),
        cost_estimate=pl.CostEstimate(flops=flops, transcendentals=0,
                                      bytes_accessed=bytes_accessed),
    )(xq, w1g, w2f, s1, t1, s2, t2, w3p, b3p)

    if Npad != embed_dim:
        out = out[:, :, :embed_dim]     # strip lane padding
    # self.norm is nn.Identity() (norm_layer=None default).
    return out


def conv_stem_reference(params, x_nchw, embed_dim=32, eps=1e-5):
    """Pure-XLA f32 reference (same math as the PyTorch module in eval mode)."""
    dn = ("NCHW", "HWIO", "NCHW")
    s1 = params["bn1_gamma"] / jnp.sqrt(params["bn1_var"] + eps)
    t1 = params["bn1_beta"] - params["bn1_mean"] * s1
    s2 = params["bn2_gamma"] / jnp.sqrt(params["bn2_var"] + eps)
    t2 = params["bn2_beta"] - params["bn2_mean"] * s2
    y = lax.conv_general_dilated(x_nchw, params["w1"], (2, 2), ((1, 1), (1, 1)),
                                 dimension_numbers=dn)
    y = jnp.maximum(y * s1[None, :, None, None] + t1[None, :, None, None], 0.0)
    y = lax.conv_general_dilated(y, params["w2"], (2, 2), ((1, 1), (1, 1)),
                                 dimension_numbers=dn)
    y = jnp.maximum(y * s2[None, :, None, None] + t2[None, :, None, None], 0.0)
    y = lax.conv_general_dilated(y, params["w3"][None, None, :, :], (1, 1),
                                 ((0, 0), (0, 0)), dimension_numbers=dn)
    y = y + params["b3"][None, :, None, None]
    B = x_nchw.shape[0]
    return jnp.transpose(y.reshape(B, embed_dim, -1), (0, 2, 1))


if __name__ == "__main__":
    key = jax.random.PRNGKey(0)
    kx, kp = jax.random.split(key)

    # Small shapes consistent with the module: in_chans hardcoded to 3,
    # patch_size=4, embed_dim % 8 == 0.  Spatial 32 keeps every grid/patch dim
    # aligned to the (8, 128) vreg tiling.
    B, C, H, W = 2, 3, 32, 32
    embed_dim = 32

    x = jax.random.normal(kx, (B, C, H, W), jnp.float32)
    params = init_conv_stem_params(kp, embed_dim=embed_dim)

    out = conv_stem_forward(params, x, embed_dim=embed_dim)
    out = jax.block_until_ready(out)

    num_patches = (H // 4) * (W // 4)
    assert out.shape == (B, num_patches, embed_dim), out.shape
    assert out.dtype == jnp.float32
    assert bool(jnp.all(jnp.isfinite(out)))

    # numerical check vs pure-XLA f32 reference (kernel uses bf16 on the MXU,
    # hence the loose tolerance)
    ref = conv_stem_reference(params, x, embed_dim=embed_dim)
    assert bool(jnp.allclose(out, ref, atol=5e-2, rtol=5e-2)), \
        float(jnp.max(jnp.abs(out - ref)))

    print("KERNEL_OK")
</pallas_src>

<mosaic_0001>
module attributes {stable_mosaic.version = 11 : i64} {
  func.func @kernel(%arg0: i32, %arg1: memref<1x9x9x48xbf16, #tpu.memory_space<vmem>>, %arg2: memref<9x48x4xbf16, #tpu.memory_space<vmem>>, %arg3: memref<9x4x8xbf16, #tpu.memory_space<vmem>>, %arg4: memref<1x4xf32, #tpu.memory_space<vmem>>, %arg5: memref<1x4xf32, #tpu.memory_space<vmem>>, %arg6: memref<1x8xf32, #tpu.memory_space<vmem>>, %arg7: memref<1x8xf32, #tpu.memory_space<vmem>>, %arg8: memref<8x128xbf16, #tpu.memory_space<vmem>>, %arg9: memref<1x128xf32, #tpu.memory_space<vmem>>, %arg10: memref<1x64x128xf32, #tpu.memory_space<vmem>>, %arg11: memref<4x9x9x4xbf16, #tpu.memory_space<vmem>>) attributes {dimension_semantics = [#tpu.dimension_semantics<parallel>], iteration_bounds = array<i64: 2>, scalar_prefetch = 0 : i64, scratch_operands = 1 : i64, tpu.core_type = #tpu.core_type<tc>, window_params = [{transform_indices = @transform_0, window_bounds = array<i64: 1, 9, 9, 48>}, {pipeline_mode = #tpu.pipeline_mode<synchronous>, transform_indices = @transform_1, window_bounds = array<i64: 9, 48, 4>}, {pipeline_mode = #tpu.pipeline_mode<synchronous>, transform_indices = @transform_2, window_bounds = array<i64: 9, 4, 8>}, {pipeline_mode = #tpu.pipeline_mode<synchronous>, transform_indices = @transform_3, window_bounds = array<i64: 1, 4>}, {pipeline_mode = #tpu.pipeline_mode<synchronous>, transform_indices = @transform_4, window_bounds = array<i64: 1, 4>}, {pipeline_mode = #tpu.pipeline_mode<synchronous>, transform_indices = @transform_5, window_bounds = array<i64: 1, 8>}, {pipeline_mode = #tpu.pipeline_mode<synchronous>, transform_indices = @transform_6, window_bounds = array<i64: 1, 8>}, {pipeline_mode = #tpu.pipeline_mode<synchronous>, transform_indices = @transform_7, window_bounds = array<i64: 8, 128>}, {pipeline_mode = #tpu.pipeline_mode<synchronous>, transform_indices = @transform_8, window_bounds = array<i64: 1, 128>}, {transform_indices = @transform_9, window_bounds = array<i64: 1, 64, 128>}]} {
    %cst = arith.constant 0.000000e+00 : bf16
    %0 = vector.broadcast %cst : bf16 to vector<1x9x4xbf16>
    %c0 = arith.constant 0 : index
    %c0_0 = arith.constant 0 : index
    %c0_1 = arith.constant 0 : index
    %c0_2 = arith.constant 0 : index
    %1 = vector.load %arg11[%c0, %c0_0, %c0_1, %c0_2] : memref<4x9x9x4xbf16, #tpu.memory_space<vmem>>, vector<1x1x9x4xbf16>
    %2 = vector.shape_cast %1 : vector<1x1x9x4xbf16> to vector<1x9x4xbf16>
    %3 = vector.shape_cast %0 : vector<1x9x4xbf16> to vector<1x1x9x4xbf16>
    tpu.vector_store %arg11[%c0, %c0_0, %c0_1, %c0_2], %3 {strides = array<i32>} : memref<4x9x9x4xbf16, #tpu.memory_space<vmem>>, vector<1x1x9x4xbf16>,
    %cst_3 = arith.constant 0.000000e+00 : bf16
    %4 = vector.broadcast %cst_3 : bf16 to vector<9x1x4xbf16>
    %c0_4 = arith.constant 0 : index
    %c0_5 = arith.constant 0 : index
    %c0_6 = arith.constant 0 : index
    %c0_7 = arith.constant 0 : index
    %5 = vector.load %arg11[%c0_4, %c0_5, %c0_6, %c0_7] : memref<4x9x9x4xbf16, #tpu.memory_space<vmem>>, vector<1x9x1x4xbf16>
    %6 = vector.shape_cast %5 : vector<1x9x1x4xbf16> to vector<9x1x4xbf16>
    %7 = vector.shape_cast %4 : vector<9x1x4xbf16> to vector<1x9x1x4xbf16>
    tpu.vector_store %arg11[%c0_4, %c0_5, %c0_6, %c0_7], %7 {strides = array<i32>} : memref<4x9x9x4xbf16, #tpu.memory_space<vmem>>, vector<1x9x1x4xbf16>,
    %cst_8 = arith.constant 0.000000e+00 : bf16
    %8 = vector.broadcast %cst_8 : bf16 to vector<1x9x4xbf16>
    %c1 = arith.constant 1 : index
    %c0_9 = arith.constant 0 : index
    %c0_10 = arith.constant 0 : index
    %c0_11 = arith.constant 0 : index
    %9 = vector.load %arg11[%c1, %c0_9, %c0_10, %c0_11] : memref<4x9x9x4xbf16, #tpu.memory_space<vmem>>, vector<1x1x9x4xbf16>
    %10 = vector.shape_cast %9 : vector<1x1x9x4xbf16> to vector<1x9x4xbf16>
    %11 = vector.shape_cast %8 : vector<1x9x4xbf16> to vector<1x1x9x4xbf16>
    tpu.vector_store %arg11[%c1, %c0_9, %c0_10, %c0_11], %11 {strides = array<i32>} : memref<4x9x9x4xbf16, #tpu.memory_space<vmem>>, vector<1x1x9x4xbf16>,
    %cst_12 = arith.constant 0.000000e+00 : bf16
    %12 = vector.broadcast %cst_12 : bf16 to vector<9x1x4xbf16>
    %c1_13 = arith.constant 1 : index
    %c0_14 = arith.constant 0 : index
    %c8 = arith.constant 8 : index
    %c0_15 = arith.constant 0 : index
    %13 = vector.load %arg11[%c1_13, %c0_14, %c8, %c0_15] : memref<4x9x9x4xbf16, #tpu.memory_space<vmem>>, vector<1x9x1x4xbf16>
    %14 = vector.shape_cast %13 : vector<1x9x1x4xbf16> to vector<9x1x4xbf16>
    %15 = vector.shape_cast %12 : vector<9x1x4xbf16> to vector<1x9x1x4xbf16>
    tpu.vector_store %arg11[%c1_13, %c0_14, %c8, %c0_15], %15 {strides = array<i32>} : memref<4x9x9x4xbf16, #tpu.memory_space<vmem>>, vector<1x9x1x4xbf16>,
    %cst_16 = arith.constant 0.000000e+00 : bf16
    %16 = vector.broadcast %cst_16 : bf16 to vector<1x9x4xbf16>
    %c2 = arith.constant 2 : index
    %c8_17 = arith.constant 8 : index
    %c0_18 = arith.constant 0 : index
    %c0_19 = arith.constant 0 : index
    %17 = vector.load %arg11[%c2, %c8_17, %c0_18, %c0_19] : memref<4x9x9x4xbf16, #tpu.memory_space<vmem>>, vector<1x1x9x4xbf16>
    %18 = vector.shape_cast %17 : vector<1x1x9x4xbf16> to vector<1x9x4xbf16>
    %19 = vector.shape_cast %16 : vector<1x9x4xbf16> to vector<1x1x9x4xbf16>
    tpu.vector_store %arg11[%c2, %c8_17, %c0_18, %c0_19], %19 {strides = array<i32>} : memref<4x9x9x4xbf16, #tpu.memory_space<vmem>>, vector<1x1x9x4xbf16>,
    %cst_20 = arith.constant 0.000000e+00 : bf16
    %20 = vector.broadcast %cst_20 : bf16 to vector<9x1x4xbf16>
    %c2_21 = arith.constant 2 : index
    %c0_22 = arith.constant 0 : index
    %c0_23 = arith.constant 0 : index
    %c0_24 = arith.constant 0 : index
    %21 = vector.load %arg11[%c2_21, %c0_22, %c0_23, %c0_24] : memref<4x9x9x4xbf16, #tpu.memory_space<vmem>>, vector<1x9x1x4xbf16>
    %22 = vector.shape_cast %21 : vector<1x9x1x4xbf16> to vector<9x1x4xbf16>
    %23 = vector.shape_cast %20 : vector<9x1x4xbf16> to vector<1x9x1x4xbf16>
    tpu.vector_store %arg11[%c2_21, %c0_22, %c0_23, %c0_24], %23 {strides = array<i32>} : memref<4x9x9x4xbf16, #tpu.memory_space<vmem>>, vector<1x9x1x4xbf16>,
    %cst_25 = arith.constant 0.000000e+00 : bf16
    %24 = vector.broadcast %cst_25 : bf16 to vector<1x9x4xbf16>
    %c3 = arith.constant 3 : index
    %c8_26 = arith.constant 8 : index
    %c0_27 = arith.constant 0 : index
    %c0_28 = arith.constant 0 : index
    %25 = vector.load %arg11[%c3, %c8_26, %c0_27, %c0_28] : memref<4x9x9x4xbf16, #tpu.memory_space<vmem>>, vector<1x1x9x4xbf16>
    %26 = vector.shape_cast %25 : vector<1x1x9x4xbf16> to vector<1x9x4xbf16>
    %27 = vector.shape_cast %24 : vector<1x9x4xbf16> to vector<1x1x9x4xbf16>
    tpu.vector_store %arg11[%c3, %c8_26, %c0_27, %c0_28], %27 {strides = array<i32>} : memref<4x9x9x4xbf16, #tpu.memory_space<vmem>>, vector<1x1x9x4xbf16>,
    %cst_29 = arith.constant 0.000000e+00 : bf16
    %28 = vector.broadcast %cst_29 : bf16 to vector<9x1x4xbf16>
    %c3_30 = arith.constant 3 : index
    %c0_31 = arith.constant 0 : index
    %c8_32 = arith.constant 8 : index
    %c0_33 = arith.constant 0 : index
    %29 = vector.load %arg11[%c3_30, %c0_31, %c8_32, %c0_33] : memref<4x9x9x4xbf16, #tpu.memory_space<vmem>>, vector<1x9x1x4xbf16>
    %30 = vector.shape_cast %29 : vector<1x9x1x4xbf16> to vector<9x1x4xbf16>
    %31 = vector.shape_cast %28 : vector<9x1x4xbf16> to vector<1x9x1x4xbf16>
    tpu.vector_store %arg11[%c3_30, %c0_31, %c8_32, %c0_33], %31 {strides = array<i32>} : memref<4x9x9x4xbf16, #tpu.memory_space<vmem>>, vector<1x9x1x4xbf16>,
    %c0_34 = arith.constant 0 : index
    %c0_35 = arith.constant 0 : index
    %c0_36 = arith.constant 0 : index
    %c0_37 = arith.constant 0 : index
    %32 = vector.load %arg1[%c0_34, %c0_35, %c0_36, %c0_37] : memref<1x9x9x48xbf16, #tpu.memory_space<vmem>>, vector<1x8x8x48xbf16>
    %33 = vector.shape_cast %32 : vector<1x8x8x48xbf16> to vector<8x8x48xbf16>
    %34 = vector.shape_cast %33 : vector<8x8x48xbf16> to vector<64x48xbf16>
    %c0_38 = arith.constant 0 : index
    %c0_39 = arith.constant 0 : index
    %c1_40 = arith.constant 1 : index
    %c0_41 = arith.constant 0 : index
    %35 = vector.load %arg1[%c0_38, %c0_39, %c1_40, %c0_41] : memref<1x9x9x48xbf16, #tpu.memory_space<vmem>>, vector<1x8x8x48xbf16>
    %36 = vector.shape_cast %35 : vector<1x8x8x48xbf16> to vector<8x8x48xbf16>
    %37 = vector.shape_cast %36 : vector<8x8x48xbf16> to vector<64x48xbf16>
    %c0_42 = arith.constant 0 : index
    %c1_43 = arith.constant 1 : index
    %c0_44 = arith.constant 0 : index
    %c0_45 = arith.constant 0 : index
    %38 = vector.load %arg1[%c0_42, %c1_43, %c0_44, %c0_45] : memref<1x9x9x48xbf16, #tpu.memory_space<vmem>>, vector<1x8x8x48xbf16>
    %39 = vector.shape_cast %38 : vector<1x8x8x48xbf16> to vector<8x8x48xbf16>
    %40 = vector.shape_cast %39 : vector<8x8x48xbf16> to vector<64x48xbf16>
    %c0_46 = arith.constant 0 : index
    %c1_47 = arith.constant 1 : index
    %c1_48 = arith.constant 1 : index
    %c0_49 = arith.constant 0 : index
    %41 = vector.load %arg1[%c0_46, %c1_47, %c1_48, %c0_49] : memref<1x9x9x48xbf16, #tpu.memory_space<vmem>>, vector<1x8x8x48xbf16>
    %42 = vector.shape_cast %41 : vector<1x8x8x48xbf16> to vector<8x8x48xbf16>
    %43 = vector.shape_cast %42 : vector<8x8x48xbf16> to vector<64x48xbf16>
    %c0_50 = arith.constant 0 : index
    %c0_51 = arith.constant 0 : index
    %44 = vector.load %arg4[%c0_50, %c0_51] : memref<1x4xf32, #tpu.memory_space<vmem>>, vector<1x4xf32>
    %c0_52 = arith.constant 0 : index
    %c0_53 = arith.constant 0 : index
    %45 = vector.load %arg5[%c0_52, %c0_53] : memref<1x4xf32, #tpu.memory_space<vmem>>, vector<1x4xf32>
    %c0_54 = arith.constant 0 : index
    %c0_55 = arith.constant 0 : index
    %46 = vector.load %arg6[%c0_54, %c0_55] : memref<1x8xf32, #tpu.memory_space<vmem>>, vector<1x8xf32>
    %c0_56 = arith.constant 0 : index
    %c0_57 = arith.constant 0 : index
    %47 = vector.load %arg7[%c0_56, %c0_57] : memref<1x8xf32, #tpu.memory_space<vmem>>, vector<1x8xf32>
    %c0_58 = arith.constant 0 : index
    %c0_59 = arith.constant 0 : index
    %48 = vector.load %arg9[%c0_58, %c0_59] : memref<1x128xf32, #tpu.memory_space<vmem>>, vector<1x128xf32>
    %c0_60 = arith.constant 0 : index
    %c0_61 = arith.constant 0 : index
    %c0_62 = arith.constant 0 : index
    %49 = vector.load %arg2[%c0_60, %c0_61, %c0_62] : memref<9x48x4xbf16, #tpu.memory_space<vmem>>, vector<1x48x4xbf16>
    %50 = vector.shape_cast %49 : vector<1x48x4xbf16> to vector<48x4xbf16>
    %cst_63 = arith.constant dense<0.000000e+00> : vector<64x4xf32>
    %51 = tpu.matmul %43, %50, %cst_63 {dimension_numbers = #tpu.dot_dimension_numbers<[1], [0], [0], [1], [0, 0, 1, 1], [], []>} : vector<64x48xbf16>, vector<48x4xbf16>, vector<64x4xf32> -> vector<64x4xf32>
    %52 = vector.broadcast %44 : vector<1x4xf32> to vector<64x4xf32>
    %53 = arith.mulf %51, %52 : vector<64x4xf32>
    %54 = vector.broadcast %45 : vector<1x4xf32> to vector<64x4xf32>
    %55 = arith.addf %53, %54 : vector<64x4xf32>
    %cst_64 = arith.constant 0.000000e+00 : f32
    %56 = vector.broadcast %cst_64 : f32 to vector<64x4xf32>
    %57 = arith.maximumf %55, %56 : vector<64x4xf32>
    %58 = vector.shape_cast %57 : vector<64x4xf32> to vector<8x8x4xf32>
    %59 = arith.truncf %58 : vector<8x8x4xf32> to vector<8x8x4xbf16>
    %c0_65 = arith.constant 0 : index
    %c1_66 = arith.constant 1 : index
    %c1_67 = arith.constant 1 : index
    %c0_68 = arith.constant 0 : index
    %60 = vector.load %arg11[%c0_65, %c1_66, %c1_67, %c0_68] : memref<4x9x9x4xbf16, #tpu.memory_space<vmem>>, vector<1x8x8x4xbf16>
    %61 = vector.shape_cast %60 : vector<1x8x8x4xbf16> to vector<8x8x4xbf16>
    %62 = vector.shape_cast %59 : vector<8x8x4xbf16> to vector<1x8x8x4xbf16>
    tpu.vector_store %arg11[%c0_65, %c1_66, %c1_67, %c0_68], %62 {strides = array<i32>} : memref<4x9x9x4xbf16, #tpu.memory_space<vmem>>, vector<1x8x8x4xbf16>,
    %c1_69 = arith.constant 1 : index
    %c0_70 = arith.constant 0 : index
    %c0_71 = arith.constant 0 : index
    %63 = vector.load %arg2[%c1_69, %c0_70, %c0_71] : memref<9x48x4xbf16, #tpu.memory_space<vmem>>, vector<1x48x4xbf16>
    %64 = vector.shape_cast %63 : vector<1x48x4xbf16> to vector<48x4xbf16>
    %cst_72 = arith.constant dense<0.000000e+00> : vector<64x4xf32>
    %65 = tpu.matmul %40, %64, %cst_72 {dimension_numbers = #tpu.dot_dimension_numbers<[1], [0], [0], [1], [0, 0, 1, 1], [], []>} : vector<64x48xbf16>, vector<48x4xbf16>, vector<64x4xf32> -> vector<64x4xf32>
    %c2_73 = arith.constant 2 : index
    %c0_74 = arith.constant 0 : index
    %c0_75 = arith.constant 0 : index
    %66 = vector.load %arg2[%c2_73, %c0_74, %c0_75] : memref<9x48x4xbf16, #tpu.memory_space<vmem>>, vector<1x48x4xbf16>
    %67 = vector.shape_cast %66 : vector<1x48x4xbf16> to vector<48x4xbf16>
    %cst_76 = arith.constant dense<0.000000e+00> : vector<64x4xf32>
    %68 = tpu.matmul %43, %67, %cst_76 {dimension_numbers = #tpu.dot_dimension_numbers<[1], [0], [0], [1], [0, 0, 1, 1], [], []>} : vector<64x48xbf16>, vector<48x4xbf16>, vector<64x4xf32> -> vector<64x4xf32>
    %69 = arith.addf %65, %68 : vector<64x4xf32>
    %70 = vector.broadcast %44 : vector<1x4xf32> to vector<64x4xf32>
    %71 = arith.mulf %69, %70 : vector<64x4xf32>
    %72 = vector.broadcast %45 : vector<1x4xf32> to vector<64x4xf32>
    %73 = arith.addf %71, %72 : vector<64x4xf32>
    %cst_77 = arith.constant 0.000000e+00 : f32
    %74 = vector.broadcast %cst_77 : f32 to vector<64x4xf32>
    %75 = arith.maximumf %73, %74 : vector<64x4xf32>
    %76 = vector.shape_cast %75 : vector<64x4xf32> to vector<8x8x4xf32>
    %77 = arith.truncf %76 : vector<8x8x4xf32> to vector<8x8x4xbf16>
    %c1_78 = arith.constant 1 : index
    %c1_79 = arith.constant 1 : index
    %c0_80 = arith.constant 0 : index
    %c0_81 = arith.constant 0 : index
    %78 = vector.load %arg11[%c1_78, %c1_79, %c0_80, %c0_81] : memref<4x9x9x4xbf16, #tpu.memory_space<vmem>>, vector<1x8x8x4xbf16>
    %79 = vector.shape_cast %78 : vector<1x8x8x4xbf16> to vector<8x8x4xbf16>
    %80 = vector.shape_cast %77 : vector<8x8x4xbf16> to vector<1x8x8x4xbf16>
    tpu.vector_store %arg11[%c1_78, %c1_79, %c0_80, %c0_81], %80 {strides = array<i32>} : memref<4x9x9x4xbf16, #tpu.memory_space<vmem>>, vector<1x8x8x4xbf16>,
    %c3_82 = arith.constant 3 : index
    %c0_83 = arith.constant 0 : index
    %c0_84 = arith.constant 0 : index
    %81 = vector.load %arg2[%c3_82, %c0_83, %c0_84] : memref<9x48x4xbf16, #tpu.memory_space<vmem>>, vector<1x48x4xbf16>
    %82 = vector.shape_cast %81 : vector<1x48x4xbf16> to vector<48x4xbf16>
    %cst_85 = arith.constant dense<0.000000e+00> : vector<64x4xf32>
    %83 = tpu.matmul %37, %82, %cst_85 {dimension_numbers = #tpu.dot_dimension_numbers<[1], [0], [0], [1], [0, 0, 1, 1], [], []>} : vector<64x48xbf16>, vector<48x4xbf16>, vector<64x4xf32> -> vector<64x4xf32>
    %c4 = arith.constant 4 : index
    %c0_86 = arith.constant 0 : index
    %c0_87 = arith.constant 0 : index
    %84 = vector.load %arg2[%c4, %c0_86, %c0_87] : memref<9x48x4xbf16, #tpu.memory_space<vmem>>, vector<1x48x4xbf16>
    %85 = vector.shape_cast %84 : vector<1x48x4xbf16> to vector<48x4xbf16>
    %cst_88 = arith.constant dense<0.000000e+00> : vector<64x4xf32>
    %86 = tpu.matmul %43, %85, %cst_88 {dimension_numbers = #tpu.dot_dimension_numbers<[1], [0], [0], [1], [0, 0, 1, 1], [], []>} : vector<64x48xbf16>, vector<48x4xbf16>, vector<64x4xf32> -> vector<64x4xf32>
    %87 = arith.addf %83, %86 : vector<64x4xf32>
    %88 = vector.broadcast %44 : vector<1x4xf32> to vector<64x4xf32>
    %89 = arith.mulf %87, %88 : vector<64x4xf32>
    %90 = vector.broadcast %45 : vector<1x4xf32> to vector<64x4xf32>
    %91 = arith.addf %89, %90 : vector<64x4xf32>
    %cst_89 = arith.constant 0.000000e+00 : f32
    %92 = vector.broadcast %cst_89 : f32 to vector<64x4xf32>
    %93 = arith.maximumf %91, %92 : vector<64x4xf32>
    %94 = vector.shape_cast %93 : vector<64x4xf32> to vector<8x8x4xf32>
    %95 = arith.truncf %94 : vector<8x8x4xf32> to vector<8x8x4xbf16>
    %c2_90 = arith.constant 2 : index
    %c0_91 = arith.constant 0 : index
    %c1_92 = arith.constant 1 : index
    %c0_93 = arith.constant 0 : index
    %96 = vector.load %arg11[%c2_90, %c0_91, %c1_92, %c0_93] : memref<4x9x9x4xbf16, #tpu.memory_space<vmem>>, vector<1x8x8x4xbf16>
    %97 = vector.shape_cast %96 : vector<1x8x8x4xbf16> to vector<8x8x4xbf16>
    %98 = vector.shape_cast %95 : vector<8x8x4xbf16> to vector<1x8x8x4xbf16>
    tpu.vector_store %arg11[%c2_90, %c0_91, %c1_92, %c0_93], %98 {strides = array<i32>} : memref<4x9x9x4xbf16, #tpu.memory_space<vmem>>, vector<1x8x8x4xbf16>,
    %c5 = arith.constant 5 : index
    %c0_94 = arith.constant 0 : index
    %c0_95 = arith.constant 0 : index
    %99 = vector.load %arg2[%c5, %c0_94, %c0_95] : memref<9x48x4xbf16, #tpu.memory_space<vmem>>, vector<1x48x4xbf16>
    %100 = vector.shape_cast %99 : vector<1x48x4xbf16> to vector<48x4xbf16>
    %cst_96 = arith.constant dense<0.000000e+00> : vector<64x4xf32>
    %101 = tpu.matmul %34, %100, %cst_96 {dimension_numbers = #tpu.dot_dimension_numbers<[1], [0], [0], [1], [0, 0, 1, 1], [], []>} : vector<64x48xbf16>, vector<48x4xbf16>, vector<64x4xf32> -> vector<64x4xf32>
    %c6 = arith.constant 6 : index
    %c0_97 = arith.constant 0 : index
    %c0_98 = arith.constant 0 : index
    %102 = vector.load %arg2[%c6, %c0_97, %c0_98] : memref<9x48x4xbf16, #tpu.memory_space<vmem>>, vector<1x48x4xbf16>
    %103 = vector.shape_cast %102 : vector<1x48x4xbf16> to vector<48x4xbf16>
    %cst_99 = arith.constant dense<0.000000e+00> : vector<64x4xf32>
    %104 = tpu.matmul %37, %103, %cst_99 {dimension_numbers = #tpu.dot_dimension_numbers<[1], [0], [0], [1], [0, 0, 1, 1], [], []>} : vector<64x48xbf16>, vector<48x4xbf16>, vector<64x4xf32> -> vector<64x4xf32>
    %105 = arith.addf %101, %104 : vector<64x4xf32>
    %c7 = arith.constant 7 : index
    %c0_100 = arith.constant 0 : index
    %c0_101 = arith.constant 0 : index
    %106 = vector.load %arg2[%c7, %c0_100, %c0_101] : memref<9x48x4xbf16, #tpu.memory_space<vmem>>, vector<1x48x4xbf16>
    %107 = vector.shape_cast %106 : vector<1x48x4xbf16> to vector<48x4xbf16>
    %cst_102 = arith.constant dense<0.000000e+00> : vector<64x4xf32>
    %108 = tpu.matmul %40, %107, %cst_102 {dimension_numbers = #tpu.dot_dimension_numbers<[1], [0], [0], [1], [0, 0, 1, 1], [], []>} : vector<64x48xbf16>, vector<48x4xbf16>, vector<64x4xf32> -> vector<64x4xf32>
    %109 = arith.addf %105, %108 : vector<64x4xf32>
    %c8_103 = arith.constant 8 : index
    %c0_104 = arith.constant 0 : index
    %c0_105 = arith.constant 0 : index
    %110 = vector.load %arg2[%c8_103, %c0_104, %c0_105] : memref<9x48x4xbf16, #tpu.memory_space<vmem>>, vector<1x48x4xbf16>
    %111 = vector.shape_cast %110 : vector<1x48x4xbf16> to vector<48x4xbf16>
    %cst_106 = arith.constant dense<0.000000e+00> : vector<64x4xf32>
    %112 = tpu.matmul %43, %111, %cst_106 {dimension_numbers = #tpu.dot_dimension_numbers<[1], [0], [0], [1], [0, 0, 1, 1], [], []>} : vector<64x48xbf16>, vector<48x4xbf16>, vector<64x4xf32> -> vector<64x4xf32>
    %113 = arith.addf %109, %112 : vector<64x4xf32>
    %114 = vector.broadcast %44 : vector<1x4xf32> to vector<64x4xf32>
    %115 = arith.mulf %113, %114 : vector<64x4xf32>
    %116 = vector.broadcast %45 : vector<1x4xf32> to vector<64x4xf32>
    %117 = arith.addf %115, %116 : vector<64x4xf32>
    %cst_107 = arith.constant 0.000000e+00 : f32
    %118 = vector.broadcast %cst_107 : f32 to vector<64x4xf32>
    %119 = arith.maximumf %117, %118 : vector<64x4xf32>
    %120 = vector.shape_cast %119 : vector<64x4xf32> to vector<8x8x4xf32>
    %121 = arith.truncf %120 : vector<8x8x4xf32> to vector<8x8x4xbf16>
    %c3_108 = arith.constant 3 : index
    %c0_109 = arith.constant 0 : index
    %c0_110 = arith.constant 0 : index
    %c0_111 = arith.constant 0 : index
    %122 = vector.load %arg11[%c3_108, %c0_109, %c0_110, %c0_111] : memref<4x9x9x4xbf16, #tpu.memory_space<vmem>>, vector<1x8x8x4xbf16>
    %123 = vector.shape_cast %122 : vector<1x8x8x4xbf16> to vector<8x8x4xbf16>
    %124 = vector.shape_cast %121 : vector<8x8x4xbf16> to vector<1x8x8x4xbf16>
    tpu.vector_store %arg11[%c3_108, %c0_109, %c0_110, %c0_111], %124 {strides = array<i32>} : memref<4x9x9x4xbf16, #tpu.memory_space<vmem>>, vector<1x8x8x4xbf16>,
    %c0_112 = arith.constant 0 : index
    %c0_113 = arith.constant 0 : index
    %c0_114 = arith.constant 0 : index
    %c0_115 = arith.constant 0 : index
    %125 = vector.load %arg11[%c0_112, %c0_113, %c0_114, %c0_115] : memref<4x9x9x4xbf16, #tpu.memory_space<vmem>>, vector<1x8x8x4xbf16>
    %126 = vector.shape_cast %125 : vector<1x8x8x4xbf16> to vector<8x8x4xbf16>
    %127 = vector.shape_cast %126 : vector<8x8x4xbf16> to vector<64x4xbf16>
    %c0_116 = arith.constant 0 : index
    %c0_117 = arith.constant 0 : index
    %c0_118 = arith.constant 0 : index
    %128 = vector.load %arg3[%c0_116, %c0_117, %c0_118] : memref<9x4x8xbf16, #tpu.memory_space<vmem>>, vector<1x4x8xbf16>
    %129 = vector.shape_cast %128 : vector<1x4x8xbf16> to vector<4x8xbf16>
    %cst_119 = arith.constant dense<0.000000e+00> : vector<64x8xf32>
    %130 = tpu.matmul %127, %129, %cst_119 {dimension_numbers = #tpu.dot_dimension_numbers<[1], [0], [0], [1], [0, 0, 1, 1], [], []>} : vector<64x4xbf16>, vector<4x8xbf16>, vector<64x8xf32> -> vector<64x8xf32>
    %c1_120 = arith.constant 1 : index
    %c0_121 = arith.constant 0 : index
    %c0_122 = arith.constant 0 : index
    %c0_123 = arith.constant 0 : index
    %131 = vector.load %arg11[%c1_120, %c0_121, %c0_122, %c0_123] : memref<4x9x9x4xbf16, #tpu.memory_space<vmem>>, vector<1x8x8x4xbf16>
    %132 = vector.shape_cast %131 : vector<1x8x8x4xbf16> to vector<8x8x4xbf16>
    %133 = vector.shape_cast %132 : vector<8x8x4xbf16> to vector<64x4xbf16>
    %c1_124 = arith.constant 1 : index
    %c0_125 = arith.constant 0 : index
    %c0_126 = arith.constant 0 : index
    %134 = vector.load %arg3[%c1_124, %c0_125, %c0_126] : memref<9x4x8xbf16, #tpu.memory_space<vmem>>, vector<1x4x8xbf16>
    %135 = vector.shape_cast %134 : vector<1x4x8xbf16> to vector<4x8xbf16>
    %cst_127 = arith.constant dense<0.000000e+00> : vector<64x8xf32>
    %136 = tpu.matmul %133, %135, %cst_127 {dimension_numbers = #tpu.dot_dimension_numbers<[1], [0], [0], [1], [0, 0, 1, 1], [], []>} : vector<64x4xbf16>, vector<4x8xbf16>, vector<64x8xf32> -> vector<64x8xf32>
    %137 = arith.addf %130, %136 : vector<64x8xf32>
    %c0_128 = arith.constant 0 : index
    %c0_129 = arith.constant 0 : index
    %c1_130 = arith.constant 1 : index
    %c0_131 = arith.constant 0 : index
    %138 = vector.load %arg11[%c0_128, %c0_129, %c1_130, %c0_131] : memref<4x9x9x4xbf16, #tpu.memory_space<vmem>>, vector<1x8x8x4xbf16>
    %139 = vector.shape_cast %138 : vector<1x8x8x4xbf16> to vector<8x8x4xbf16>
    %140 = vector.shape_cast %139 : vector<8x8x4xbf16> to vector<64x4xbf16>
    %c2_132 = arith.constant 2 : index
    %c0_133 = arith.constant 0 : index
    %c0_134 = arith.constant 0 : index
    %141 = vector.load %arg3[%c2_132, %c0_133, %c0_134] : memref<9x4x8xbf16, #tpu.memory_space<vmem>>, vector<1x4x8xbf16>
    %142 = vector.shape_cast %141 : vector<1x4x8xbf16> to vector<4x8xbf16>
    %cst_135 = arith.constant dense<0.000000e+00> : vector<64x8xf32>
    %143 = tpu.matmul %140, %142, %cst_135 {dimension_numbers = #tpu.dot_dimension_numbers<[1], [0], [0], [1], [0, 0, 1, 1], [], []>} : vector<64x4xbf16>, vector<4x8xbf16>, vector<64x8xf32> -> vector<64x8xf32>
    %144 = arith.addf %137, %143 : vector<64x8xf32>
    %c2_136 = arith.constant 2 : index
    %c0_137 = arith.constant 0 : index
    %c0_138 = arith.constant 0 : index
    %c0_139 = arith.constant 0 : index
    %145 = vector.load %arg11[%c2_136, %c0_137, %c0_138, %c0_139] : memref<4x9x9x4xbf16, #tpu.memory_space<vmem>>, vector<1x8x8x4xbf16>
    %146 = vector.shape_cast %145 : vector<1x8x8x4xbf16> to vector<8x8x4xbf16>
    %147 = vector.shape_cast %146 : vector<8x8x4xbf16> to vector<64x4xbf16>
    %c3_140 = arith.constant 3 : index
    %c0_141 = arith.constant 0 : index
    %c0_142 = arith.constant 0 : index
    %148 = vector.load %arg3[%c3_140, %c0_141, %c0_142] : memref<9x4x8xbf16, #tpu.memory_space<vmem>>, vector<1x4x8xbf16>
    %149 = vector.shape_cast %148 : vector<1x4x8xbf16> to vector<4x8xbf16>
    %cst_143 = arith.constant dense<0.000000e+00> : vector<64x8xf32>
    %150 = tpu.matmul %147, %149, %cst_143 {dimension_numbers = #tpu.dot_dimension_numbers<[1], [0], [0], [1], [0, 0, 1, 1], [], []>} : vector<64x4xbf16>, vector<4x8xbf16>, vector<64x8xf32> -> vector<64x8xf32>
    %151 = arith.addf %144, %150 : vector<64x8xf32>
    %c3_144 = arith.constant 3 : index
    %c0_145 = arith.constant 0 : index
    %c0_146 = arith.constant 0 : index
    %c0_147 = arith.constant 0 : index
    %152 = vector.load %arg11[%c3_144, %c0_145, %c0_146, %c0_147] : memref<4x9x9x4xbf16, #tpu.memory_space<vmem>>, vector<1x8x8x4xbf16>
    %153 = vector.shape_cast %152 : vector<1x8x8x4xbf16> to vector<8x8x4xbf16>
    %154 = vector.shape_cast %153 : vector<8x8x4xbf16> to vector<64x4xbf16>
    %c4_148 = arith.constant 4 : index
    %c0_149 = arith.constant 0 : index
    %c0_150 = arith.constant 0 : index
    %155 = vector.load %arg3[%c4_148, %c0_149, %c0_150] : memref<9x4x8xbf16, #tpu.memory_space<vmem>>, vector<1x4x8xbf16>
    %156 = vector.shape_cast %155 : vector<1x4x8xbf16> to vector<4x8xbf16>
    %cst_151 = arith.constant dense<0.000000e+00> : vector<64x8xf32>
    %157 = tpu.matmul %154, %156, %cst_151 {dimension_numbers = #tpu.dot_dimension_numbers<[1], [0], [0], [1], [0, 0, 1, 1], [], []>} : vector<64x4xbf16>, vector<4x8xbf16>, vector<64x8xf32> -> vector<64x8xf32>
    %158 = arith.addf %151, %157 : vector<64x8xf32>
    %c2_152 = arith.constant 2 : index
    %c0_153 = arith.constant 0 : index
    %c1_154 = arith.constant 1 : index
    %c0_155 = arith.constant 0 : index
    %159 = vector.load %arg11[%c2_152, %c0_153, %c1_154, %c0_155] : memref<4x9x9x4xbf16, #tpu.memory_space<vmem>>, vector<1x8x8x4xbf16>
    %160 = vector.shape_cast %159 : vector<1x8x8x4xbf16> to vector<8x8x4xbf16>
    %161 = vector.shape_cast %160 : vector<8x8x4xbf16> to vector<64x4xbf16>
    %c5_156 = arith.constant 5 : index
    %c0_157 = arith.constant 0 : index
    %c0_158 = arith.constant 0 : index
    %162 = vector.load %arg3[%c5_156, %c0_157, %c0_158] : memref<9x4x8xbf16, #tpu.memory_space<vmem>>, vector<1x4x8xbf16>
    %163 = vector.shape_cast %162 : vector<1x4x8xbf16> to vector<4x8xbf16>
    %cst_159 = arith.constant dense<0.000000e+00> : vector<64x8xf32>
    %164 = tpu.matmul %161, %163, %cst_159 {dimension_numbers = #tpu.dot_dimension_numbers<[1], [0], [0], [1], [0, 0, 1, 1], [], []>} : vector<64x4xbf16>, vector<4x8xbf16>, vector<64x8xf32> -> vector<64x8xf32>
    %165 = arith.addf %158, %164 : vector<64x8xf32>
    %c0_160 = arith.constant 0 : index
    %c1_161 = arith.constant 1 : index
    %c0_162 = arith.constant 0 : index
    %c0_163 = arith.constant 0 : index
    %166 = vector.load %arg11[%c0_160, %c1_161, %c0_162, %c0_163] : memref<4x9x9x4xbf16, #tpu.memory_space<vmem>>, vector<1x8x8x4xbf16>
    %167 = vector.shape_cast %166 : vector<1x8x8x4xbf16> to vector<8x8x4xbf16>
    %168 = vector.shape_cast %167 : vector<8x8x4xbf16> to vector<64x4xbf16>
    %c6_164 = arith.constant 6 : index
    %c0_165 = arith.constant 0 : index
    %c0_166 = arith.constant 0 : index
    %169 = vector.load %arg3[%c6_164, %c0_165, %c0_166] : memref<9x4x8xbf16, #tpu.memory_space<vmem>>, vector<1x4x8xbf16>
    %170 = vector.shape_cast %169 : vector<1x4x8xbf16> to vector<4x8xbf16>
    %cst_167 = arith.constant dense<0.000000e+00> : vector<64x8xf32>
    %171 = tpu.matmul %168, %170, %cst_167 {dimension_numbers = #tpu.dot_dimension_numbers<[1], [0], [0], [1], [0, 0, 1, 1], [], []>} : vector<64x4xbf16>, vector<4x8xbf16>, vector<64x8xf32> -> vector<64x8xf32>
    %172 = arith.addf %165, %171 : vector<64x8xf32>
    %c1_168 = arith.constant 1 : index
    %c1_169 = arith.constant 1 : index
    %c0_170 = arith.constant 0 : index
    %c0_171 = arith.constant 0 : index
    %173 = vector.load %arg11[%c1_168, %c1_169, %c0_170, %c0_171] : memref<4x9x9x4xbf16, #tpu.memory_space<vmem>>, vector<1x8x8x4xbf16>
    %174 = vector.shape_cast %173 : vector<1x8x8x4xbf16> to vector<8x8x4xbf16>
    %175 = vector.shape_cast %174 : vector<8x8x4xbf16> to vector<64x4xbf16>
    %c7_172 = arith.constant 7 : index
    %c0_173 = arith.constant 0 : index
    %c0_174 = arith.constant 0 : index
    %176 = vector.load %arg3[%c7_172, %c0_173, %c0_174] : memref<9x4x8xbf16, #tpu.memory_space<vmem>>, vector<1x4x8xbf16>
    %177 = vector.shape_cast %176 : vector<1x4x8xbf16> to vector<4x8xbf16>
    %cst_175 = arith.constant dense<0.000000e+00> : vector<64x8xf32>
    %178 = tpu.matmul %175, %177, %cst_175 {dimension_numbers = #tpu.dot_dimension_numbers<[1], [0], [0], [1], [0, 0, 1, 1], [], []>} : vector<64x4xbf16>, vector<4x8xbf16>, vector<64x8xf32> -> vector<64x8xf32>
    %179 = arith.addf %172, %178 : vector<64x8xf32>
    %c0_176 = arith.constant 0 : index
    %c1_177 = arith.constant 1 : index
    %c1_178 = arith.constant 1 : index
    %c0_179 = arith.constant 0 : index
    %180 = vector.load %arg11[%c0_176, %c1_177, %c1_178, %c0_179] : memref<4x9x9x4xbf16, #tpu.memory_space<vmem>>, vector<1x8x8x4xbf16>
    %181 = vector.shape_cast %180 : vector<1x8x8x4xbf16> to vector<8x8x4xbf16>
    %182 = vector.shape_cast %181 : vector<8x8x4xbf16> to vector<64x4xbf16>
    %c8_180 = arith.constant 8 : index
    %c0_181 = arith.constant 0 : index
    %c0_182 = arith.constant 0 : index
    %183 = vector.load %arg3[%c8_180, %c0_181, %c0_182] : memref<9x4x8xbf16, #tpu.memory_space<vmem>>, vector<1x4x8xbf16>
    %184 = vector.shape_cast %183 : vector<1x4x8xbf16> to vector<4x8xbf16>
    %cst_183 = arith.constant dense<0.000000e+00> : vector<64x8xf32>
    %185 = tpu.matmul %182, %184, %cst_183 {dimension_numbers = #tpu.dot_dimension_numbers<[1], [0], [0], [1], [0, 0, 1, 1], [], []>} : vector<64x4xbf16>, vector<4x8xbf16>, vector<64x8xf32> -> vector<64x8xf32>
    %186 = arith.addf %179, %185 : vector<64x8xf32>
    %187 = vector.broadcast %46 : vector<1x8xf32> to vector<64x8xf32>
    %188 = arith.mulf %186, %187 : vector<64x8xf32>
    %189 = vector.broadcast %47 : vector<1x8xf32> to vector<64x8xf32>
    %190 = arith.addf %188, %189 : vector<64x8xf32>
    %cst_184 = arith.constant 0.000000e+00 : f32
    %191 = vector.broadcast %cst_184 : f32 to vector<64x8xf32>
    %192 = arith.maximumf %190, %191 : vector<64x8xf32>
    %193 = arith.truncf %192 : vector<64x8xf32> to vector<64x8xbf16>
    %c0_185 = arith.constant 0 : index
    %c0_186 = arith.constant 0 : index
    %194 = vector.load %arg8[%c0_185, %c0_186] : memref<8x128xbf16, #tpu.memory_space<vmem>>, vector<8x128xbf16>
    %cst_187 = arith.constant dense<0.000000e+00> : vector<64x128xf32>
    %195 = tpu.matmul %193, %194, %cst_187 {dimension_numbers = #tpu.dot_dimension_numbers<[1], [0], [0], [1], [0, 0, 1, 1], [], []>} : vector<64x8xbf16>, vector<8x128xbf16>, vector<64x128xf32> -> vector<64x128xf32>
    %196 = vector.broadcast %48 : vector<1x128xf32> to vector<64x128xf32>
    %197 = arith.addf %195, %196 : vector<64x128xf32>
    %c0_188 = arith.constant 0 : index
    %c0_189 = arith.constant 0 : index
    %c0_190 = arith.constant 0 : index
    %198 = vector.load %arg10[%c0_188, %c0_189, %c0_190] : memref<1x64x128xf32, #tpu.memory_space<vmem>>, vector<1x64x128xf32>
    %199 = vector.shape_cast %198 : vector<1x64x128xf32> to vector<64x128xf32>
    %200 = vector.shape_cast %197 : vector<64x128xf32> to vector<1x64x128xf32>
    tpu.vector_store %arg10[%c0_188, %c0_189, %c0_190], %200 {strides = array<i32>} : memref<1x64x128xf32, #tpu.memory_space<vmem>>, vector<1x64x128xf32>,
    return
  }
  func.func @transform_0(%arg0: i32) -> (i32, i32, i32, i32) {
    %c0_i32 = arith.constant 0 : i32
    %c0_i32_0 = arith.constant 0 : i32
    %c0_i32_1 = arith.constant 0 : i32
    %c0_i32_2 = arith.constant 0 : i32
    return %arg0, %c0_i32, %c0_i32_0, %c0_i32_1 : i32, i32, i32, i32
  }
  func.func @transform_1(%arg0: i32) -> (i32, i32, i32) {
    %c0_i32 = arith.constant 0 : i32
    %c0_i32_0 = arith.constant 0 : i32
    %c0_i32_1 = arith.constant 0 : i32
    %c0_i32_2 = arith.constant 0 : i32
    return %c0_i32, %c0_i32_0, %c0_i32_1 : i32, i32, i32
  }
  func.func @transform_2(%arg0: i32) -> (i32, i32, i32) {
    %c0_i32 = arith.constant 0 : i32
    %c0_i32_0 = arith.constant 0 : i32
    %c0_i32_1 = arith.constant 0 : i32
    %c0_i32_2 = arith.constant 0 : i32
    return %c0_i32, %c0_i32_0, %c0_i32_1 : i32, i32, i32
  }
  func.func @transform_3(%arg0: i32) -> (i32, i32) {
    %c0_i32 = arith.constant 0 : i32
    %c0_i32_0 = arith.constant 0 : i32
    %c0_i32_1 = arith.constant 0 : i32
    return %c0_i32, %c0_i32_0 : i32, i32
  }
  func.func @transform_4(%arg0: i32) -> (i32, i32) {
    %c0_i32 = arith.constant 0 : i32
    %c0_i32_0 = arith.constant 0 : i32
    %c0_i32_1 = arith.constant 0 : i32
    return %c0_i32, %c0_i32_0 : i32, i32
  }
  func.func @transform_5(%arg0: i32) -> (i32, i32) {
    %c0_i32 = arith.constant 0 : i32
    %c0_i32_0 = arith.constant 0 : i32
    %c0_i32_1 = arith.constant 0 : i32
    return %c0_i32, %c0_i32_0 : i32, i32
  }
  func.func @transform_6(%arg0: i32) -> (i32, i32) {
    %c0_i32 = arith.constant 0 : i32
    %c0_i32_0 = arith.constant 0 : i32
    %c0_i32_1 = arith.constant 0 : i32
    return %c0_i32, %c0_i32_0 : i32, i32
  }
  func.func @transform_7(%arg0: i32) -> (i32, i32) {
    %c0_i32 = arith.constant 0 : i32
    %c0_i32_0 = arith.constant 0 : i32
    %c0_i32_1 = arith.constant 0 : i32
    return %c0_i32, %c0_i32_0 : i32, i32
  }
  func.func @transform_8(%arg0: i32) -> (i32, i32) {
    %c0_i32 = arith.constant 0 : i32
    %c0_i32_0 = arith.constant 0 : i32
    %c0_i32_1 = arith.constant 0 : i32
    return %c0_i32, %c0_i32_0 : i32, i32
  }
  func.func @transform_9(%arg0: i32) -> (i32, i32, i32) {
    %c0_i32 = arith.constant 0 : i32
    %c0_i32_0 = arith.constant 0 : i32
    %c0_i32_1 = arith.constant 0 : i32
    return %arg0, %c0_i32, %c0_i32_0 : i32, i32, i32
  }
}

</mosaic_0001>

<llo_original>
// kernel: conv_stem_forward.1
$region0: #{conv_stem_forward.1}
  #allocation0 [shape = 'u32[]', space=smem, size = 0x4, offset = 0x4, fixed_abs, tag = 'smem constant byte address 0x4 - core index']
  #allocation1 [shape = 'u32[72,128]{1,0:T(1,128)}', space=vmem, size = 0x9000, scoped, tag = 'internal scratch']
  #allocation2 [shape = 'bf16[4,9,9,4]{3,2,1,0:T(8,128)(2,1)}', space=vmem, size = 0x24000, scoped, tag = 'scratch operand']
  %s0 = inlined_call_operand.vmem [shape: bf16[2,9,9,48], index: 0, kind: input, shape index: {}]
  %s1 = inlined_call_operand.vmem [shape: bf16[9,48,4], index: 1, kind: input, shape index: {}]
  %s2 = inlined_call_operand.vmem [shape: bf16[9,4,8], index: 2, kind: input, shape index: {}]
  %s3 = inlined_call_operand.vmem [shape: f32[1,4], index: 3, kind: input, shape index: {}]
  %s4 = inlined_call_operand.vmem [shape: f32[1,4], index: 4, kind: input, shape index: {}]
  %s5 = inlined_call_operand.vmem [shape: f32[1,8], index: 5, kind: input, shape index: {}]
  %s6 = inlined_call_operand.vmem [shape: f32[1,8], index: 6, kind: input, shape index: {}]
  %s7 = inlined_call_operand.vmem [shape: bf16[8,128], index: 7, kind: input, shape index: {}]
  %s8 = inlined_call_operand.vmem [shape: f32[1,128], index: 8, kind: input, shape index: {}]
  %s9 = inlined_call_operand.vmem [shape: f32[2,64,128], index: 9, kind: output, shape index: {}]
  %s10 = sld [smem:[#allocation0]]
  $region69: #{conv_stem_forward.1} parent=0
    _
  %s12 = ssub.s32 1, %s10
  %s13 = scalar_select 0, %s12, %s10
  loop: start=0, step=1, limit=4
  $region2: #{conv_stem_forward.1} parent=0 // loop_pre_header
    _
  $region3: #{conv_stem_forward.1} parent=0 // loop_header
    %s15 = sphi 0, %s19
    %p16 = scmp.ge.s32.totalorder %s15, 4
    %s25 = sphi 0, %s27
    %s28 = sphi 0, %s25
    %s29 = sphi 0, %s28
    %s45 = sphi 0, %s29
    %s49 = sphi 0, %s49
    %s51 = sphi 0, %s49
    %s52 = sphi 0, %s51
    %s66 = sphi 0, %s52
    %s70 = sphi 0, %s70
    %s72 = sphi 0, %s70
    %s73 = sphi 0, %s72
    %s87 = sphi 0, %s73
    %s91 = sphi 0, %s91
    %s93 = sphi 0, %s91
    %s94 = sphi 0, %s93
    %s108 = sphi 0, %s94
    %s112 = sphi 0, %s112
    %s114 = sphi 0, %s112
    %s115 = sphi 0, %s114
    %s129 = sphi 0, %s115
    %s133 = sphi 0, %s133
    %s135 = sphi 0, %s133
    %s136 = sphi 0, %s135
    %s150 = sphi 0, %s136
    %s154 = sphi 0, %s154
    %s156 = sphi 0, %s154
    %s157 = sphi 0, %s156
    %s171 = sphi 0, %s157
    %s175 = sphi 0, %s175
    %s177 = sphi 0, %s175
    %s178 = sphi 0, %s177
    %s192 = sphi 0, %s178
    %s196 = sphi 0, %s196
    %s198 = sphi 0, %s196
    %s199 = sphi 0, %s198
    %s213 = sphi 0, %s199
    %s219 = sphi 0, %s221
    %s222 = sphi 0, %s219
    %s223 = sphi 0, %s222
    %s239 = sphi 0, %s223
  $region4: #{conv_stem_forward.1} parent=0 // loop_header_branch
    %18 = sbr.rel (%p16) target = $region8
  $region5: #{conv_stem_forward.1} parent=0 // loop_body
    %s20 = ssub.s32 %s15, 1
    %s21 = ssub.s32 %s15, 2
    %s22 = sadd.s32 %s15, 1
    %s23 = ssub.s32 %s15, %s22
    %p24 = scmp.eq.s32.totalorder %s23, 0
    %s26 = sadd.s32 %s25, 1
    %s27 = scalar_select %p24, %s25, %s26
    %p30 = pneg %p24
    %p31 = scmp.eq.s32.totalorder %s15, 1
    %p32 = por %p30, %p31
    %p33 = scmp.ne.s32.totalorder %s25, %s28
    %p34 = scmp.eq.s32.totalorder %s15, 0
    %p35 = por %p33, %p34
    %p36 = scmp.ne.s32.totalorder %s25, %s28
    %p37 = scmp.eq.s32.totalorder %s20, 1
    %p38 = por %p36, %p37
    %p39 = scmp.ne.s32.totalorder %s28, %s29
    %p40 = scmp.eq.s32.totalorder %s20, 0
    %p41 = por %p39, %p40
    %p42 = scmp.ne.s32.totalorder %s28, %s29
    %p43 = scmp.eq.s32.totalorder %s21, 1
    %p44 = por %p42, %p43
    %p46 = scmp.ne.s32.totalorder %s29, %s45
    %p47 = scmp.eq.s32.totalorder %s21, 0
    %p48 = por %p46, %p47
    %s50 = sadd.s32 %s49, 1
    %p53 = scmp.eq.s32.totalorder %s15, 1
    %p54 = scmp.ne.s32.totalorder %s49, %s51
    %p55 = scmp.eq.s32.totalorder %s15, 0
    %p56 = por %p54, %p55
    %p57 = scmp.ne.s32.totalorder %s49, %s51
    %p58 = scmp.eq.s32.totalorder %s20, 1
    %p59 = por %p57, %p58
    %p60 = scmp.ne.s32.totalorder %s51, %s52
    %p61 = scmp.eq.s32.totalorder %s20, 0
    %p62 = por %p60, %p61
    %p63 = scmp.ne.s32.totalorder %s51, %s52
    %p64 = scmp.eq.s32.totalorder %s21, 1
    %p65 = por %p63, %p64
    %p67 = scmp.ne.s32.totalorder %s52, %s66
    %p68 = scmp.eq.s32.totalorder %s21, 0
    %p69 = por %p67, %p68
    %s71 = sadd.s32 %s70, 1
    %p74 = scmp.eq.s32.totalorder %s15, 1
    %p75 = scmp.ne.s32.totalorder %s70, %s72
    %p76 = scmp.eq.s32.totalorder %s15, 0
    %p77 = por %p75, %p76
    %p78 = scmp.ne.s32.totalorder %s70, %s72
    %p79 = scmp.eq.s32.totalorder %s20, 1
    %p80 = por %p78, %p79
    %p81 = scmp.ne.s32.totalorder %s72, %s73
    %p82 = scmp.eq.s32.totalorder %s20, 0
    %p83 = por %p81, %p82
    %p84 = scmp.ne.s32.totalorder %s72, %s73
    %p85 = scmp.eq.s32.totalorder %s21, 1
    %p86 = por %p84, %p85
    %p88 = scmp.ne.s32.totalorder %s73, %s87
    %p89 = scmp.eq.s32.totalorder %s21, 0
    %p90 = por %p88, %p89
    %s92 = sadd.s32 %s91, 1
    %p95 = scmp.eq.s32.totalorder %s15, 1
    %p96 = scmp.ne.s32.totalorder %s91, %s93
    %p97 = scmp.eq.s32.totalorder %s15, 0
    %p98 = por %p96, %p97
    %p99 = scmp.ne.s32.totalorder %s91, %s93
    %p100 = scmp.eq.s32.totalorder %s20, 1
    %p101 = por %p99, %p100
    %p102 = scmp.ne.s32.totalorder %s93, %s94
    %p103 = scmp.eq.s32.totalorder %s20, 0
    %p104 = por %p102, %p103
    %p105 = scmp.ne.s32.totalorder %s93, %s94
    %p106 = scmp.eq.s32.totalorder %s21, 1
    %p107 = por %p105, %p106
    %p109 = scmp.ne.s32.totalorder %s94, %s108
    %p110 = scmp.eq.s32.totalorder %s21, 0
    %p111 = por %p109, %p110
    %s113 = sadd.s32 %s112, 1
    %p116 = scmp.eq.s32.totalorder %s15, 1
    %p117 = scmp.ne.s32.totalorder %s112, %s114
    %p118 = scmp.eq.s32.totalorder %s15, 0
    %p119 = por %p117, %p118
    %p120 = scmp.ne.s32.totalorder %s112, %s114
    %p121 = scmp.eq.s32.totalorder %s20, 1
    %p122 = por %p120, %p121
    %p123 = scmp.ne.s32.totalorder %s114, %s115
    %p124 = scmp.eq.s32.totalorder %s20, 0
    %p125 = por %p123, %p124
    %p126 = scmp.ne.s32.totalorder %s114, %s115
    %p127 = scmp.eq.s32.totalorder %s21, 1
    %p128 = por %p126, %p127
    %p130 = scmp.ne.s32.totalorder %s115, %s129
    %p131 = scmp.eq.s32.totalorder %s21, 0
    %p132 = por %p130, %p131
    %s134 = sadd.s32 %s133, 1
    %p137 = scmp.eq.s32.totalorder %s15, 1
    %p138 = scmp.ne.s32.totalorder %s133, %s135
    %p139 = scmp.eq.s32.totalorder %s15, 0
    %p140 = por %p138, %p139
    %p141 = scmp.ne.s32.totalorder %s133, %s135
    %p142 = scmp.eq.s32.totalorder %s20, 1
    %p143 = por %p141, %p142
    %p144 = scmp.ne.s32.totalorder %s135, %s136
    %p145 = scmp.eq.s32.totalorder %s20, 0
    %p146 = por %p144, %p145
    %p147 = scmp.ne.s32.totalorder %s135, %s136
    %p148 = scmp.eq.s32.totalorder %s21, 1
    %p149 = por %p147, %p148
    %p151 = scmp.ne.s32.totalorder %s136, %s150
    %p152 = scmp.eq.s32.totalorder %s21, 0
    %p153 = por %p151, %p152
    %s155 = sadd.s32 %s154, 1
    %p158 = scmp.eq.s32.totalorder %s15, 1
    %p159 = scmp.ne.s32.totalorder %s154, %s156
    %p160 = scmp.eq.s32.totalorder %s15, 0
    %p161 = por %p159, %p160
    %p162 = scmp.ne.s32.totalorder %s154, %s156
    %p163 = scmp.eq.s32.totalorder %s20, 1
    %p164 = por %p162, %p163
    %p165 = scmp.ne.s32.totalorder %s156, %s157
    %p166 = scmp.eq.s32.totalorder %s20, 0
    %p167 = por %p165, %p166
    %p168 = scmp.ne.s32.totalorder %s156, %s157
    %p169 = scmp.eq.s32.totalorder %s21, 1
    %p170 = por %p168, %p169
    %p172 = scmp.ne.s32.totalorder %s157, %s171
    %p173 = scmp.eq.s32.totalorder %s21, 0
    %p174 = por %p172, %p173
    %s176 = sadd.s32 %s175, 1
    %p179 = scmp.eq.s32.totalorder %s15, 1
    %p180 = scmp.ne.s32.totalorder %s175, %s177
    %p181 = scmp.eq.s32.totalorder %s15, 0
    %p182 = por %p180, %p181
    %p183 = scmp.ne.s32.totalorder %s175, %s177
    %p184 = scmp.eq.s32.totalorder %s20, 1
    %p185 = por %p183, %p184
    %p186 = scmp.ne.s32.totalorder %s177, %s178
    %p187 = scmp.eq.s32.totalorder %s20, 0
    %p188 = por %p186, %p187
    %p189 = scmp.ne.s32.totalorder %s177, %s178
    %p190 = scmp.eq.s32.totalorder %s21, 1
    %p191 = por %p189, %p190
    %p193 = scmp.ne.s32.totalorder %s178, %s192
    %p194 = scmp.eq.s32.totalorder %s21, 0
    %p195 = por %p193, %p194
    %s197 = sadd.s32 %s196, 1
    %p200 = scmp.eq.s32.totalorder %s15, 1
    %p201 = scmp.ne.s32.totalorder %s196, %s198
    %p202 = scmp.eq.s32.totalorder %s15, 0
    %p203 = por %p201, %p202
    %p204 = scmp.ne.s32.totalorder %s196, %s198
    %p205 = scmp.eq.s32.totalorder %s20, 1
    %p206 = por %p204, %p205
    %p207 = scmp.ne.s32.totalorder %s198, %s199
    %p208 = scmp.eq.s32.totalorder %s20, 0
    %p209 = por %p207, %p208
    %p210 = scmp.ne.s32.totalorder %s198, %s199
    %p211 = scmp.eq.s32.totalorder %s21, 1
    %p212 = por %p210, %p211
    %p214 = scmp.ne.s32.totalorder %s199, %s213
    %p215 = scmp.eq.s32.totalorder %s21, 0
    %p216 = por %p214, %p215
    %s217 = ssub.s32 %s15, %s22
    %p218 = scmp.eq.s32.totalorder %s217, 0
    %s220 = sadd.s32 %s219, 1
    %s221 = scalar_select %p218, %s219, %s220
    %p224 = pneg %p218
    %p225 = scmp.eq.s32.totalorder %s15, 1
    %p226 = por %p224, %p225
    %p227 = scmp.ne.s32.totalorder %s219, %s222
    %p228 = scmp.eq.s32.totalorder %s15, 0
    %p229 = por %p227, %p228
    %p230 = scmp.ne.s32.totalorder %s219, %s222
    %p231 = scmp.eq.s32.totalorder %s20, 1
    %p232 = por %p230, %p231
    %p233 = scmp.ne.s32.totalorder %s222, %s223
    %p234 = scmp.eq.s32.totalorder %s20, 0
    %p235 = por %p233, %p234
    %p236 = scmp.ne.s32.totalorder %s222, %s223
    %p237 = scmp.eq.s32.totalorder %s21, 1
    %p238 = por %p236, %p237
    %p240 = scmp.ne.s32.totalorder %s223, %s239
    %p241 = scmp.eq.s32.totalorder %s21, 0
    %p242 = por %p240, %p241
    %p243 = scmp.le.s32.totalorder 1, %s15
    %p244 = scmp.lt.s32.totalorder %s15, 3
    %p245 = pnand %p243, %p244
    %p246 = pneg %p245
    // Predicated region
    $region9: #{conv_stem_forward.1} parent=5 // pred_check
      _
    $region10: #{conv_stem_forward.1} parent=5 // pred_check_branch
      %248 = sbr.rel (%p245) target = $region12
    $region11: #{conv_stem_forward.1} parent=5 // pred_region
      %s249 = ssub.s32 %s15, 1
      // Predicated region
      $region13: #{conv_stem_forward.1} parent=11 // pred_check
        %p250 = pneg %p62
      $region14: #{conv_stem_forward.1} parent=11 // pred_check_branch
        %252 = sbr.rel (%p250) target = $region16
      $region15: #{conv_stem_forward.1} parent=11 // pred_region
        _
      $region16: #{conv_stem_forward.1} parent=11 // pred_fallthru
        _
      // Predicated region
      $region17: #{conv_stem_forward.1} parent=11 // pred_check
        %p253 = pneg %p83
      $region18: #{conv_stem_forward.1} parent=11 // pred_check_branch
        %255 = sbr.rel (%p253) target = $region20
      $region19: #{conv_stem_forward.1} parent=11 // pred_region
        _
      $region20: #{conv_stem_forward.1} parent=11 // pred_fallthru
        _
      // Predicated region
      $region21: #{conv_stem_forward.1} parent=11 // pred_check
        %p256 = pneg %p104
      $region22: #{conv_stem_forward.1} parent=11 // pred_check_branch
        %258 = sbr.rel (%p256) target = $region24
      $region23: #{conv_stem_forward.1} parent=11 // pred_region
        _
      $region24: #{conv_stem_forward.1} parent=11 // pred_fallthru
        _
      // Predicated region
      $region25: #{conv_stem_forward.1} parent=11 // pred_check
        %p259 = pneg %p125
      $region26: #{conv_stem_forward.1} parent=11 // pred_check_branch
        %261 = sbr.rel (%p259) target = $region28
      $region27: #{conv_stem_forward.1} parent=11 // pred_region
        _
      $region28: #{conv_stem_forward.1} parent=11 // pred_fallthru
        _
      // Predicated region
      $region29: #{conv_stem_forward.1} parent=11 // pred_check
        %p262 = pneg %p146
      $region30: #{conv_stem_forward.1} parent=11 // pred_check_branch
        %264 = sbr.rel (%p262) target = $region32
      $region31: #{conv_stem_forward.1} parent=11 // pred_region
        _
      $region32: #{conv_stem_forward.1} parent=11 // pred_fallthru
        _
      // Predicated region
      $region33: #{conv_stem_forward.1} parent=11 // pred_check
        %p265 = pneg %p167
      $region34: #{conv_stem_forward.1} parent=11 // pred_check_branch
        %267 = sbr.rel (%p265) target = $region36
      $region35: #{conv_stem_forward.1} parent=11 // pred_region
        _
      $region36: #{conv_stem_forward.1} parent=11 // pred_fallthru
        _
      // Predicated region
      $region37: #{conv_stem_forward.1} parent=11 // pred_check
        %p268 = pneg %p188
      $region38: #{conv_stem_forward.1} parent=11 // pred_check_branch
        %270 = sbr.rel (%p268) target = $region40
      $region39: #{conv_stem_forward.1} parent=11 // pred_region
        _
      $region40: #{conv_stem_forward.1} parent=11 // pred_fallthru
        _
      // Predicated region
      $region41: #{conv_stem_forward.1} parent=11 // pred_check
        %p271 = pneg %p209
      $region42: #{conv_stem_forward.1} parent=11 // pred_check_branch
        %273 = sbr.rel (%p271) target = $region44
      $region43: #{conv_stem_forward.1} parent=11 // pred_region
        _
      $region44: #{conv_stem_forward.1} parent=11 // pred_fallthru
        _
    $region12: #{conv_stem_forward.1} parent=5 // pred_fallthru
      _
    %p274 = scmp.lt.s32.totalorder %s15, 2
    // Predicated region
    $region45: #{conv_stem_forward.1} parent=5 // pred_check
      %p275 = pneg %p274
    $region46: #{conv_stem_forward.1} parent=5 // pred_check_branch
      %277 = sbr.rel (%p275) target = $region48
    $region47: #{conv_stem_forward.1} parent=5 // pred_region
      // Predicated region
      $region49: #{conv_stem_forward.1} parent=47 // pred_check
        %p278 = pneg %p35
      $region50: #{conv_stem_forward.1} parent=47 // pred_check_branch
        %280 = sbr.rel (%p278) target = $region52
      $region51: #{conv_stem_forward.1} parent=47 // pred_region
        %p281 = scmp.lt.s32.totalorder %s15, 1
        %s282 = scalar_select %p281, %s15, 1
        %s283 = smul.addr %s282, 18
        %s284 = smul.addr %s283, 4
        %s285 = scalar_lea.vmem %s0, %s284
      $region52: #{conv_stem_forward.1} parent=47 // pred_fallthru
        _
    $region48: #{conv_stem_forward.1} parent=5 // pred_fallthru
      _
    %p286 = scmp.le.s32.totalorder 1, %s15
    %p287 = scmp.lt.s32.totalorder %s15, 3
    %p288 = pnand %p286, %p287
    %p289 = pneg %p288
    // Predicated region
    $region53: #{conv_stem_forward.1} parent=5 // pred_check
      _
    $region54: #{conv_stem_forward.1} parent=5 // pred_check_branch
      %291 = sbr.rel (%p288) target = $region56
    $region55: #{conv_stem_forward.1} parent=5 // pred_region
      %s292 = ssub.s32 %s15, 1
      %p293 = scmp.lt.s32.totalorder %s20, 1
      %s294 = scalar_select %p293, %s20, 1
      %s295 = smul.addr %s294, 18
      %s296 = smul.addr %s295, 4
      %s297 = scalar_lea.vmem %s0, %s296
      %p298 = pneg %p41
      %p299 = pneg %p38
      %p300 = pneg %p62
      %p301 = pneg %p59
      %p302 = pneg %p83
      %p303 = pneg %p80
      %p304 = pneg %p104
      %p305 = pneg %p101
      %p306 = pneg %p125
      %p307 = pneg %p122
      %p308 = pneg %p146
      %p309 = pneg %p143
      %p310 = pneg %p167
      %p311 = pneg %p164
      %p312 = pneg %p188
      %p313 = pneg %p185
      %p314 = pneg %p209
      %p315 = pneg %p206
      %p316 = pneg %p235
      %p317 = pneg %p232
      %p318 = scmp.lt.s32.totalorder %s20, 1
      %s319 = scalar_select %p318, %s20, 1
      %s320 = smul.addr %s319, 8
      %s321 = smul.addr %s320, 8
      %s322 = scalar_lea.vmem %s9, %s321
      %p323 = scmp.lt.s32.totalorder %s20, 1
      %s324 = scalar_select %p323, %s20, 1
      %s325 = smul.addr %s324, 18
      %s326 = smul.addr %s325, 4
      %s327 = scalar_lea.vmem %s0, %s326
      %p328 = scmp.lt.s32.totalorder %s20, 1
      %s329 = scalar_select %p328, %s20, 1
      %s330 = smul.addr %s329, 8
      %s331 = smul.addr %s330, 8
      %s332 = scalar_lea.vmem %s9, %s331
      %vm334 = vcmask 27648
      %335 = vst.msk [vmem:[#allocation2] sm:$0xf] %vm334, 0
      %vm336 = vcmask 24576
      %vm337 = vsmask.f32 256
      %vm338 = vmand %vm336, %vm337
      %v339 = vld [vmem:[#allocation2 + $0x4] sm:$0x1]
      %v340 = vsel %vm338, 0, %v339
      %341 = vst [vmem:[#allocation2 + $0x4] sm:$0x1] %v340
      %v342 = vld [vmem:[#allocation2] sm:$0x1]
      %v343 = vsel %vm338, 0, %v342
      %344 = vst [vmem:[#allocation2] sm:$0x1] %v343
      %v345 = vld [vmem:[#allocation2 + $0x8] sm:$0x1]
      %v346 = vsel %vm338, 0, %v345
      %347 = vst [vmem:[#allocation2 + $0x8] sm:$0x1] %v346
      %v348 = vld [vmem:[#allocation2 + $0x10] sm:$0x1]
      %v349 = vsel %vm338, 0, %v348
      %350 = vst [vmem:[#allocation2 + $0x10] sm:$0x1] %v349
      %v351 = vld [vmem:[#allocation2 + $0x18] sm:$0x1]
      %v352 = vsel %vm338, 0, %v351
      %353 = vst [vmem:[#allocation2 + $0x18] sm:$0x1] %v352
      %v354 = vld [vmem:[#allocation2 + $0x20] sm:$0x1]
      %v355 = vsel %vm338, 0, %v354
      %356 = vst [vmem:[#allocation2 + $0x20] sm:$0x1] %v355
      %v357 = vld [vmem:[#allocation2 + $0x28] sm:$0x1]
      %v358 = vsel %vm338, 0, %v357
      %359 = vst [vmem:[#allocation2 + $0x28] sm:$0x1] %v358
      %v360 = vld [vmem:[#allocation2 + $0x30] sm:$0x1]
      %v361 = vsel %vm338, 0, %v360
      %362 = vst [vmem:[#allocation2 + $0x30] sm:$0x1] %v361
      %v363 = vld [vmem:[#allocation2 + $0x38] sm:$0x1]
      %v364 = vsel %vm338, 0, %v363
      %365 = vst [vmem:[#allocation2 + $0x38] sm:$0x1] %v364
      %v366 = vld [vmem:[#allocation2 + $0x40] sm:$0x1]
      %v367 = vsel %vm338, 0, %v366
      %368 = vst [vmem:[#allocation2 + $0x40] sm:$0x1] %v367
      %s369 = scalar_lea.vmem [#allocation2], 72
      %370 = vst.msk [vmem:[%s369] sm:$0xf] %vm334, 0
      %v371 = vld [vmem:[%s369 + $0x4] sm:$0x1]
      %v372 = vsel %vm338, 0, %v371
      %373 = vst [vmem:[%s369 + $0x4] sm:$0x1] %v372
      %v374 = vld [vmem:[%s369 + $0x4] sm:$0x1]
      %v375 = vsel %vm338, 0, %v374
      %376 = vst [vmem:[%s369 + $0x4] sm:$0x1] %v375
      %v377 = vld [vmem:[%s369 + $0xc] sm:$0x1]
      %v378 = vsel %vm338, 0, %v377
      %379 = vst [vmem:[%s369 + $0xc] sm:$0x1] %v378
      %v380 = vld [vmem:[%s369 + $0x14] sm:$0x1]
      %v381 = vsel %vm338, 0, %v380
      %382 = vst [vmem:[%s369 + $0x14] sm:$0x1] %v381
      %v383 = vld [vmem:[%s369 + $0x1c] sm:$0x1]
      %v384 = vsel %vm338, 0, %v383
      %385 = vst [vmem:[%s369 + $0x1c] sm:$0x1] %v384
      %v386 = vld [vmem:[%s369 + $0x24] sm:$0x1]
      %v387 = vsel %vm338, 0, %v386
      %388 = vst [vmem:[%s369 + $0x24] sm:$0x1] %v387
      %v389 = vld [vmem:[%s369 + $0x2c] sm:$0x1]
      %v390 = vsel %vm338, 0, %v389
      %391 = vst [vmem:[%s369 + $0x2c] sm:$0x1] %v390
      %v392 = vld [vmem:[%s369 + $0x34] sm:$0x1]
      %v393 = vsel %vm338, 0, %v392
      %394 = vst [vmem:[%s369 + $0x34] sm:$0x1] %v393
      %v395 = vld [vmem:[%s369 + $0x3c] sm:$0x1]
      %v396 = vsel %vm338, 0, %v395
      %397 = vst [vmem:[%s369 + $0x3c] sm:$0x1] %v396
      %v398 = vld [vmem:[%s369 + $0x44] sm:$0x1]
      %v399 = vsel %vm338, 0, %v398
      %400 = vst [vmem:[%s369 + $0x44] sm:$0x1] %v399
      %s401 = scalar_lea.vmem [#allocation2], 208
      %402 = vst.msk [vmem:[%s401] sm:$0xf] %vm334, 0
      %v403 = vld [vmem:[%s401 + $0x4] sm:$0x1]
      %v404 = vsel %vm338, 0, %v403
      %405 = vst [vmem:[%s401 + $0x4] sm:$0x1] %v404
      %s406 = scalar_lea.vmem [#allocation2], 144
      %v407 = vld [vmem:[%s406] sm:$0x1]
      %v408 = vsel %vm338, 0, %v407
      %409 = vst [vmem:[%s406] sm:$0x1] %v408
      %v410 = vld [vmem:[%s406 + $0x8] sm:$0x1]
      %v411 = vsel %vm338, 0, %v410
      %412 = vst [vmem:[%s406 + $0x8] sm:$0x1] %v411
      %v413 = vld [vmem:[%s406 + $0x10] sm:$0x1]
      %v414 = vsel %vm338, 0, %v413
      %415 = vst [vmem:[%s406 + $0x10] sm:$0x1] %v414
      %v416 = vld [vmem:[%s406 + $0x18] sm:$0x1]
      %v417 = vsel %vm338, 0, %v416
      %418 = vst [vmem:[%s406 + $0x18] sm:$0x1] %v417
      %v419 = vld [vmem:[%s406 + $0x20] sm:$0x1]
      %v420 = vsel %vm338, 0, %v419
      %421 = vst [vmem:[%s406 + $0x20] sm:$0x1] %v420
      %v422 = vld [vmem:[%s406 + $0x28] sm:$0x1]
      %v423 = vsel %vm338, 0, %v422
      %424 = vst [vmem:[%s406 + $0x28] sm:$0x1] %v423
      %v425 = vld [vmem:[%s406 + $0x30] sm:$0x1]
      %v426 = vsel %vm338, 0, %v425
      %427 = vst [vmem:[%s406 + $0x30] sm:$0x1] %v426
      %v428 = vld [vmem:[%s406 + $0x38] sm:$0x1]
      %v429 = vsel %vm338, 0, %v428
      %430 = vst [vmem:[%s406 + $0x38] sm:$0x1] %v429
      %v431 = vld [vmem:[%s406 + $0x40] sm:$0x1]
      %v432 = vsel %vm338, 0, %v431
      %433 = vst [vmem:[%s406 + $0x40] sm:$0x1] %v432
      %s434 = scalar_lea.vmem [#allocation2], 280
      %435 = vst.msk [vmem:[%s434] sm:$0xf] %vm334, 0
      %v436 = vld [vmem:[%s434 + $0x4] sm:$0x1]
      %v437 = vsel %vm338, 0, %v436
      %438 = vst [vmem:[%s434 + $0x4] sm:$0x1] %v437
      %s439 = scalar_lea.vmem [#allocation2], 216
      %v440 = vld [vmem:[%s439 + $0x4] sm:$0x1]
      %v441 = vsel %vm338, 0, %v440
      %442 = vst [vmem:[%s439 + $0x4] sm:$0x1] %v441
      %v443 = vld [vmem:[%s439 + $0xc] sm:$0x1]
      %v444 = vsel %vm338, 0, %v443
      %445 = vst [vmem:[%s439 + $0xc] sm:$0x1] %v444
      %v446 = vld [vmem:[%s439 + $0x14] sm:$0x1]
      %v447 = vsel %vm338, 0, %v446
      %448 = vst [vmem:[%s439 + $0x14] sm:$0x1] %v447
      %v449 = vld [vmem:[%s439 + $0x1c] sm:$0x1]
      %v450 = vsel %vm338, 0, %v449
      %451 = vst [vmem:[%s439 + $0x1c] sm:$0x1] %v450
      %v452 = vld [vmem:[%s439 + $0x24] sm:$0x1]
      %v453 = vsel %vm338, 0, %v452
      %454 = vst [vmem:[%s439 + $0x24] sm:$0x1] %v453
      %v455 = vld [vmem:[%s439 + $0x2c] sm:$0x1]
      %v456 = vsel %vm338, 0, %v455
      %457 = vst [vmem:[%s439 + $0x2c] sm:$0x1] %v456
      %v458 = vld [vmem:[%s439 + $0x34] sm:$0x1]
      %v459 = vsel %vm338, 0, %v458
      %460 = vst [vmem:[%s439 + $0x34] sm:$0x1] %v459
      %v461 = vld [vmem:[%s439 + $0x3c] sm:$0x1]
      %v462 = vsel %vm338, 0, %v461
      %463 = vst [vmem:[%s439 + $0x3c] sm:$0x1] %v462
      %v464 = vld [vmem:[%s439 + $0x44] sm:$0x1]
      %v465 = vsel %vm338, 0, %v464
      %466 = vst [vmem:[%s439 + $0x44] sm:$0x1] %v465
      %v467 = vld [vmem:[%s327] sm:$0xf]
      %v468 = vld [vmem:[%s327 + $0x8] sm:$0xf]
      %v469 = vld [vmem:[%s327 + $0x10] sm:$0xf]
      %v470 = vld [vmem:[%s327 + $0x18] sm:$0xf]
      %v471 = vld [vmem:[%s327 + $0x20] sm:$0xf]
      %v472 = vld [vmem:[%s327 + $0x28] sm:$0xf]
      %v473 = vld [vmem:[%s327 + $0x30] sm:$0xf]
      %v474 = vld [vmem:[%s327 + $0x38] sm:$0xf]
      %v475 = vld [vmem:[%s327 + $0x4] sm:$0x1]
      %v476 = vld [vmem:[%s327 + $0xc] sm:$0x1]
      %v477 = vld [vmem:[%s327 + $0x14] sm:$0x1]
      %v478 = vld [vmem:[%s327 + $0x1c] sm:$0x1]
      %v479 = vld [vmem:[%s327 + $0x24] sm:$0x1]
      %v480 = vld [vmem:[%s327 + $0x2c] sm:$0x1]
      %v481 = vld [vmem:[%s327 + $0x34] sm:$0x1]
      %v482 = vld [vmem:[%s327 + $0x3c] sm:$0x1]
      %vm483 = vsmask.f32 3328
      %vm484 = vsmask.f32 7440
      %vm485 = vmor %vm483, %vm484
      %v487 = vshrl.u32 %v467, 16
      %v489 = vrot.slane %v487, 4
      %v490 = vshll.u32 %v467, 16
      %v492 = vrot.slane %v490, 5
      %v493 = vor.u32 %v489, %v492
      %v494 = vrot.slane %v493, 4
      %v496 = vshll.u32 %v475, 16
      %v498 = vrot.slane %v496, 5
      %v499 = vsel %vm485, %v494, %v498
      %v501 = vshrl.u32 %v468, 16
      %v503 = vrot.slane %v501, 4
      %v504 = vshll.u32 %v468, 16
      %v506 = vrot.slane %v504, 5
      %v507 = vor.u32 %v503, %v506
      %v508 = vrot.slane %v507, 4
      %v510 = vshll.u32 %v476, 16
      %v512 = vrot.slane %v510, 5
      %v513 = vsel %vm485, %v508, %v512
      %v515 = vshrl.u32 %v469, 16
      %v517 = vrot.slane %v515, 4
      %v518 = vshll.u32 %v469, 16
      %v520 = vrot.slane %v518, 5
      %v521 = vor.u32 %v517, %v520
      %v522 = vrot.slane %v521, 4
      %v524 = vshll.u32 %v477, 16
      %v526 = vrot.slane %v524, 5
      %v527 = vsel %vm485, %v522, %v526
      %v529 = vshrl.u32 %v470, 16
      %v531 = vrot.slane %v529, 4
      %v532 = vshll.u32 %v470, 16
      %v534 = vrot.slane %v532, 5
      %v535 = vor.u32 %v531, %v534
      %v536 = vrot.slane %v535, 4
      %v538 = vshll.u32 %v478, 16
      %v540 = vrot.slane %v538, 5
      %v541 = vsel %vm485, %v536, %v540
      %v543 = vshrl.u32 %v471, 16
      %v545 = vrot.slane %v543, 4
      %v546 = vshll.u32 %v471, 16
      %v548 = vrot.slane %v546, 5
      %v549 = vor.u32 %v545, %v548
      %v550 = vrot.slane %v549, 4
      %v552 = vshll.u32 %v479, 16
      %v554 = vrot.slane %v552, 5
      %v555 = vsel %vm485, %v550, %v554
      %v557 = vshrl.u32 %v472, 16
      %v559 = vrot.slane %v557, 4
      %v560 = vshll.u32 %v472, 16
      %v562 = vrot.slane %v560, 5
      %v563 = vor.u32 %v559, %v562
      %v564 = vrot.slane %v563, 4
      %v566 = vshll.u32 %v480, 16
      %v568 = vrot.slane %v566, 5
      %v569 = vsel %vm485, %v564, %v568
      %v571 = vshrl.u32 %v473, 16
      %v573 = vrot.slane %v571, 4
      %v574 = vshll.u32 %v473, 16
      %v576 = vrot.slane %v574, 5
      %v577 = vor.u32 %v573, %v576
      %v578 = vrot.slane %v577, 4
      %v580 = vshll.u32 %v481, 16
      %v582 = vrot.slane %v580, 5
      %v583 = vsel %vm485, %v578, %v582
      %v585 = vshrl.u32 %v474, 16
      %v587 = vrot.slane %v585, 4
      %v588 = vshll.u32 %v474, 16
      %v590 = vrot.slane %v588, 5
      %v591 = vor.u32 %v587, %v590
      %v592 = vrot.slane %v591, 4
      %v594 = vshll.u32 %v482, 16
      %v596 = vrot.slane %v594, 5
      %v597 = vsel %vm485, %v592, %v596
      %s598 = scalar_lea.vmem %s327, 8
      %v599 = vld [vmem:[%s598] sm:$0xf]
      %v600 = vld [vmem:[%s598 + $0x8] sm:$0xf]
      %v601 = vld [vmem:[%s598 + $0x10] sm:$0xf]
      %v602 = vld [vmem:[%s598 + $0x18] sm:$0xf]
      %v603 = vld [vmem:[%s598 + $0x20] sm:$0xf]
      %v604 = vld [vmem:[%s598 + $0x28] sm:$0xf]
      %v605 = vld [vmem:[%s598 + $0x30] sm:$0xf]
      %v606 = vld [vmem:[%s598 + $0x38] sm:$0xf]
      %v607 = vld [vmem:[%s598 + $0x4] sm:$0x1]
      %v608 = vld [vmem:[%s598 + $0xc] sm:$0x1]
      %v609 = vld [vmem:[%s598 + $0x14] sm:$0x1]
      %v610 = vld [vmem:[%s598 + $0x1c] sm:$0x1]
      %v611 = vld [vmem:[%s598 + $0x24] sm:$0x1]
      %v612 = vld [vmem:[%s598 + $0x2c] sm:$0x1]
      %v613 = vld [vmem:[%s598 + $0x34] sm:$0x1]
      %v614 = vld [vmem:[%s598 + $0x3c] sm:$0x1]
      %v616 = vshrl.u32 %v599, 16
      %v618 = vrot.slane %v616, 4
      %v619 = vshll.u32 %v599, 16
      %v621 = vrot.slane %v619, 5
      %v622 = vor.u32 %v618, %v621
      %v623 = vrot.slane %v622, 4
      %v625 = vshll.u32 %v607, 16
      %v627 = vrot.slane %v625, 5
      %v628 = vsel %vm485, %v623, %v627
      %v630 = vshrl.u32 %v600, 16
      %v632 = vrot.slane %v630, 4
      %v633 = vshll.u32 %v600, 16
      %v635 = vrot.slane %v633, 5
      %v636 = vor.u32 %v632, %v635
      %v637 = vrot.slane %v636, 4
      %v639 = vshll.u32 %v608, 16
      %v641 = vrot.slane %v639, 5
      %v642 = vsel %vm485, %v637, %v641
      %v644 = vshrl.u32 %v601, 16
      %v646 = vrot.slane %v644, 4
      %v647 = vshll.u32 %v601, 16
      %v649 = vrot.slane %v647, 5
      %v650 = vor.u32 %v646, %v649
      %v651 = vrot.slane %v650, 4
      %v653 = vshll.u32 %v609, 16
      %v655 = vrot.slane %v653, 5
      %v656 = vsel %vm485, %v651, %v655
      %v658 = vshrl.u32 %v602, 16
      %v660 = vrot.slane %v658, 4
      %v661 = vshll.u32 %v602, 16
      %v663 = vrot.slane %v661, 5
      %v664 = vor.u32 %v660, %v663
      %v665 = vrot.slane %v664, 4
      %v667 = vshll.u32 %v610, 16
      %v669 = vrot.slane %v667, 5
      %v670 = vsel %vm485, %v665, %v669
      %v672 = vshrl.u32 %v603, 16
      %v674 = vrot.slane %v672, 4
      %v675 = vshll.u32 %v603, 16
      %v677 = vrot.slane %v675, 5
      %v678 = vor.u32 %v674, %v677
      %v679 = vrot.slane %v678, 4
      %v681 = vshll.u32 %v611, 16
      %v683 = vrot.slane %v681, 5
      %v684 = vsel %vm485, %v679, %v683
      %v686 = vshrl.u32 %v604, 16
      %v688 = vrot.slane %v686, 4
      %v689 = vshll.u32 %v604, 16
      %v691 = vrot.slane %v689, 5
      %v692 = vor.u32 %v688, %v691
      %v693 = vrot.slane %v692, 4
      %v695 = vshll.u32 %v612, 16
      %v697 = vrot.slane %v695, 5
      %v698 = vsel %vm485, %v693, %v697
      %v700 = vshrl.u32 %v605, 16
      %v702 = vrot.slane %v700, 4
      %v703 = vshll.u32 %v605, 16
      %v705 = vrot.slane %v703, 5
      %v706 = vor.u32 %v702, %v705
      %v707 = vrot.slane %v706, 4
      %v709 = vshll.u32 %v613, 16
      %v711 = vrot.slane %v709, 5
      %v712 = vsel %vm485, %v707, %v711
      %v714 = vshrl.u32 %v606, 16
      %v716 = vrot.slane %v714, 4
      %v717 = vshll.u32 %v606, 16
      %v719 = vrot.slane %v717, 5
      %v720 = vor.u32 %v716, %v719
      %v721 = vrot.slane %v720, 4
      %v723 = vshll.u32 %v614, 16
      %v725 = vrot.slane %v723, 5
      %v726 = vsel %vm485, %v721, %v725
      %v727 = vld [vmem:[%s3] sm:$0x1]
      %v728 = vld [vmem:[%s4] sm:$0x1]
      %v729 = vld [vmem:[%s5] sm:$0x1]
      %v730 = vld [vmem:[%s6] sm:$0x1]
      %v731 = vld [vmem:[%s8] sm:$0x1]
      %v732 = vld [vmem:[%s1] sm:$0xf]
      %v733 = vld [vmem:[%s1 + $0x4] sm:$0xf]
      %v734 = vld [vmem:[%s1 + $0x8] sm:$0xf]
      %v735 = vld [vmem:[%s1 + $0xc] sm:$0xf]
      %v736 = vld [vmem:[%s1 + $0x10] sm:$0xf]
      %v737 = vld [vmem:[%s1 + $0x14] sm:$0xf]
      %v738 = vunpack.c.l.b16 %v628
      %v739 = vunpack.c.l.b16 %v642
      %v740 = vunpack.c.l.b16 %v656
      %v741 = vunpack.c.l.b16 %v670
      %v742 = vunpack.c.l.b16 %v684
      %v743 = vunpack.c.l.b16 %v698
      %v744 = vunpack.c.l.b16 %v712
      %v745 = vunpack.c.l.b16 %v726
      %v746 = vpack.c.b16 %v739, %v738
      %v747 = vpack.c.b16 %v741, %v740
      %v748 = vpack.c.b16 %v743, %v742
      %v749 = vpack.c.b16 %v745, %v744
      %v756 = vunpack.c.l.b16 %v732
      %v757 = vunpack.c.l.b16 %v733
      %v758 = vunpack.c.l.b16 %v734
      %v759 = vunpack.c.l.b16 %v735
      %v760 = vunpack.c.l.b16 %v736
      %v761 = vunpack.c.l.b16 %v737
      %v762 = vpack.c.b16 %v757, %v756
      %v763 = vpack.c.b16 %v759, %v758
      %v764 = vpack.c.b16 %v761, %v760
      %vm768 = vcmask 392192
      %v770 = vsel %vm768, %v746, 0
      %v773 = vsel %vm768, %v747, 0
      %v776 = vsel %vm768, %v748, 0
      %v779 = vsel %vm768, %v749, 0
      %781 = vmatpush.bf16.msra.mxu0 0
      %782 = vmatpush.bf16.msra.mxu0 0
      %783 = vmatpush.bf16.msra.mxu0 0
      %784 = vmatpush.bf16.msra.mxu0 0
      %785 = vmatpush.bf16.msra.mxu0 0
      %786 = vmatpush.bf16.msra.mxu0 %v764
      %787 = vmatpush.bf16.msra.mxu0 %v763
      %788 = vmatpush.bf16.msra.mxu0 %v762
      %789 = vmatmul.bf16.gmra.mxu0 %v770
      %v790 = vpop.f32.mrf.mxu0
      %v791 = vadd.f32 0.0, %v790
      %v792 = vpop.f32.mrf.mxu0
      %v793 = vadd.f32 0.0, %v792
      %794 = vmatmul.bf16.gmra.mxu0 %v773
      %v795 = vpop.f32.mrf.mxu0
      %v796 = vadd.f32 0.0, %v795
      %v797 = vpop.f32.mrf.mxu0
      %v798 = vadd.f32 0.0, %v797
      %799 = vmatmul.bf16.gmra.mxu0 %v776
      %v800 = vpop.f32.mrf.mxu0
      %v801 = vadd.f32 0.0, %v800
      %v802 = vpop.f32.mrf.mxu0
      %v803 = vadd.f32 0.0, %v802
      %804 = vmatmul.bf16.gmra.mxu0 %v779
      %v805 = vpop.f32.mrf.mxu0
      %v806 = vadd.f32 0.0, %v805
      %v807 = vpop.f32.mrf.mxu0
      %v808 = vadd.f32 0.0, %v807
      %809 = vdwg.mxu0
      %v811 = vperm.slane %v727, 0
      %v813 = vmul.f32 %v791, %v811
      %v814 = vmul.f32 %v793, %v811
      %v815 = vmul.f32 %v796, %v811
      %v816 = vmul.f32 %v798, %v811
      %v817 = vmul.f32 %v801, %v811
      %v818 = vmul.f32 %v803, %v811
      %v819 = vmul.f32 %v806, %v811
      %v820 = vmul.f32 %v808, %v811
      %v822 = vperm.slane %v728, 0
      %v824 = vadd.f32 %v813, %v822
      %v825 = vadd.f32 %v814, %v822
      %v826 = vadd.f32 %v815, %v822
      %v827 = vadd.f32 %v816, %v822
      %v828 = vadd.f32 %v817, %v822
      %v829 = vadd.f32 %v818, %v822
      %v830 = vadd.f32 %v819, %v822
      %v831 = vadd.f32 %v820, %v822
      %v832 = vmax.f32 %v824, 0.0
      %v833 = vmax.f32 %v825, 0.0
      %v834 = vmax.f32 %v826, 0.0
      %v835 = vmax.f32 %v827, 0.0
      %v836 = vmax.f32 %v828, 0.0
      %v837 = vmax.f32 %v829, 0.0
      %v838 = vmax.f32 %v830, 0.0
      %v839 = vmax.f32 %v831, 0.0
      %v840 = vpack.c.bf16 %v832, %v832
      %v841 = vpack.c.bf16 %v833, %v833
      %v842 = vpack.c.bf16 %v834, %v834
      %v843 = vpack.c.bf16 %v835, %v835
      %v844 = vpack.c.bf16 %v836, %v836
      %v845 = vpack.c.bf16 %v837, %v837
      %v846 = vpack.c.bf16 %v838, %v838
      %v847 = vpack.c.bf16 %v839, %v839
      %v849 = vshrl.u32 %v840, 16
      %v851 = vrot.slane %v849, 7
      %v852 = vshll.u32 %v840, 16
      %v854 = vor.u32 %v851, %v852
      %v855 = vrot.slane %v851, 4
      %v857 = vshrl.u32 %v841, 16
      %v859 = vrot.slane %v857, 7
      %v860 = vshll.u32 %v841, 16
      %v862 = vor.u32 %v859, %v860
      %v863 = vrot.slane %v859, 4
      %v865 = vshrl.u32 %v842, 16
      %v867 = vrot.slane %v865, 7
      %v868 = vshll.u32 %v842, 16
      %v870 = vor.u32 %v867, %v868
      %v871 = vrot.slane %v867, 4
      %v873 = vshrl.u32 %v843, 16
      %v875 = vrot.slane %v873, 7
      %v876 = vshll.u32 %v843, 16
      %v878 = vor.u32 %v875, %v876
      %v879 = vrot.slane %v875, 4
      %v881 = vshrl.u32 %v844, 16
      %v883 = vrot.slane %v881, 7
      %v884 = vshll.u32 %v844, 16
      %v886 = vor.u32 %v883, %v884
      %v887 = vrot.slane %v883, 4
      %v889 = vshrl.u32 %v845, 16
      %v891 = vrot.slane %v889, 7
      %v892 = vshll.u32 %v845, 16
      %v894 = vor.u32 %v891, %v892
      %v895 = vrot.slane %v891, 4
      %v897 = vshrl.u32 %v846, 16
      %v899 = vrot.slane %v897, 7
      %v900 = vshll.u32 %v846, 16
      %v902 = vor.u32 %v899, %v900
      %v903 = vrot.slane %v899, 4
      %v905 = vshrl.u32 %v847, 16
      %v907 = vrot.slane %v905, 7
      %v908 = vshll.u32 %v847, 16
      %v910 = vor.u32 %v907, %v908
      %v911 = vrot.slane %v907, 4
      %s928 = scalar_lea.vmem [#allocation2], 8
      %vm929 = vcmask 27648
      %vm930 = vsmask.f32 7938
      %vm931 = vmand %vm929, %vm930
      %v932 = vld [vmem:[%s928] sm:$0xf]
      %v933 = vsel %vm931, %v854, %v932
      %934 = vst [vmem:[%s928] sm:$0xf] %v933
      %v935 = vld [vmem:[%s928 + $0x4] sm:$0x1]
      %v936 = vsel %vm338, %v855, %v935
      %937 = vst [vmem:[%s928 + $0x4] sm:$0x1] %v936
      %v938 = vld [vmem:[%s928 + $0x8] sm:$0xf]
      %v939 = vsel %vm931, %v862, %v938
      %940 = vst [vmem:[%s928 + $0x8] sm:$0xf] %v939
      %v941 = vld [vmem:[%s928 + $0xc] sm:$0x1]
      %v942 = vsel %vm338, %v863, %v941
      %943 = vst [vmem:[%s928 + $0xc] sm:$0x1] %v942
      %v944 = vld [vmem:[%s928 + $0x10] sm:$0xf]
      %v945 = vsel %vm931, %v870, %v944
      %946 = vst [vmem:[%s928 + $0x10] sm:$0xf] %v945
      %v947 = vld [vmem:[%s928 + $0x14] sm:$0x1]
      %v948 = vsel %vm338, %v871, %v947
      %949 = vst [vmem:[%s928 + $0x14] sm:$0x1] %v948
      %v950 = vld [vmem:[%s928 + $0x18] sm:$0xf]
      %v951 = vsel %vm931, %v878, %v950
      %952 = vst [vmem:[%s928 + $0x18] sm:$0xf] %v951
      %v953 = vld [vmem:[%s928 + $0x1c] sm:$0x1]
      %v954 = vsel %vm338, %v879, %v953
      %955 = vst [vmem:[%s928 + $0x1c] sm:$0x1] %v954
      %v956 = vld [vmem:[%s928 + $0x20] sm:$0xf]
      %v957 = vsel %vm931, %v886, %v956
      %958 = vst [vmem:[%s928 + $0x20] sm:$0xf] %v957
      %v959 = vld [vmem:[%s928 + $0x24] sm:$0x1]
      %v960 = vsel %vm338, %v887, %v959
      %961 = vst [vmem:[%s928 + $0x24] sm:$0x1] %v960
      %v962 = vld [vmem:[%s928 + $0x28] sm:$0xf]
      %v963 = vsel %vm931, %v894, %v962
      %964 = vst [vmem:[%s928 + $0x28] sm:$0xf] %v963
      %v965 = vld [vmem:[%s928 + $0x2c] sm:$0x1]
      %v966 = vsel %vm338, %v895, %v965
      %967 = vst [vmem:[%s928 + $0x2c] sm:$0x1] %v966
      %v968 = vld [vmem:[%s928 + $0x30] sm:$0xf]
      %v969 = vsel %vm931, %v902, %v968
      %970 = vst [vmem:[%s928 + $0x30] sm:$0xf] %v969
      %v971 = vld [vmem:[%s928 + $0x34] sm:$0x1]
      %v972 = vsel %vm338, %v903, %v971
      %973 = vst [vmem:[%s928 + $0x34] sm:$0x1] %v972
      %v974 = vld [vmem:[%s928 + $0x38] sm:$0xf]
      %v975 = vsel %vm931, %v910, %v974
      %976 = vst [vmem:[%s928 + $0x38] sm:$0xf] %v975
      %v977 = vld [vmem:[%s928 + $0x3c] sm:$0x1]
      %v978 = vsel %vm338, %v911, %v977
      %979 = vst [vmem:[%s928 + $0x3c] sm:$0x1] %v978
      %s980 = scalar_lea.vmem %s1, 24
      %v981 = vld [vmem:[%s980] sm:$0xf]
      %v982 = vld [vmem:[%s980 + $0x4] sm:$0xf]
      %v983 = vld [vmem:[%s980 + $0x8] sm:$0xf]
      %v984 = vld [vmem:[%s980 + $0xc] sm:$0xf]
      %v985 = vld [vmem:[%s980 + $0x10] sm:$0xf]
      %v986 = vld [vmem:[%s980 + $0x14] sm:$0xf]
      %s987 = scalar_lea.vmem %s1, 48
      %v988 = vld [vmem:[%s987] sm:$0xf]
      %v989 = vld [vmem:[%s987 + $0x4] sm:$0xf]
      %v990 = vld [vmem:[%s987 + $0x8] sm:$0xf]
      %v991 = vld [vmem:[%s987 + $0xc] sm:$0xf]
      %v992 = vld [vmem:[%s987 + $0x10] sm:$0xf]
      %v993 = vld [vmem:[%s987 + $0x14] sm:$0xf]
      %v1000 = vunpack.c.l.b16 %v988
      %v1001 = vunpack.c.l.b16 %v989
      %v1002 = vunpack.c.l.b16 %v990
      %v1003 = vunpack.c.l.b16 %v991
      %v1004 = vunpack.c.l.b16 %v992
      %v1005 = vunpack.c.l.b16 %v993
      %v1006 = vpack.c.b16 %v1001, %v1000
      %v1007 = vpack.c.b16 %v1003, %v1002
      %v1008 = vpack.c.b16 %v1005, %v1004
      %1012 = vmatpush.bf16.msra.mxu0 0
      %1013 = vmatpush.bf16.msra.mxu0 0
      %1014 = vmatpush.bf16.msra.mxu0 0
      %1015 = vmatpush.bf16.msra.mxu0 0
      %1016 = vmatpush.bf16.msra.mxu0 0
      %1017 = vmatpush.bf16.msra.mxu0 %v1008
      %1018 = vmatpush.bf16.msra.mxu0 %v1007
      %1019 = vmatpush.bf16.msra.mxu0 %v1006
      %1020 = vmatmul.bf16.gmra.mxu0 %v770
      %v1021 = vpop.f32.mrf.mxu0
      %v1022 = vadd.f32 0.0, %v1021
      %v1023 = vpop.f32.mrf.mxu0
      %v1024 = vadd.f32 0.0, %v1023
      %1025 = vmatmul.bf16.gmra.mxu0 %v773
      %v1026 = vpop.f32.mrf.mxu0
      %v1027 = vadd.f32 0.0, %v1026
      %v1028 = vpop.f32.mrf.mxu0
      %v1029 = vadd.f32 0.0, %v1028
      %1030 = vmatmul.bf16.gmra.mxu0 %v776
      %v1031 = vpop.f32.mrf.mxu0
      %v1032 = vadd.f32 0.0, %v1031
      %v1033 = vpop.f32.mrf.mxu0
      %v1034 = vadd.f32 0.0, %v1033
      %1035 = vmatmul.bf16.gmra.mxu0 %v779
      %v1036 = vpop.f32.mrf.mxu0
      %v1037 = vadd.f32 0.0, %v1036
      %v1038 = vpop.f32.mrf.mxu0
      %v1039 = vadd.f32 0.0, %v1038
      %1040 = vdwg.mxu0
      %v1049 = vunpack.c.l.b16 %v599
      %v1050 = vunpack.c.l.b16 %v600
      %v1051 = vunpack.c.l.b16 %v601
      %v1052 = vunpack.c.l.b16 %v602
      %v1053 = vunpack.c.l.b16 %v603
      %v1054 = vunpack.c.l.b16 %v604
      %v1055 = vunpack.c.l.b16 %v605
      %v1056 = vunpack.c.l.b16 %v606
      %v1057 = vpack.c.b16 %v1050, %v1049
      %v1058 = vpack.c.b16 %v1052, %v1051
      %v1059 = vpack.c.b16 %v1054, %v1053
      %v1060 = vpack.c.b16 %v1056, %v1055
      %v1067 = vunpack.c.l.b16 %v981
      %v1068 = vunpack.c.l.b16 %v982
      %v1069 = vunpack.c.l.b16 %v983
      %v1070 = vunpack.c.l.b16 %v984
      %v1071 = vunpack.c.l.b16 %v985
      %v1072 = vunpack.c.l.b16 %v986
      %v1073 = vpack.c.b16 %v1068, %v1067
      %v1074 = vpack.c.b16 %v1070, %v1069
      %v1075 = vpack.c.b16 %v1072, %v1071
      %v1080 = vsel %vm768, %v1057, 0
      %v1083 = vsel %vm768, %v1058, 0
      %v1086 = vsel %vm768, %v1059, 0
      %v1089 = vsel %vm768, %v1060, 0
      %1091 = vmatpush.bf16.msra.mxu0 0
      %1092 = vmatpush.bf16.msra.mxu0 0
      %1093 = vmatpush.bf16.msra.mxu0 0
      %1094 = vmatpush.bf16.msra.mxu0 0
      %1095 = vmatpush.bf16.msra.mxu0 0
      %1096 = vmatpush.bf16.msra.mxu0 %v1075
      %1097 = vmatpush.bf16.msra.mxu0 %v1074
      %1098 = vmatpush.bf16.msra.mxu0 %v1073
      %1099 = vmatmul.bf16.gmra.mxu0 %v1080
      %v1100 = vpop.f32.mrf.mxu0
      %v1101 = vadd.f32 %v1022, %v1100
      %v1102 = vpop.f32.mrf.mxu0
      %v1103 = vadd.f32 %v1024, %v1102
      %1104 = vmatmul.bf16.gmra.mxu0 %v1083
      %v1105 = vpop.f32.mrf.mxu0
      %v1106 = vadd.f32 %v1027, %v1105
      %v1107 = vpop.f32.mrf.mxu0
      %v1108 = vadd.f32 %v1029, %v1107
      %1109 = vmatmul.bf16.gmra.mxu0 %v1086
      %v1110 = vpop.f32.mrf.mxu0
      %v1111 = vadd.f32 %v1032, %v1110
      %v1112 = vpop.f32.mrf.mxu0
      %v1113 = vadd.f32 %v1034, %v1112
      %1114 = vmatmul.bf16.gmra.mxu0 %v1089
      %v1115 = vpop.f32.mrf.mxu0
      %v1116 = vadd.f32 %v1037, %v1115
      %v1117 = vpop.f32.mrf.mxu0
      %v1118 = vadd.f32 %v1039, %v1117
      %1119 = vdwg.mxu0
      %v1120 = vmul.f32 %v1101, %v811
      %v1121 = vmul.f32 %v1103, %v811
      %v1122 = vmul.f32 %v1106, %v811
      %v1123 = vmul.f32 %v1108, %v811
      %v1124 = vmul.f32 %v1111, %v811
      %v1125 = vmul.f32 %v1113, %v811
      %v1126 = vmul.f32 %v1116, %v811
      %v1127 = vmul.f32 %v1118, %v811
      %v1128 = vadd.f32 %v1120, %v822
      %v1129 = vadd.f32 %v1121, %v822
      %v1130 = vadd.f32 %v1122, %v822
      %v1131 = vadd.f32 %v1123, %v822
      %v1132 = vadd.f32 %v1124, %v822
      %v1133 = vadd.f32 %v1125, %v822
      %v1134 = vadd.f32 %v1126, %v822
      %v1135 = vadd.f32 %v1127, %v822
      %v1136 = vmax.f32 %v1128, 0.0
      %v1137 = vmax.f32 %v1129, 0.0
      %v1138 = vmax.f32 %v1130, 0.0
      %v1139 = vmax.f32 %v1131, 0.0
      %v1140 = vmax.f32 %v1132, 0.0
      %v1141 = vmax.f32 %v1133, 0.0
      %v1142 = vmax.f32 %v1134, 0.0
      %v1143 = vmax.f32 %v1135, 0.0
      %v1144 = vpack.c.bf16 %v1136, %v1136
      %v1145 = vpack.c.bf16 %v1137, %v1137
      %v1146 = vpack.c.bf16 %v1138, %v1138
      %v1147 = vpack.c.bf16 %v1139, %v1139
      %v1148 = vpack.c.bf16 %v1140, %v1140
      %v1149 = vpack.c.bf16 %v1141, %v1141
      %v1150 = vpack.c.bf16 %v1142, %v1142
      %v1151 = vpack.c.bf16 %v1143, %v1143
      %s1152 = scalar_lea.vmem [#allocation2], 80
      %1153 = vst.msk [vmem:[%s1152] sm:$0xf] %vm334, %v1144
      %1154 = vst.msk [vmem:[%s1152 + $0x8] sm:$0xf] %vm334, %v1145
      %1155 = vst.msk [vmem:[%s1152 + $0x10] sm:$0xf] %vm334, %v1146
      %1156 = vst.msk [vmem:[%s1152 + $0x18] sm:$0xf] %vm334, %v1147
      %1157 = vst.msk [vmem:[%s1152 + $0x20] sm:$0xf] %vm334, %v1148
      %1158 = vst.msk [vmem:[%s1152 + $0x28] sm:$0xf] %vm334, %v1149
      %1159 = vst.msk [vmem:[%s1152 + $0x30] sm:$0xf] %vm334, %v1150
      %1160 = vst.msk [vmem:[%s1152 + $0x38] sm:$0xf] %vm334, %v1151
      %s1161 = scalar_lea.vmem %s1, 72
      %v1162 = vld [vmem:[%s1161] sm:$0xf]
      %v1163 = vld [vmem:[%s1161 + $0x4] sm:$0xf]
      %v1164 = vld [vmem:[%s1161 + $0x8] sm:$0xf]
      %v1165 = vld [vmem:[%s1161 + $0xc] sm:$0xf]
      %v1166 = vld [vmem:[%s1161 + $0x10] sm:$0xf]
      %v1167 = vld [vmem:[%s1161 + $0x14] sm:$0xf]
      %s1168 = scalar_lea.vmem %s1, 96
      %v1169 = vld [vmem:[%s1168] sm:$0xf]
      %v1170 = vld [vmem:[%s1168 + $0x4] sm:$0xf]
      %v1171 = vld [vmem:[%s1168 + $0x8] sm:$0xf]
      %v1172 = vld [vmem:[%s1168 + $0xc] sm:$0xf]
      %v1173 = vld [vmem:[%s1168 + $0x10] sm:$0xf]
      %v1174 = vld [vmem:[%s1168 + $0x14] sm:$0xf]
      %v1181 = vunpack.c.l.b16 %v1169
      %v1182 = vunpack.c.l.b16 %v1170
      %v1183 = vunpack.c.l.b16 %v1171
      %v1184 = vunpack.c.l.b16 %v1172
      %v1185 = vunpack.c.l.b16 %v1173
      %v1186 = vunpack.c.l.b16 %v1174
      %v1187 = vpack.c.b16 %v1182, %v1181
      %v1188 = vpack.c.b16 %v1184, %v1183
      %v1189 = vpack.c.b16 %v1186, %v1185
      %1193 = vmatpush.bf16.msra.mxu0 0
      %1194 = vmatpush.bf16.msra.mxu0 0
      %1195 = vmatpush.bf16.msra.mxu0 0
      %1196 = vmatpush.bf16.msra.mxu0 0
      %1197 = vmatpush.bf16.msra.mxu0 0
      %1198 = vmatpush.bf16.msra.mxu0 %v1189
      %1199 = vmatpush.bf16.msra.mxu0 %v1188
      %1200 = vmatpush.bf16.msra.mxu0 %v1187
      %1201 = vmatmul.bf16.gmra.mxu0 %v770
      %v1202 = vpop.f32.mrf.mxu0
      %v1203 = vadd.f32 0.0, %v1202
      %v1204 = vpop.f32.mrf.mxu0
      %v1205 = vadd.f32 0.0, %v1204
      %1206 = vmatmul.bf16.gmra.mxu0 %v773
      %v1207 = vpop.f32.mrf.mxu0
      %v1208 = vadd.f32 0.0, %v1207
      %v1209 = vpop.f32.mrf.mxu0
      %v1210 = vadd.f32 0.0, %v1209
      %1211 = vmatmul.bf16.gmra.mxu0 %v776
      %v1212 = vpop.f32.mrf.mxu0
      %v1213 = vadd.f32 0.0, %v1212
      %v1214 = vpop.f32.mrf.mxu0
      %v1215 = vadd.f32 0.0, %v1214
      %1216 = vmatmul.bf16.gmra.mxu0 %v779
      %v1217 = vpop.f32.mrf.mxu0
      %v1218 = vadd.f32 0.0, %v1217
      %v1219 = vpop.f32.mrf.mxu0
      %v1220 = vadd.f32 0.0, %v1219
      %1221 = vdwg.mxu0
      %v1222 = vunpack.c.l.b16 %v499
      %v1223 = vunpack.c.l.b16 %v513
      %v1224 = vunpack.c.l.b16 %v527
      %v1225 = vunpack.c.l.b16 %v541
      %v1226 = vunpack.c.l.b16 %v555
      %v1227 = vunpack.c.l.b16 %v569
      %v1228 = vunpack.c.l.b16 %v583
      %v1229 = vunpack.c.l.b16 %v597
      %v1230 = vpack.c.b16 %v1223, %v1222
      %v1231 = vpack.c.b16 %v1225, %v1224
      %v1232 = vpack.c.b16 %v1227, %v1226
      %v1233 = vpack.c.b16 %v1229, %v1228
      %v1240 = vunpack.c.l.b16 %v1162
      %v1241 = vunpack.c.l.b16 %v1163
      %v1242 = vunpack.c.l.b16 %v1164
      %v1243 = vunpack.c.l.b16 %v1165
      %v1244 = vunpack.c.l.b16 %v1166
      %v1245 = vunpack.c.l.b16 %v1167
      %v1246 = vpack.c.b16 %v1241, %v1240
      %v1247 = vpack.c.b16 %v1243, %v1242
      %v1248 = vpack.c.b16 %v1245, %v1244
      %v1253 = vsel %vm768, %v1230, 0
      %v1256 = vsel %vm768, %v1231, 0
      %v1259 = vsel %vm768, %v1232, 0
      %v1262 = vsel %vm768, %v1233, 0
      %1264 = vmatpush.bf16.msra.mxu0 0
      %1265 = vmatpush.bf16.msra.mxu0 0
      %1266 = vmatpush.bf16.msra.mxu0 0
      %1267 = vmatpush.bf16.msra.mxu0 0
      %1268 = vmatpush.bf16.msra.mxu0 0
      %1269 = vmatpush.bf16.msra.mxu0 %v1248
      %1270 = vmatpush.bf16.msra.mxu0 %v1247
      %1271 = vmatpush.bf16.msra.mxu0 %v1246
      %1272 = vmatmul.bf16.gmra.mxu0 %v1253
      %v1273 = vpop.f32.mrf.mxu0
      %v1274 = vadd.f32 %v1203, %v1273
      %v1275 = vpop.f32.mrf.mxu0
      %v1276 = vadd.f32 %v1205, %v1275
      %1277 = vmatmul.bf16.gmra.mxu0 %v1256
      %v1278 = vpop.f32.mrf.mxu0
      %v1279 = vadd.f32 %v1208, %v1278
      %v1280 = vpop.f32.mrf.mxu0
      %v1281 = vadd.f32 %v1210, %v1280
      %1282 = vmatmul.bf16.gmra.mxu0 %v1259
      %v1283 = vpop.f32.mrf.mxu0
      %v1284 = vadd.f32 %v1213, %v1283
      %v1285 = vpop.f32.mrf.mxu0
      %v1286 = vadd.f32 %v1215, %v1285
      %1287 = vmatmul.bf16.gmra.mxu0 %v1262
      %v1288 = vpop.f32.mrf.mxu0
      %v1289 = vadd.f32 %v1218, %v1288
      %v1290 = vpop.f32.mrf.mxu0
      %v1291 = vadd.f32 %v1220, %v1290
      %1292 = vdwg.mxu0
      %v1293 = vmul.f32 %v1274, %v811
      %v1294 = vmul.f32 %v1276, %v811
      %v1295 = vmul.f32 %v1279, %v811
      %v1296 = vmul.f32 %v1281, %v811
      %v1297 = vmul.f32 %v1284, %v811
      %v1298 = vmul.f32 %v1286, %v811
      %v1299 = vmul.f32 %v1289, %v811
      %v1300 = vmul.f32 %v1291, %v811
      %v1301 = vadd.f32 %v1293, %v822
      %v1302 = vadd.f32 %v1294, %v822
      %v1303 = vadd.f32 %v1295, %v822
      %v1304 = vadd.f32 %v1296, %v822
      %v1305 = vadd.f32 %v1297, %v822
      %v1306 = vadd.f32 %v1298, %v822
      %v1307 = vadd.f32 %v1299, %v822
      %v1308 = vadd.f32 %v1300, %v822
      %v1309 = vmax.f32 %v1301, 0.0
      %v1310 = vmax.f32 %v1302, 0.0
      %v1311 = vmax.f32 %v1303, 0.0
      %v1312 = vmax.f32 %v1304, 0.0
      %v1313 = vmax.f32 %v1305, 0.0
      %v1314 = vmax.f32 %v1306, 0.0
      %v1315 = vmax.f32 %v1307, 0.0
      %v1316 = vmax.f32 %v1308, 0.0
      %v1317 = vpack.c.bf16 %v1309, %v1309
      %v1318 = vpack.c.bf16 %v1310, %v1310
      %v1319 = vpack.c.bf16 %v1311, %v1311
      %v1320 = vpack.c.bf16 %v1312, %v1312
      %v1321 = vpack.c.bf16 %v1313, %v1313
      %v1322 = vpack.c.bf16 %v1314, %v1314
      %v1323 = vpack.c.bf16 %v1315, %v1315
      %v1324 = vpack.c.bf16 %v1316, %v1316
      %v1326 = vshrl.u32 %v1317, 16
      %v1328 = vrot.slane %v1326, 7
      %v1329 = vshll.u32 %v1317, 16
      %v1331 = vor.u32 %v1328, %v1329
      %v1332 = vrot.slane %v1328, 4
      %v1334 = vshrl.u32 %v1318, 16
      %v1336 = vrot.slane %v1334, 7
      %v1337 = vshll.u32 %v1318, 16
      %v1339 = vor.u32 %v1336, %v1337
      %v1340 = vrot.slane %v1336, 4
      %v1342 = vshrl.u32 %v1319, 16
      %v1344 = vrot.slane %v1342, 7
      %v1345 = vshll.u32 %v1319, 16
      %v1347 = vor.u32 %v1344, %v1345
      %v1348 = vrot.slane %v1344, 4
      %v1350 = vshrl.u32 %v1320, 16
      %v1352 = vrot.slane %v1350, 7
      %v1353 = vshll.u32 %v1320, 16
      %v1355 = vor.u32 %v1352, %v1353
      %v1356 = vrot.slane %v1352, 4
      %v1358 = vshrl.u32 %v1321, 16
      %v1360 = vrot.slane %v1358, 7
      %v1361 = vshll.u32 %v1321, 16
      %v1363 = vor.u32 %v1360, %v1361
      %v1364 = vrot.slane %v1360, 4
      %v1366 = vshrl.u32 %v1322, 16
      %v1368 = vrot.slane %v1366, 7
      %v1369 = vshll.u32 %v1322, 16
      %v1371 = vor.u32 %v1368, %v1369
      %v1372 = vrot.slane %v1368, 4
      %v1374 = vshrl.u32 %v1323, 16
      %v1376 = vrot.slane %v1374, 7
      %v1377 = vshll.u32 %v1323, 16
      %v1379 = vor.u32 %v1376, %v1377
      %v1380 = vrot.slane %v1376, 4
      %v1382 = vshrl.u32 %v1324, 16
      %v1384 = vrot.slane %v1382, 7
      %v1385 = vshll.u32 %v1324, 16
      %v1387 = vor.u32 %v1384, %v1385
      %v1388 = vrot.slane %v1384, 4
      %v1405 = vld [vmem:[%s406] sm:$0xf]
      %v1406 = vsel %vm931, %v1331, %v1405
      %1407 = vst [vmem:[%s406] sm:$0xf] %v1406
      %v1408 = vld [vmem:[%s406 + $0x4] sm:$0x1]
      %v1409 = vsel %vm338, %v1332, %v1408
      %1410 = vst [vmem:[%s406 + $0x4] sm:$0x1] %v1409
      %v1411 = vld [vmem:[%s406 + $0x8] sm:$0xf]
      %v1412 = vsel %vm931, %v1339, %v1411
      %1413 = vst [vmem:[%s406 + $0x8] sm:$0xf] %v1412
      %v1414 = vld [vmem:[%s406 + $0xc] sm:$0x1]
      %v1415 = vsel %vm338, %v1340, %v1414
      %1416 = vst [vmem:[%s406 + $0xc] sm:$0x1] %v1415
      %v1417 = vld [vmem:[%s406 + $0x10] sm:$0xf]
      %v1418 = vsel %vm931, %v1347, %v1417
      %1419 = vst [vmem:[%s406 + $0x10] sm:$0xf] %v1418
      %v1420 = vld [vmem:[%s406 + $0x14] sm:$0x1]
      %v1421 = vsel %vm338, %v1348, %v1420
      %1422 = vst [vmem:[%s406 + $0x14] sm:$0x1] %v1421
      %v1423 = vld [vmem:[%s406 + $0x18] sm:$0xf]
      %v1424 = vsel %vm931, %v1355, %v1423
      %1425 = vst [vmem:[%s406 + $0x18] sm:$0xf] %v1424
      %v1426 = vld [vmem:[%s406 + $0x1c] sm:$0x1]
      %v1427 = vsel %vm338, %v1356, %v1426
      %1428 = vst [vmem:[%s406 + $0x1c] sm:$0x1] %v1427
      %v1429 = vld [vmem:[%s406 + $0x20] sm:$0xf]
      %v1430 = vsel %vm931, %v1363, %v1429
      %1431 = vst [vmem:[%s406 + $0x20] sm:$0xf] %v1430
      %v1432 = vld [vmem:[%s406 + $0x24] sm:$0x1]
      %v1433 = vsel %vm338, %v1364, %v1432
      %1434 = vst [vmem:[%s406 + $0x24] sm:$0x1] %v1433
      %v1435 = vld [vmem:[%s406 + $0x28] sm:$0xf]
      %v1436 = vsel %vm931, %v1371, %v1435
      %1437 = vst [vmem:[%s406 + $0x28] sm:$0xf] %v1436
      %v1438 = vld [vmem:[%s406 + $0x2c] sm:$0x1]
      %v1439 = vsel %vm338, %v1372, %v1438
      %1440 = vst [vmem:[%s406 + $0x2c] sm:$0x1] %v1439
      %v1441 = vld [vmem:[%s406 + $0x30] sm:$0xf]
      %v1442 = vsel %vm931, %v1379, %v1441
      %1443 = vst [vmem:[%s406 + $0x30] sm:$0xf] %v1442
      %v1444 = vld [vmem:[%s406 + $0x34] sm:$0x1]
      %v1445 = vsel %vm338, %v1380, %v1444
      %1446 = vst [vmem:[%s406 + $0x34] sm:$0x1] %v1445
      %v1447 = vld [vmem:[%s406 + $0x38] sm:$0xf]
      %v1448 = vsel %vm931, %v1387, %v1447
      %1449 = vst [vmem:[%s406 + $0x38] sm:$0xf] %v1448
      %v1450 = vld [vmem:[%s406 + $0x3c] sm:$0x1]
      %v1451 = vsel %vm338, %v1388, %v1450
      %1452 = vst [vmem:[%s406 + $0x3c] sm:$0x1] %v1451
      %s1453 = scalar_lea.vmem %s1, 120
      %v1454 = vld [vmem:[%s1453] sm:$0xf]
      %v1455 = vld [vmem:[%s1453 + $0x4] sm:$0xf]
      %v1456 = vld [vmem:[%s1453 + $0x8] sm:$0xf]
      %v1457 = vld [vmem:[%s1453 + $0xc] sm:$0xf]
      %v1458 = vld [vmem:[%s1453 + $0x10] sm:$0xf]
      %v1459 = vld [vmem:[%s1453 + $0x14] sm:$0xf]
      %s1460 = scalar_lea.vmem %s1, 144
      %v1461 = vld [vmem:[%s1460] sm:$0xf]
      %v1462 = vld [vmem:[%s1460 + $0x4] sm:$0xf]
      %v1463 = vld [vmem:[%s1460 + $0x8] sm:$0xf]
      %v1464 = vld [vmem:[%s1460 + $0xc] sm:$0xf]
      %v1465 = vld [vmem:[%s1460 + $0x10] sm:$0xf]
      %v1466 = vld [vmem:[%s1460 + $0x14] sm:$0xf]
      %v1473 = vunpack.c.l.b16 %v1461
      %v1474 = vunpack.c.l.b16 %v1462
      %v1475 = vunpack.c.l.b16 %v1463
      %v1476 = vunpack.c.l.b16 %v1464
      %v1477 = vunpack.c.l.b16 %v1465
      %v1478 = vunpack.c.l.b16 %v1466
      %v1479 = vpack.c.b16 %v1474, %v1473
      %v1480 = vpack.c.b16 %v1476, %v1475
      %v1481 = vpack.c.b16 %v1478, %v1477
      %1485 = vmatpush.bf16.msra.mxu0 0
      %1486 = vmatpush.bf16.msra.mxu0 0
      %1487 = vmatpush.bf16.msra.mxu0 0
      %1488 = vmatpush.bf16.msra.mxu0 0
      %1489 = vmatpush.bf16.msra.mxu0 0
      %1490 = vmatpush.bf16.msra.mxu0 %v1481
      %1491 = vmatpush.bf16.msra.mxu0 %v1480
      %1492 = vmatpush.bf16.msra.mxu0 %v1479
      %1493 = vmatmul.bf16.gmra.mxu0 %v1253
      %v1494 = vpop.f32.mrf.mxu0
      %v1495 = vadd.f32 0.0, %v1494
      %v1496 = vpop.f32.mrf.mxu0
      %v1497 = vadd.f32 0.0, %v1496
      %1498 = vmatmul.bf16.gmra.mxu0 %v1256
      %v1499 = vpop.f32.mrf.mxu0
      %v1500 = vadd.f32 0.0, %v1499
      %v1501 = vpop.f32.mrf.mxu0
      %v1502 = vadd.f32 0.0, %v1501
      %1503 = vmatmul.bf16.gmra.mxu0 %v1259
      %v1504 = vpop.f32.mrf.mxu0
      %v1505 = vadd.f32 0.0, %v1504
      %v1506 = vpop.f32.mrf.mxu0
      %v1507 = vadd.f32 0.0, %v1506
      %1508 = vmatmul.bf16.gmra.mxu0 %v1262
      %v1509 = vpop.f32.mrf.mxu0
      %v1510 = vadd.f32 0.0, %v1509
      %v1511 = vpop.f32.mrf.mxu0
      %v1512 = vadd.f32 0.0, %v1511
      %1513 = vdwg.mxu0
      %v1522 = vunpack.c.l.b16 %v467
      %v1523 = vunpack.c.l.b16 %v468
      %v1524 = vunpack.c.l.b16 %v469
      %v1525 = vunpack.c.l.b16 %v470
      %v1526 = vunpack.c.l.b16 %v471
      %v1527 = vunpack.c.l.b16 %v472
      %v1528 = vunpack.c.l.b16 %v473
      %v1529 = vunpack.c.l.b16 %v474
      %v1530 = vpack.c.b16 %v1523, %v1522
      %v1531 = vpack.c.b16 %v1525, %v1524
      %v1532 = vpack.c.b16 %v1527, %v1526
      %v1533 = vpack.c.b16 %v1529, %v1528
      %v1540 = vunpack.c.l.b16 %v1454
      %v1541 = vunpack.c.l.b16 %v1455
      %v1542 = vunpack.c.l.b16 %v1456
      %v1543 = vunpack.c.l.b16 %v1457
      %v1544 = vunpack.c.l.b16 %v1458
      %v1545 = vunpack.c.l.b16 %v1459
      %v1546 = vpack.c.b16 %v1541, %v1540
      %v1547 = vpack.c.b16 %v1543, %v1542
      %v1548 = vpack.c.b16 %v1545, %v1544
      %v1553 = vsel %vm768, %v1530, 0
      %v1556 = vsel %vm768, %v1531, 0
      %v1559 = vsel %vm768, %v1532, 0
      %v1562 = vsel %vm768, %v1533, 0
      %1564 = vmatpush.bf16.msra.mxu0 0
      %1565 = vmatpush.bf16.msra.mxu0 0
      %1566 = vmatpush.bf16.msra.mxu0 0
      %1567 = vmatpush.bf16.msra.mxu0 0
      %1568 = vmatpush.bf16.msra.mxu0 0
      %1569 = vmatpush.bf16.msra.mxu0 %v1548
      %1570 = vmatpush.bf16.msra.mxu0 %v1547
      %1571 = vmatpush.bf16.msra.mxu0 %v1546
      %1572 = vmatmul.bf16.gmra.mxu0 %v1553
      %v1573 = vpop.f32.mrf.mxu0
      %v1574 = vadd.f32 %v1495, %v1573
      %v1575 = vpop.f32.mrf.mxu0
      %v1576 = vadd.f32 %v1497, %v1575
      %1577 = vmatmul.bf16.gmra.mxu0 %v1556
      %v1578 = vpop.f32.mrf.mxu0
      %v1579 = vadd.f32 %v1500, %v1578
      %v1580 = vpop.f32.mrf.mxu0
      %v1581 = vadd.f32 %v1502, %v1580
      %1582 = vmatmul.bf16.gmra.mxu0 %v1559
      %v1583 = vpop.f32.mrf.mxu0
      %v1584 = vadd.f32 %v1505, %v1583
      %v1585 = vpop.f32.mrf.mxu0
      %v1586 = vadd.f32 %v1507, %v1585
      %1587 = vmatmul.bf16.gmra.mxu0 %v1562
      %v1588 = vpop.f32.mrf.mxu0
      %v1589 = vadd.f32 %v1510, %v1588
      %v1590 = vpop.f32.mrf.mxu0
      %v1591 = vadd.f32 %v1512, %v1590
      %1592 = vdwg.mxu0
      %s1593 = scalar_lea.vmem %s1, 168
      %v1594 = vld [vmem:[%s1593] sm:$0xf]
      %v1595 = vld [vmem:[%s1593 + $0x4] sm:$0xf]
      %v1596 = vld [vmem:[%s1593 + $0x8] sm:$0xf]
      %v1597 = vld [vmem:[%s1593 + $0xc] sm:$0xf]
      %v1598 = vld [vmem:[%s1593 + $0x10] sm:$0xf]
      %v1599 = vld [vmem:[%s1593 + $0x14] sm:$0xf]
      %v1606 = vunpack.c.l.b16 %v1594
      %v1607 = vunpack.c.l.b16 %v1595
      %v1608 = vunpack.c.l.b16 %v1596
      %v1609 = vunpack.c.l.b16 %v1597
      %v1610 = vunpack.c.l.b16 %v1598
      %v1611 = vunpack.c.l.b16 %v1599
      %v1612 = vpack.c.b16 %v1607, %v1606
      %v1613 = vpack.c.b16 %v1609, %v1608
      %v1614 = vpack.c.b16 %v1611, %v1610
      %1618 = vmatpush.bf16.msra.mxu0 0
      %1619 = vmatpush.bf16.msra.mxu0 0
      %1620 = vmatpush.bf16.msra.mxu0 0
      %1621 = vmatpush.bf16.msra.mxu0 0
      %1622 = vmatpush.bf16.msra.mxu0 0
      %1623 = vmatpush.bf16.msra.mxu0 %v1614
      %1624 = vmatpush.bf16.msra.mxu0 %v1613
      %1625 = vmatpush.bf16.msra.mxu0 %v1612
      %1626 = vmatmul.bf16.gmra.mxu0 %v1080
      %v1627 = vpop.f32.mrf.mxu0
      %v1628 = vadd.f32 0.0, %v1627
      %v1629 = vpop.f32.mrf.mxu0
      %v1630 = vadd.f32 0.0, %v1629
      %1631 = vmatmul.bf16.gmra.mxu0 %v1083
      %v1632 = vpop.f32.mrf.mxu0
      %v1633 = vadd.f32 0.0, %v1632
      %v1634 = vpop.f32.mrf.mxu0
      %v1635 = vadd.f32 0.0, %v1634
      %1636 = vmatmul.bf16.gmra.mxu0 %v1086
      %v1637 = vpop.f32.mrf.mxu0
      %v1638 = vadd.f32 0.0, %v1637
      %v1639 = vpop.f32.mrf.mxu0
      %v1640 = vadd.f32 0.0, %v1639
      %1641 = vmatmul.bf16.gmra.mxu0 %v1089
      %v1642 = vpop.f32.mrf.mxu0
      %v1643 = vadd.f32 0.0, %v1642
      %v1644 = vpop.f32.mrf.mxu0
      %v1645 = vadd.f32 0.0, %v1644
      %1646 = vdwg.mxu0
      %v1647 = vadd.f32 %v1574, %v1628
      %v1648 = vadd.f32 %v1576, %v1630
      %v1649 = vadd.f32 %v1579, %v1633
      %v1650 = vadd.f32 %v1581, %v1635
      %v1651 = vadd.f32 %v1584, %v1638
      %v1652 = vadd.f32 %v1586, %v1640
      %v1653 = vadd.f32 %v1589, %v1643
      %v1654 = vadd.f32 %v1591, %v1645
      %s1655 = scalar_lea.vmem %s1, 192
      %v1656 = vld [vmem:[%s1655] sm:$0xf]
      %v1657 = vld [vmem:[%s1655 + $0x4] sm:$0xf]
      %v1658 = vld [vmem:[%s1655 + $0x8] sm:$0xf]
      %v1659 = vld [vmem:[%s1655 + $0xc] sm:$0xf]
      %v1660 = vld [vmem:[%s1655 + $0x10] sm:$0xf]
      %v1661 = vld [vmem:[%s1655 + $0x14] sm:$0xf]
      %v1668 = vunpack.c.l.b16 %v1656
      %v1669 = vunpack.c.l.b16 %v1657
      %v1670 = vunpack.c.l.b16 %v1658
      %v1671 = vunpack.c.l.b16 %v1659
      %v1672 = vunpack.c.l.b16 %v1660
      %v1673 = vunpack.c.l.b16 %v1661
      %v1674 = vpack.c.b16 %v1669, %v1668
      %v1675 = vpack.c.b16 %v1671, %v1670
      %v1676 = vpack.c.b16 %v1673, %v1672
      %1680 = vmatpush.bf16.msra.mxu0 0
      %1681 = vmatpush.bf16.msra.mxu0 0
      %1682 = vmatpush.bf16.msra.mxu0 0
      %1683 = vmatpush.bf16.msra.mxu0 0
      %1684 = vmatpush.bf16.msra.mxu0 0
      %1685 = vmatpush.bf16.msra.mxu0 %v1676
      %1686 = vmatpush.bf16.msra.mxu0 %v1675
      %1687 = vmatpush.bf16.msra.mxu0 %v1674
      %1688 = vmatmul.bf16.gmra.mxu0 %v770
      %v1689 = vpop.f32.mrf.mxu0
      %v1690 = vadd.f32 0.0, %v1689
      %v1691 = vpop.f32.mrf.mxu0
      %v1692 = vadd.f32 0.0, %v1691
      %1693 = vmatmul.bf16.gmra.mxu0 %v773
      %v1694 = vpop.f32.mrf.mxu0
      %v1695 = vadd.f32 0.0, %v1694
      %v1696 = vpop.f32.mrf.mxu0
      %v1697 = vadd.f32 0.0, %v1696
      %1698 = vmatmul.bf16.gmra.mxu0 %v776
      %v1699 = vpop.f32.mrf.mxu0
      %v1700 = vadd.f32 0.0, %v1699
      %v1701 = vpop.f32.mrf.mxu0
      %v1702 = vadd.f32 0.0, %v1701
      %1703 = vmatmul.bf16.gmra.mxu0 %v779
      %v1704 = vpop.f32.mrf.mxu0
      %v1705 = vadd.f32 0.0, %v1704
      %v1706 = vpop.f32.mrf.mxu0
      %v1707 = vadd.f32 0.0, %v1706
      %1708 = vdwg.mxu0
      %v1709 = vadd.f32 %v1647, %v1690
      %v1710 = vadd.f32 %v1648, %v1692
      %v1711 = vadd.f32 %v1649, %v1695
      %v1712 = vadd.f32 %v1650, %v1697
      %v1713 = vadd.f32 %v1651, %v1700
      %v1714 = vadd.f32 %v1652, %v1702
      %v1715 = vadd.f32 %v1653, %v1705
      %v1716 = vadd.f32 %v1654, %v1707
      %v1717 = vmul.f32 %v1709, %v811
      %v1718 = vmul.f32 %v1710, %v811
      %v1719 = vmul.f32 %v1711, %v811
      %v1720 = vmul.f32 %v1712, %v811
      %v1721 = vmul.f32 %v1713, %v811
      %v1722 = vmul.f32 %v1714, %v811
      %v1723 = vmul.f32 %v1715, %v811
      %v1724 = vmul.f32 %v1716, %v811
      %v1725 = vadd.f32 %v1717, %v822
      %v1726 = vadd.f32 %v1718, %v822
      %v1727 = vadd.f32 %v1719, %v822
      %v1728 = vadd.f32 %v1720, %v822
      %v1729 = vadd.f32 %v1721, %v822
      %v1730 = vadd.f32 %v1722, %v822
      %v1731 = vadd.f32 %v1723, %v822
      %v1732 = vadd.f32 %v1724, %v822
      %v1733 = vmax.f32 %v1725, 0.0
      %v1734 = vmax.f32 %v1726, 0.0
      %v1735 = vmax.f32 %v1727, 0.0
      %v1736 = vmax.f32 %v1728, 0.0
      %v1737 = vmax.f32 %v1729, 0.0
      %v1738 = vmax.f32 %v1730, 0.0
      %v1739 = vmax.f32 %v1731, 0.0
      %v1740 = vmax.f32 %v1732, 0.0
      %v1741 = vpack.c.bf16 %v1733, %v1733
      %v1742 = vpack.c.bf16 %v1734, %v1734
      %v1743 = vpack.c.bf16 %v1735, %v1735
      %v1744 = vpack.c.bf16 %v1736, %v1736
      %v1745 = vpack.c.bf16 %v1737, %v1737
      %v1746 = vpack.c.bf16 %v1738, %v1738
      %v1747 = vpack.c.bf16 %v1739, %v1739
      %v1748 = vpack.c.bf16 %v1740, %v1740
      %1749 = vst.msk [vmem:[%s439] sm:$0xf] %vm334, %v1741
      %1750 = vst.msk [vmem:[%s439 + $0x8] sm:$0xf] %vm334, %v1742
      %1751 = vst.msk [vmem:[%s439 + $0x10] sm:$0xf] %vm334, %v1743
      %1752 = vst.msk [vmem:[%s439 + $0x18] sm:$0xf] %vm334, %v1744
      %1753 = vst.msk [vmem:[%s439 + $0x20] sm:$0xf] %vm334, %v1745
      %1754 = vst.msk [vmem:[%s439 + $0x28] sm:$0xf] %vm334, %v1746
      %1755 = vst.msk [vmem:[%s439 + $0x30] sm:$0xf] %vm334, %v1747
      %1756 = vst.msk [vmem:[%s439 + $0x38] sm:$0xf] %vm334, %v1748
      %v1757 = vld [vmem:[#allocation2] sm:$0xf]
      %v1758 = vld [vmem:[#allocation2 + $0x8] sm:$0xf]
      %v1759 = vld [vmem:[#allocation2 + $0x10] sm:$0xf]
      %v1760 = vld [vmem:[#allocation2 + $0x18] sm:$0xf]
      %v1761 = vld [vmem:[#allocation2 + $0x20] sm:$0xf]
      %v1762 = vld [vmem:[#allocation2 + $0x28] sm:$0xf]
      %v1763 = vld [vmem:[#allocation2 + $0x30] sm:$0xf]
      %v1764 = vld [vmem:[#allocation2 + $0x38] sm:$0xf]
      %v1765 = vld [vmem:[%s2] sm:$0x3]
      %v1766 = vld [vmem:[%s369] sm:$0xf]
      %v1767 = vld [vmem:[%s369 + $0x8] sm:$0xf]
      %v1768 = vld [vmem:[%s369 + $0x10] sm:$0xf]
      %v1769 = vld [vmem:[%s369 + $0x18] sm:$0xf]
      %v1770 = vld [vmem:[%s369 + $0x20] sm:$0xf]
      %v1771 = vld [vmem:[%s369 + $0x28] sm:$0xf]
      %v1772 = vld [vmem:[%s369 + $0x30] sm:$0xf]
      %v1773 = vld [vmem:[%s369 + $0x38] sm:$0xf]
      %s1774 = scalar_lea.vmem %s2, 2
      %v1775 = vld [vmem:[%s1774] sm:$0x3]
      %v1784 = vunpack.c.l.b16 %v1766
      %v1785 = vunpack.c.l.b16 %v1767
      %v1786 = vunpack.c.l.b16 %v1768
      %v1787 = vunpack.c.l.b16 %v1769
      %v1788 = vunpack.c.l.b16 %v1770
      %v1789 = vunpack.c.l.b16 %v1771
      %v1790 = vunpack.c.l.b16 %v1772
      %v1791 = vunpack.c.l.b16 %v1773
      %v1792 = vpack.c.b16 %v1785, %v1784
      %v1793 = vpack.c.b16 %v1787, %v1786
      %v1794 = vpack.c.b16 %v1789, %v1788
      %v1795 = vpack.c.b16 %v1791, %v1790
      %vm1796 = vcmask 31744
      %v1798 = vsel %vm1796, %v1792, 0
      %v1801 = vsel %vm1796, %v1793, 0
      %v1804 = vsel %vm1796, %v1794, 0
      %v1807 = vsel %vm1796, %v1795, 0
      %vm1809 = vcmask 1041408
      %v1811 = vsel %vm1809, %v1775, 0
      %1813 = vmatpush.bf16.msra.mxu0 0
      %1814 = vmatpush.bf16.msra.mxu0 0
      %1815 = vmatpush.bf16.msra.mxu0 0
      %1816 = vmatpush.bf16.msra.mxu0 0
      %1817 = vmatpush.bf16.msra.mxu0 0
      %1818 = vmatpush.bf16.msra.mxu0 0
      %1819 = vmatpush.bf16.msra.mxu0 0
      %1820 = vmatpush.bf16.msra.mxu0 %v1811
      %1821 = vmatmul.bf16.gmra.mxu0 %v1798
      %v1822 = vpop.f32.mrf.mxu0
      %v1823 = vadd.f32 0.0, %v1822
      %v1824 = vpop.f32.mrf.mxu0
      %v1825 = vadd.f32 0.0, %v1824
      %1826 = vmatmul.bf16.gmra.mxu0 %v1801
      %v1827 = vpop.f32.mrf.mxu0
      %v1828 = vadd.f32 0.0, %v1827
      %v1829 = vpop.f32.mrf.mxu0
      %v1830 = vadd.f32 0.0, %v1829
      %1831 = vmatmul.bf16.gmra.mxu0 %v1804
      %v1832 = vpop.f32.mrf.mxu0
      %v1833 = vadd.f32 0.0, %v1832
      %v1834 = vpop.f32.mrf.mxu0
      %v1835 = vadd.f32 0.0, %v1834
      %1836 = vmatmul.bf16.gmra.mxu0 %v1807
      %v1837 = vpop.f32.mrf.mxu0
      %v1838 = vadd.f32 0.0, %v1837
      %v1839 = vpop.f32.mrf.mxu0
      %v1840 = vadd.f32 0.0, %v1839
      %1841 = vdwg.mxu0
      %v1850 = vunpack.c.l.b16 %v1757
      %v1851 = vunpack.c.l.b16 %v1758
      %v1852 = vunpack.c.l.b16 %v1759
      %v1853 = vunpack.c.l.b16 %v1760
      %v1854 = vunpack.c.l.b16 %v1761
      %v1855 = vunpack.c.l.b16 %v1762
      %v1856 = vunpack.c.l.b16 %v1763
      %v1857 = vunpack.c.l.b16 %v1764
      %v1858 = vpack.c.b16 %v1851, %v1850
      %v1859 = vpack.c.b16 %v1853, %v1852
      %v1860 = vpack.c.b16 %v1855, %v1854
      %v1861 = vpack.c.b16 %v1857, %v1856
      %v1863 = vsel %vm1796, %v1858, 0
      %v1866 = vsel %vm1796, %v1859, 0
      %v1869 = vsel %vm1796, %v1860, 0
      %v1872 = vsel %vm1796, %v1861, 0
      %v1875 = vsel %vm1809, %v1765, 0
      %1877 = vmatpush.bf16.msra.mxu0 0
      %1878 = vmatpush.bf16.msra.mxu0 0
      %1879 = vmatpush.bf16.msra.mxu0 0
      %1880 = vmatpush.bf16.msra.mxu0 0
      %1881 = vmatpush.bf16.msra.mxu0 0
      %1882 = vmatpush.bf16.msra.mxu0 0
      %1883 = vmatpush.bf16.msra.mxu0 0
      %1884 = vmatpush.bf16.msra.mxu0 %v1875
      %1885 = vmatmul.bf16.gmra.mxu0 %v1863
      %v1886 = vpop.f32.mrf.mxu0
      %v1887 = vadd.f32 %v1823, %v1886
      %v1888 = vpop.f32.mrf.mxu0
      %v1889 = vadd.f32 %v1825, %v1888
      %1890 = vmatmul.bf16.gmra.mxu0 %v1866
      %v1891 = vpop.f32.mrf.mxu0
      %v1892 = vadd.f32 %v1828, %v1891
      %v1893 = vpop.f32.mrf.mxu0
      %v1894 = vadd.f32 %v1830, %v1893
      %1895 = vmatmul.bf16.gmra.mxu0 %v1869
      %v1896 = vpop.f32.mrf.mxu0
      %v1897 = vadd.f32 %v1833, %v1896
      %v1898 = vpop.f32.mrf.mxu0
      %v1899 = vadd.f32 %v1835, %v1898
      %1900 = vmatmul.bf16.gmra.mxu0 %v1872
      %v1901 = vpop.f32.mrf.mxu0
      %v1902 = vadd.f32 %v1838, %v1901
      %v1903 = vpop.f32.mrf.mxu0
      %v1904 = vadd.f32 %v1840, %v1903
      %1905 = vdwg.mxu0
      %v1906 = vld [vmem:[#allocation2] sm:$0xf]
      %v1907 = vld [vmem:[#allocation2 + $0x4] sm:$0x1]
      %v1908 = vld [vmem:[#allocation2 + $0x8] sm:$0xf]
      %v1909 = vld [vmem:[#allocation2 + $0xc] sm:$0x1]
      %v1910 = vld [vmem:[#allocation2 + $0x10] sm:$0xf]
      %v1911 = vld [vmem:[#allocation2 + $0x14] sm:$0x1]
      %v1912 = vld [vmem:[#allocation2 + $0x18] sm:$0xf]
      %v1913 = vld [vmem:[#allocation2 + $0x1c] sm:$0x1]
      %v1914 = vld [vmem:[#allocation2 + $0x20] sm:$0xf]
      %v1915 = vld [vmem:[#allocation2 + $0x24] sm:$0x1]
      %v1916 = vld [vmem:[#allocation2 + $0x28] sm:$0xf]
      %v1917 = vld [vmem:[#allocation2 + $0x2c] sm:$0x1]
      %v1918 = vld [vmem:[#allocation2 + $0x30] sm:$0xf]
      %v1919 = vld [vmem:[#allocation2 + $0x34] sm:$0x1]
      %v1920 = vld [vmem:[#allocation2 + $0x38] sm:$0xf]
      %v1921 = vld [vmem:[#allocation2 + $0x3c] sm:$0x1]
      %v1923 = vshrl.u32 %v1906, 16
      %v1925 = vrot.slane %v1923, 4
      %v1926 = vshll.u32 %v1906, 16
      %v1928 = vrot.slane %v1926, 5
      %v1929 = vor.u32 %v1925, %v1928
      %v1930 = vrot.slane %v1929, 4
      %v1932 = vshll.u32 %v1907, 16
      %v1934 = vrot.slane %v1932, 5
      %v1935 = vsel %vm485, %v1930, %v1934
      %v1937 = vshrl.u32 %v1908, 16
      %v1939 = vrot.slane %v1937, 4
      %v1940 = vshll.u32 %v1908, 16
      %v1942 = vrot.slane %v1940, 5
      %v1943 = vor.u32 %v1939, %v1942
      %v1944 = vrot.slane %v1943, 4
      %v1946 = vshll.u32 %v1909, 16
      %v1948 = vrot.slane %v1946, 5
      %v1949 = vsel %vm485, %v1944, %v1948
      %v1951 = vshrl.u32 %v1910, 16
      %v1953 = vrot.slane %v1951, 4
      %v1954 = vshll.u32 %v1910, 16
      %v1956 = vrot.slane %v1954, 5
      %v1957 = vor.u32 %v1953, %v1956
      %v1958 = vrot.slane %v1957, 4
      %v1960 = vshll.u32 %v1911, 16
      %v1962 = vrot.slane %v1960, 5
      %v1963 = vsel %vm485, %v1958, %v1962
      %v1965 = vshrl.u32 %v1912, 16
      %v1967 = vrot.slane %v1965, 4
      %v1968 = vshll.u32 %v1912, 16
      %v1970 = vrot.slane %v1968, 5
      %v1971 = vor.u32 %v1967, %v1970
      %v1972 = vrot.slane %v1971, 4
      %v1974 = vshll.u32 %v1913, 16
      %v1976 = vrot.slane %v1974, 5
      %v1977 = vsel %vm485, %v1972, %v1976
      %v1979 = vshrl.u32 %v1914, 16
      %v1981 = vrot.slane %v1979, 4
      %v1982 = vshll.u32 %v1914, 16
      %v1984 = vrot.slane %v1982, 5
      %v1985 = vor.u32 %v1981, %v1984
      %v1986 = vrot.slane %v1985, 4
      %v1988 = vshll.u32 %v1915, 16
      %v1990 = vrot.slane %v1988, 5
      %v1991 = vsel %vm485, %v1986, %v1990
      %v1993 = vshrl.u32 %v1916, 16
      %v1995 = vrot.slane %v1993, 4
      %v1996 = vshll.u32 %v1916, 16
      %v1998 = vrot.slane %v1996, 5
      %v1999 = vor.u32 %v1995, %v1998
      %v2000 = vrot.slane %v1999, 4
      %v2002 = vshll.u32 %v1917, 16
      %v2004 = vrot.slane %v2002, 5
      %v2005 = vsel %vm485, %v2000, %v2004
      %v2007 = vshrl.u32 %v1918, 16
      %v2009 = vrot.slane %v2007, 4
      %v2010 = vshll.u32 %v1918, 16
      %v2012 = vrot.slane %v2010, 5
      %v2013 = vor.u32 %v2009, %v2012
      %v2014 = vrot.slane %v2013, 4
      %v2016 = vshll.u32 %v1919, 16
      %v2018 = vrot.slane %v2016, 5
      %v2019 = vsel %vm485, %v2014, %v2018
      %v2021 = vshrl.u32 %v1920, 16
      %v2023 = vrot.slane %v2021, 4
      %v2024 = vshll.u32 %v1920, 16
      %v2026 = vrot.slane %v2024, 5
      %v2027 = vor.u32 %v2023, %v2026
      %v2028 = vrot.slane %v2027, 4
      %v2030 = vshll.u32 %v1921, 16
      %v2032 = vrot.slane %v2030, 5
      %v2033 = vsel %vm485, %v2028, %v2032
      %s2034 = scalar_lea.vmem %s2, 4
      %v2035 = vld [vmem:[%s2034] sm:$0x3]
      %v2036 = vunpack.c.l.b16 %v1935
      %v2037 = vunpack.c.l.b16 %v1949
      %v2038 = vunpack.c.l.b16 %v1963
      %v2039 = vunpack.c.l.b16 %v1977
      %v2040 = vunpack.c.l.b16 %v1991
      %v2041 = vunpack.c.l.b16 %v2005
      %v2042 = vunpack.c.l.b16 %v2019
      %v2043 = vunpack.c.l.b16 %v2033
      %v2044 = vpack.c.b16 %v2037, %v2036
      %v2045 = vpack.c.b16 %v2039, %v2038
      %v2046 = vpack.c.b16 %v2041, %v2040
      %v2047 = vpack.c.b16 %v2043, %v2042
      %v2049 = vsel %vm1796, %v2044, 0
      %v2052 = vsel %vm1796, %v2045, 0
      %v2055 = vsel %vm1796, %v2046, 0
      %v2058 = vsel %vm1796, %v2047, 0
      %v2061 = vsel %vm1809, %v2035, 0
      %2063 = vmatpush.bf16.msra.mxu0 0
      %2064 = vmatpush.bf16.msra.mxu0 0
      %2065 = vmatpush.bf16.msra.mxu0 0
      %2066 = vmatpush.bf16.msra.mxu0 0
      %2067 = vmatpush.bf16.msra.mxu0 0
      %2068 = vmatpush.bf16.msra.mxu0 0
      %2069 = vmatpush.bf16.msra.mxu0 0
      %2070 = vmatpush.bf16.msra.mxu0 %v2061
      %2071 = vmatmul.bf16.gmra.mxu0 %v2049
      %v2072 = vpop.f32.mrf.mxu0
      %v2073 = vadd.f32 0.0, %v2072
      %v2074 = vpop.f32.mrf.mxu0
      %v2075 = vadd.f32 0.0, %v2074
      %2076 = vmatmul.bf16.gmra.mxu0 %v2052
      %v2077 = vpop.f32.mrf.mxu0
      %v2078 = vadd.f32 0.0, %v2077
      %v2079 = vpop.f32.mrf.mxu0
      %v2080 = vadd.f32 0.0, %v2079
      %2081 = vmatmul.bf16.gmra.mxu0 %v2055
      %v2082 = vpop.f32.mrf.mxu0
      %v2083 = vadd.f32 0.0, %v2082
      %v2084 = vpop.f32.mrf.mxu0
      %v2085 = vadd.f32 0.0, %v2084
      %2086 = vmatmul.bf16.gmra.mxu0 %v2058
      %v2087 = vpop.f32.mrf.mxu0
      %v2088 = vadd.f32 0.0, %v2087
      %v2089 = vpop.f32.mrf.mxu0
      %v2090 = vadd.f32 0.0, %v2089
      %2091 = vdwg.mxu0
      %v2092 = vadd.f32 %v1887, %v2073
      %v2093 = vadd.f32 %v1889, %v2075
      %v2094 = vadd.f32 %v1892, %v2078
      %v2095 = vadd.f32 %v1894, %v2080
      %v2096 = vadd.f32 %v1897, %v2083
      %v2097 = vadd.f32 %v1899, %v2085
      %v2098 = vadd.f32 %v1902, %v2088
      %v2099 = vadd.f32 %v1904, %v2090
      %v2100 = vld [vmem:[%s406] sm:$0xf]
      %v2101 = vld [vmem:[%s406 + $0x8] sm:$0xf]
      %v2102 = vld [vmem:[%s406 + $0x10] sm:$0xf]
      %v2103 = vld [vmem:[%s406 + $0x18] sm:$0xf]
      %v2104 = vld [vmem:[%s406 + $0x20] sm:$0xf]
      %v2105 = vld [vmem:[%s406 + $0x28] sm:$0xf]
      %v2106 = vld [vmem:[%s406 + $0x30] sm:$0xf]
      %v2107 = vld [vmem:[%s406 + $0x38] sm:$0xf]
      %s2108 = scalar_lea.vmem %s2, 6
      %v2109 = vld [vmem:[%s2108] sm:$0x3]
      %v2118 = vunpack.c.l.b16 %v2100
      %v2119 = vunpack.c.l.b16 %v2101
      %v2120 = vunpack.c.l.b16 %v2102
      %v2121 = vunpack.c.l.b16 %v2103
      %v2122 = vunpack.c.l.b16 %v2104
      %v2123 = vunpack.c.l.b16 %v2105
      %v2124 = vunpack.c.l.b16 %v2106
      %v2125 = vunpack.c.l.b16 %v2107
      %v2126 = vpack.c.b16 %v2119, %v2118
      %v2127 = vpack.c.b16 %v2121, %v2120
      %v2128 = vpack.c.b16 %v2123, %v2122
      %v2129 = vpack.c.b16 %v2125, %v2124
      %v2131 = vsel %vm1796, %v2126, 0
      %v2134 = vsel %vm1796, %v2127, 0
      %v2137 = vsel %vm1796, %v2128, 0
      %v2140 = vsel %vm1796, %v2129, 0
      %v2143 = vsel %vm1809, %v2109, 0
      %2145 = vmatpush.bf16.msra.mxu0 0
      %2146 = vmatpush.bf16.msra.mxu0 0
      %2147 = vmatpush.bf16.msra.mxu0 0
      %2148 = vmatpush.bf16.msra.mxu0 0
      %2149 = vmatpush.bf16.msra.mxu0 0
      %2150 = vmatpush.bf16.msra.mxu0 0
      %2151 = vmatpush.bf16.msra.mxu0 0
      %2152 = vmatpush.bf16.msra.mxu0 %v2143
      %2153 = vmatmul.bf16.gmra.mxu0 %v2131
      %v2154 = vpop.f32.mrf.mxu0
      %v2155 = vadd.f32 0.0, %v2154
      %v2156 = vpop.f32.mrf.mxu0
      %v2157 = vadd.f32 0.0, %v2156
      %2158 = vmatmul.bf16.gmra.mxu0 %v2134
      %v2159 = vpop.f32.mrf.mxu0
      %v2160 = vadd.f32 0.0, %v2159
      %v2161 = vpop.f32.mrf.mxu0
      %v2162 = vadd.f32 0.0, %v2161
      %2163 = vmatmul.bf16.gmra.mxu0 %v2137
      %v2164 = vpop.f32.mrf.mxu0
      %v2165 = vadd.f32 0.0, %v2164
      %v2166 = vpop.f32.mrf.mxu0
      %v2167 = vadd.f32 0.0, %v2166
      %2168 = vmatmul.bf16.gmra.mxu0 %v2140
      %v2169 = vpop.f32.mrf.mxu0
      %v2170 = vadd.f32 0.0, %v2169
      %v2171 = vpop.f32.mrf.mxu0
      %v2172 = vadd.f32 0.0, %v2171
      %2173 = vdwg.mxu0
      %v2174 = vadd.f32 %v2092, %v2155
      %v2175 = vadd.f32 %v2093, %v2157
      %v2176 = vadd.f32 %v2094, %v2160
      %v2177 = vadd.f32 %v2095, %v2162
      %v2178 = vadd.f32 %v2096, %v2165
      %v2179 = vadd.f32 %v2097, %v2167
      %v2180 = vadd.f32 %v2098, %v2170
      %v2181 = vadd.f32 %v2099, %v2172
      %v2182 = vld [vmem:[%s439] sm:$0xf]
      %v2183 = vld [vmem:[%s439 + $0x8] sm:$0xf]
      %v2184 = vld [vmem:[%s439 + $0x10] sm:$0xf]
      %v2185 = vld [vmem:[%s439 + $0x18] sm:$0xf]
      %v2186 = vld [vmem:[%s439 + $0x20] sm:$0xf]
      %v2187 = vld [vmem:[%s439 + $0x28] sm:$0xf]
      %v2188 = vld [vmem:[%s439 + $0x30] sm:$0xf]
      %v2189 = vld [vmem:[%s439 + $0x38] sm:$0xf]
      %s2190 = scalar_lea.vmem %s2, 8
      %v2191 = vld [vmem:[%s2190] sm:$0x3]
      %v2200 = vunpack.c.l.b16 %v2182
      %v2201 = vunpack.c.l.b16 %v2183
      %v2202 = vunpack.c.l.b16 %v2184
      %v2203 = vunpack.c.l.b16 %v2185
      %v2204 = vunpack.c.l.b16 %v2186
      %v2205 = vunpack.c.l.b16 %v2187
      %v2206 = vunpack.c.l.b16 %v2188
      %v2207 = vunpack.c.l.b16 %v2189
      %v2208 = vpack.c.b16 %v2201, %v2200
      %v2209 = vpack.c.b16 %v2203, %v2202
      %v2210 = vpack.c.b16 %v2205, %v2204
      %v2211 = vpack.c.b16 %v2207, %v2206
      %v2213 = vsel %vm1796, %v2208, 0
      %v2216 = vsel %vm1796, %v2209, 0
      %v2219 = vsel %vm1796, %v2210, 0
      %v2222 = vsel %vm1796, %v2211, 0
      %v2225 = vsel %vm1809, %v2191, 0
      %2227 = vmatpush.bf16.msra.mxu0 0
      %2228 = vmatpush.bf16.msra.mxu0 0
      %2229 = vmatpush.bf16.msra.mxu0 0
      %2230 = vmatpush.bf16.msra.mxu0 0
      %2231 = vmatpush.bf16.msra.mxu0 0
      %2232 = vmatpush.bf16.msra.mxu0 0
      %2233 = vmatpush.bf16.msra.mxu0 0
      %2234 = vmatpush.bf16.msra.mxu0 %v2225
      %2235 = vmatmul.bf16.gmra.mxu0 %v2213
      %v2236 = vpop.f32.mrf.mxu0
      %v2237 = vadd.f32 0.0, %v2236
      %v2238 = vpop.f32.mrf.mxu0
      %v2239 = vadd.f32 0.0, %v2238
      %2240 = vmatmul.bf16.gmra.mxu0 %v2216
      %v2241 = vpop.f32.mrf.mxu0
      %v2242 = vadd.f32 0.0, %v2241
      %v2243 = vpop.f32.mrf.mxu0
      %v2244 = vadd.f32 0.0, %v2243
      %2245 = vmatmul.bf16.gmra.mxu0 %v2219
      %v2246 = vpop.f32.mrf.mxu0
      %v2247 = vadd.f32 0.0, %v2246
      %v2248 = vpop.f32.mrf.mxu0
      %v2249 = vadd.f32 0.0, %v2248
      %2250 = vmatmul.bf16.gmra.mxu0 %v2222
      %v2251 = vpop.f32.mrf.mxu0
      %v2252 = vadd.f32 0.0, %v2251
      %v2253 = vpop.f32.mrf.mxu0
      %v2254 = vadd.f32 0.0, %v2253
      %2255 = vdwg.mxu0
      %v2256 = vadd.f32 %v2174, %v2237
      %v2257 = vadd.f32 %v2175, %v2239
      %v2258 = vadd.f32 %v2176, %v2242
      %v2259 = vadd.f32 %v2177, %v2244
      %v2260 = vadd.f32 %v2178, %v2247
      %v2261 = vadd.f32 %v2179, %v2249
      %v2262 = vadd.f32 %v2180, %v2252
      %v2263 = vadd.f32 %v2181, %v2254
      %v2264 = vld [vmem:[%s406] sm:$0xf]
      %v2265 = vld [vmem:[%s406 + $0x4] sm:$0x1]
      %v2266 = vld [vmem:[%s406 + $0x8] sm:$0xf]
      %v2267 = vld [vmem:[%s406 + $0xc] sm:$0x1]
      %v2268 = vld [vmem:[%s406 + $0x10] sm:$0xf]
      %v2269 = vld [vmem:[%s406 + $0x14] sm:$0x1]
      %v2270 = vld [vmem:[%s406 + $0x18] sm:$0xf]
      %v2271 = vld [vmem:[%s406 + $0x1c] sm:$0x1]
      %v2272 = vld [vmem:[%s406 + $0x20] sm:$0xf]
      %v2273 = vld [vmem:[%s406 + $0x24] sm:$0x1]
      %v2274 = vld [vmem:[%s406 + $0x28] sm:$0xf]
      %v2275 = vld [vmem:[%s406 + $0x2c] sm:$0x1]
      %v2276 = vld [vmem:[%s406 + $0x30] sm:$0xf]
      %v2277 = vld [vmem:[%s406 + $0x34] sm:$0x1]
      %v2278 = vld [vmem:[%s406 + $0x38] sm:$0xf]
      %v2279 = vld [vmem:[%s406 + $0x3c] sm:$0x1]
      %v2281 = vshrl.u32 %v2264, 16
      %v2283 = vrot.slane %v2281, 4
      %v2284 = vshll.u32 %v2264, 16
      %v2286 = vrot.slane %v2284, 5
      %v2287 = vor.u32 %v2283, %v2286
      %v2288 = vrot.slane %v2287, 4
      %v2290 = vshll.u32 %v2265, 16
      %v2292 = vrot.slane %v2290, 5
      %v2293 = vsel %vm485, %v2288, %v2292
      %v2295 = vshrl.u32 %v2266, 16
      %v2297 = vrot.slane %v2295, 4
      %v2298 = vshll.u32 %v2266, 16
      %v2300 = vrot.slane %v2298, 5
      %v2301 = vor.u32 %v2297, %v2300
      %v2302 = vrot.slane %v2301, 4
      %v2304 = vshll.u32 %v2267, 16
      %v2306 = vrot.slane %v2304, 5
      %v2307 = vsel %vm485, %v2302, %v2306
      %v2309 = vshrl.u32 %v2268, 16
      %v2311 = vrot.slane %v2309, 4
      %v2312 = vshll.u32 %v2268, 16
      %v2314 = vrot.slane %v2312, 5
      %v2315 = vor.u32 %v2311, %v2314
      %v2316 = vrot.slane %v2315, 4
      %v2318 = vshll.u32 %v2269, 16
      %v2320 = vrot.slane %v2318, 5
      %v2321 = vsel %vm485, %v2316, %v2320
      %v2323 = vshrl.u32 %v2270, 16
      %v2325 = vrot.slane %v2323, 4
      %v2326 = vshll.u32 %v2270, 16
      %v2328 = vrot.slane %v2326, 5
      %v2329 = vor.u32 %v2325, %v2328
      %v2330 = vrot.slane %v2329, 4
      %v2332 = vshll.u32 %v2271, 16
      %v2334 = vrot.slane %v2332, 5
      %v2335 = vsel %vm485, %v2330, %v2334
      %v2337 = vshrl.u32 %v2272, 16
      %v2339 = vrot.slane %v2337, 4
      %v2340 = vshll.u32 %v2272, 16
      %v2342 = vrot.slane %v2340, 5
      %v2343 = vor.u32 %v2339, %v2342
      %v2344 = vrot.slane %v2343, 4
      %v2346 = vshll.u32 %v2273, 16
      %v2348 = vrot.slane %v2346, 5
      %v2349 = vsel %vm485, %v2344, %v2348
      %v2351 = vshrl.u32 %v2274, 16
      %v2353 = vrot.slane %v2351, 4
      %v2354 = vshll.u32 %v2274, 16
      %v2356 = vrot.slane %v2354, 5
      %v2357 = vor.u32 %v2353, %v2356
      %v2358 = vrot.slane %v2357, 4
      %v2360 = vshll.u32 %v2275, 16
      %v2362 = vrot.slane %v2360, 5
      %v2363 = vsel %vm485, %v2358, %v2362
      %v2365 = vshrl.u32 %v2276, 16
      %v2367 = vrot.slane %v2365, 4
      %v2368 = vshll.u32 %v2276, 16
      %v2370 = vrot.slane %v2368, 5
      %v2371 = vor.u32 %v2367, %v2370
      %v2372 = vrot.slane %v2371, 4
      %v2374 = vshll.u32 %v2277, 16
      %v2376 = vrot.slane %v2374, 5
      %v2377 = vsel %vm485, %v2372, %v2376
      %v2379 = vshrl.u32 %v2278, 16
      %v2381 = vrot.slane %v2379, 4
      %v2382 = vshll.u32 %v2278, 16
      %v2384 = vrot.slane %v2382, 5
      %v2385 = vor.u32 %v2381, %v2384
      %v2386 = vrot.slane %v2385, 4
      %v2388 = vshll.u32 %v2279, 16
      %v2390 = vrot.slane %v2388, 5
      %v2391 = vsel %vm485, %v2386, %v2390
      %s2392 = scalar_lea.vmem %s2, 10
      %v2393 = vld [vmem:[%s2392] sm:$0x3]
      %v2394 = vunpack.c.l.b16 %v2293
      %v2395 = vunpack.c.l.b16 %v2307
      %v2396 = vunpack.c.l.b16 %v2321
      %v2397 = vunpack.c.l.b16 %v2335
      %v2398 = vunpack.c.l.b16 %v2349
      %v2399 = vunpack.c.l.b16 %v2363
      %v2400 = vunpack.c.l.b16 %v2377
      %v2401 = vunpack.c.l.b16 %v2391
      %v2402 = vpack.c.b16 %v2395, %v2394
      %v2403 = vpack.c.b16 %v2397, %v2396
      %v2404 = vpack.c.b16 %v2399, %v2398
      %v2405 = vpack.c.b16 %v2401, %v2400
      %v2407 = vsel %vm1796, %v2402, 0
      %v2410 = vsel %vm1796, %v2403, 0
      %v2413 = vsel %vm1796, %v2404, 0
      %v2416 = vsel %vm1796, %v2405, 0
      %v2419 = vsel %vm1809, %v2393, 0
      %2421 = vmatpush.bf16.msra.mxu0 0
      %2422 = vmatpush.bf16.msra.mxu0 0
      %2423 = vmatpush.bf16.msra.mxu0 0
      %2424 = vmatpush.bf16.msra.mxu0 0
      %2425 = vmatpush.bf16.msra.mxu0 0
      %2426 = vmatpush.bf16.msra.mxu0 0
      %2427 = vmatpush.bf16.msra.mxu0 0
      %2428 = vmatpush.bf16.msra.mxu0 %v2419
      %2429 = vmatmul.bf16.gmra.mxu0 %v2407
      %v2430 = vpop.f32.mrf.mxu0
      %v2431 = vadd.f32 0.0, %v2430
      %v2432 = vpop.f32.mrf.mxu0
      %v2433 = vadd.f32 0.0, %v2432
      %2434 = vmatmul.bf16.gmra.mxu0 %v2410
      %v2435 = vpop.f32.mrf.mxu0
      %v2436 = vadd.f32 0.0, %v2435
      %v2437 = vpop.f32.mrf.mxu0
      %v2438 = vadd.f32 0.0, %v2437
      %2439 = vmatmul.bf16.gmra.mxu0 %v2413
      %v2440 = vpop.f32.mrf.mxu0
      %v2441 = vadd.f32 0.0, %v2440
      %v2442 = vpop.f32.mrf.mxu0
      %v2443 = vadd.f32 0.0, %v2442
      %2444 = vmatmul.bf16.gmra.mxu0 %v2416
      %v2445 = vpop.f32.mrf.mxu0
      %v2446 = vadd.f32 0.0, %v2445
      %v2447 = vpop.f32.mrf.mxu0
      %v2448 = vadd.f32 0.0, %v2447
      %2449 = vdwg.mxu0
      %v2450 = vadd.f32 %v2256, %v2431
      %v2451 = vadd.f32 %v2257, %v2433
      %v2452 = vadd.f32 %v2258, %v2436
      %v2453 = vadd.f32 %v2259, %v2438
      %v2454 = vadd.f32 %v2260, %v2441
      %v2455 = vadd.f32 %v2261, %v2443
      %v2456 = vadd.f32 %v2262, %v2446
      %v2457 = vadd.f32 %v2263, %v2448
      %v2458 = vld [vmem:[%s928] sm:$0xf]
      %v2459 = vld [vmem:[%s928 + $0x8] sm:$0xf]
      %v2460 = vld [vmem:[%s928 + $0x10] sm:$0xf]
      %v2461 = vld [vmem:[%s928 + $0x18] sm:$0xf]
      %v2462 = vld [vmem:[%s928 + $0x20] sm:$0xf]
      %v2463 = vld [vmem:[%s928 + $0x28] sm:$0xf]
      %v2464 = vld [vmem:[%s928 + $0x30] sm:$0xf]
      %v2465 = vld [vmem:[%s928 + $0x38] sm:$0xf]
      %s2466 = scalar_lea.vmem %s2, 12
      %v2467 = vld [vmem:[%s2466] sm:$0x3]
      %v2476 = vunpack.c.l.b16 %v2458
      %v2477 = vunpack.c.l.b16 %v2459
      %v2478 = vunpack.c.l.b16 %v2460
      %v2479 = vunpack.c.l.b16 %v2461
      %v2480 = vunpack.c.l.b16 %v2462
      %v2481 = vunpack.c.l.b16 %v2463
      %v2482 = vunpack.c.l.b16 %v2464
      %v2483 = vunpack.c.l.b16 %v2465
      %v2484 = vpack.c.b16 %v2477, %v2476
      %v2485 = vpack.c.b16 %v2479, %v2478
      %v2486 = vpack.c.b16 %v2481, %v2480
      %v2487 = vpack.c.b16 %v2483, %v2482
      %v2489 = vsel %vm1796, %v2484, 0
      %v2492 = vsel %vm1796, %v2485, 0
      %v2495 = vsel %vm1796, %v2486, 0
      %v2498 = vsel %vm1796, %v2487, 0
      %v2501 = vsel %vm1809, %v2467, 0
      %2503 = vmatpush.bf16.msra.mxu0 0
      %2504 = vmatpush.bf16.msra.mxu0 0
      %2505 = vmatpush.bf16.msra.mxu0 0
      %2506 = vmatpush.bf16.msra.mxu0 0
      %2507 = vmatpush.bf16.msra.mxu0 0
      %2508 = vmatpush.bf16.msra.mxu0 0
      %2509 = vmatpush.bf16.msra.mxu0 0
      %2510 = vmatpush.bf16.msra.mxu0 %v2501
      %2511 = vmatmul.bf16.gmra.mxu0 %v2489
      %v2512 = vpop.f32.mrf.mxu0
      %v2513 = vadd.f32 0.0, %v2512
      %v2514 = vpop.f32.mrf.mxu0
      %v2515 = vadd.f32 0.0, %v2514
      %2516 = vmatmul.bf16.gmra.mxu0 %v2492
      %v2517 = vpop.f32.mrf.mxu0
      %v2518 = vadd.f32 0.0, %v2517
      %v2519 = vpop.f32.mrf.mxu0
      %v2520 = vadd.f32 0.0, %v2519
      %2521 = vmatmul.bf16.gmra.mxu0 %v2495
      %v2522 = vpop.f32.mrf.mxu0
      %v2523 = vadd.f32 0.0, %v2522
      %v2524 = vpop.f32.mrf.mxu0
      %v2525 = vadd.f32 0.0, %v2524
      %2526 = vmatmul.bf16.gmra.mxu0 %v2498
      %v2527 = vpop.f32.mrf.mxu0
      %v2528 = vadd.f32 0.0, %v2527
      %v2529 = vpop.f32.mrf.mxu0
      %v2530 = vadd.f32 0.0, %v2529
      %2531 = vdwg.mxu0
      %v2532 = vadd.f32 %v2450, %v2513
      %v2533 = vadd.f32 %v2451, %v2515
      %v2534 = vadd.f32 %v2452, %v2518
      %v2535 = vadd.f32 %v2453, %v2520
      %v2536 = vadd.f32 %v2454, %v2523
      %v2537 = vadd.f32 %v2455, %v2525
      %v2538 = vadd.f32 %v2456, %v2528
      %v2539 = vadd.f32 %v2457, %v2530
      %v2540 = vld [vmem:[%s1152] sm:$0xf]
      %v2541 = vld [vmem:[%s1152 + $0x8] sm:$0xf]
      %v2542 = vld [vmem:[%s1152 + $0x10] sm:$0xf]
      %v2543 = vld [vmem:[%s1152 + $0x18] sm:$0xf]
      %v2544 = vld [vmem:[%s1152 + $0x20] sm:$0xf]
      %v2545 = vld [vmem:[%s1152 + $0x28] sm:$0xf]
      %v2546 = vld [vmem:[%s1152 + $0x30] sm:$0xf]
      %v2547 = vld [vmem:[%s1152 + $0x38] sm:$0xf]
      %s2548 = scalar_lea.vmem %s2, 14
      %v2549 = vld [vmem:[%s2548] sm:$0x3]
      %v2558 = vunpack.c.l.b16 %v2540
      %v2559 = vunpack.c.l.b16 %v2541
      %v2560 = vunpack.c.l.b16 %v2542
      %v2561 = vunpack.c.l.b16 %v2543
      %v2562 = vunpack.c.l.b16 %v2544
      %v2563 = vunpack.c.l.b16 %v2545
      %v2564 = vunpack.c.l.b16 %v2546
      %v2565 = vunpack.c.l.b16 %v2547
      %v2566 = vpack.c.b16 %v2559, %v2558
      %v2567 = vpack.c.b16 %v2561, %v2560
      %v2568 = vpack.c.b16 %v2563, %v2562
      %v2569 = vpack.c.b16 %v2565, %v2564
      %v2571 = vsel %vm1796, %v2566, 0
      %v2574 = vsel %vm1796, %v2567, 0
      %v2577 = vsel %vm1796, %v2568, 0
      %v2580 = vsel %vm1796, %v2569, 0
      %v2583 = vsel %vm1809, %v2549, 0
      %2585 = vmatpush.bf16.msra.mxu0 0
      %2586 = vmatpush.bf16.msra.mxu0 0
      %2587 = vmatpush.bf16.msra.mxu0 0
      %2588 = vmatpush.bf16.msra.mxu0 0
      %2589 = vmatpush.bf16.msra.mxu0 0
      %2590 = vmatpush.bf16.msra.mxu0 0
      %2591 = vmatpush.bf16.msra.mxu0 0
      %2592 = vmatpush.bf16.msra.mxu0 %v2583
      %2593 = vmatmul.bf16.gmra.mxu0 %v2571
      %v2594 = vpop.f32.mrf.mxu0
      %v2595 = vadd.f32 0.0, %v2594
      %v2596 = vpop.f32.mrf.mxu0
      %v2597 = vadd.f32 0.0, %v2596
      %2598 = vmatmul.bf16.gmra.mxu0 %v2574
      %v2599 = vpop.f32.mrf.mxu0
      %v2600 = vadd.f32 0.0, %v2599
      %v2601 = vpop.f32.mrf.mxu0
      %v2602 = vadd.f32 0.0, %v2601
      %2603 = vmatmul.bf16.gmra.mxu0 %v2577
      %v2604 = vpop.f32.mrf.mxu0
      %v2605 = vadd.f32 0.0, %v2604
      %v2606 = vpop.f32.mrf.mxu0
      %v2607 = vadd.f32 0.0, %v2606
      %2608 = vmatmul.bf16.gmra.mxu0 %v2580
      %v2609 = vpop.f32.mrf.mxu0
      %v2610 = vadd.f32 0.0, %v2609
      %v2611 = vpop.f32.mrf.mxu0
      %v2612 = vadd.f32 0.0, %v2611
      %2613 = vdwg.mxu0
      %v2614 = vadd.f32 %v2532, %v2595
      %v2615 = vadd.f32 %v2533, %v2597
      %v2616 = vadd.f32 %v2534, %v2600
      %v2617 = vadd.f32 %v2535, %v2602
      %v2618 = vadd.f32 %v2536, %v2605
      %v2619 = vadd.f32 %v2537, %v2607
      %v2620 = vadd.f32 %v2538, %v2610
      %v2621 = vadd.f32 %v2539, %v2612
      %v2622 = vld [vmem:[%s928] sm:$0xf]
      %v2623 = vld [vmem:[%s928 + $0x4] sm:$0x1]
      %v2624 = vld [vmem:[%s928 + $0x8] sm:$0xf]
      %v2625 = vld [vmem:[%s928 + $0xc] sm:$0x1]
      %v2626 = vld [vmem:[%s928 + $0x10] sm:$0xf]
      %v2627 = vld [vmem:[%s928 + $0x14] sm:$0x1]
      %v2628 = vld [vmem:[%s928 + $0x18] sm:$0xf]
      %v2629 = vld [vmem:[%s928 + $0x1c] sm:$0x1]
      %v2630 = vld [vmem:[%s928 + $0x20] sm:$0xf]
      %v2631 = vld [vmem:[%s928 + $0x24] sm:$0x1]
      %v2632 = vld [vmem:[%s928 + $0x28] sm:$0xf]
      %v2633 = vld [vmem:[%s928 + $0x2c] sm:$0x1]
      %v2634 = vld [vmem:[%s928 + $0x30] sm:$0xf]
      %v2635 = vld [vmem:[%s928 + $0x34] sm:$0x1]
      %v2636 = vld [vmem:[%s928 + $0x38] sm:$0xf]
      %v2637 = vld [vmem:[%s928 + $0x3c] sm:$0x1]
      %v2639 = vshrl.u32 %v2622, 16
      %v2641 = vrot.slane %v2639, 4
      %v2642 = vshll.u32 %v2622, 16
      %v2644 = vrot.slane %v2642, 5
      %v2645 = vor.u32 %v2641, %v2644
      %v2646 = vrot.slane %v2645, 4
      %v2648 = vshll.u32 %v2623, 16
      %v2650 = vrot.slane %v2648, 5
      %v2651 = vsel %vm485, %v2646, %v2650
      %v2653 = vshrl.u32 %v2624, 16
      %v2655 = vrot.slane %v2653, 4
      %v2656 = vshll.u32 %v2624, 16
      %v2658 = vrot.slane %v2656, 5
      %v2659 = vor.u32 %v2655, %v2658
      %v2660 = vrot.slane %v2659, 4
      %v2662 = vshll.u32 %v2625, 16
      %v2664 = vrot.slane %v2662, 5
      %v2665 = vsel %vm485, %v2660, %v2664
      %v2667 = vshrl.u32 %v2626, 16
      %v2669 = vrot.slane %v2667, 4
      %v2670 = vshll.u32 %v2626, 16
      %v2672 = vrot.slane %v2670, 5
      %v2673 = vor.u32 %v2669, %v2672
      %v2674 = vrot.slane %v2673, 4
      %v2676 = vshll.u32 %v2627, 16
      %v2678 = vrot.slane %v2676, 5
      %v2679 = vsel %vm485, %v2674, %v2678
      %v2681 = vshrl.u32 %v2628, 16
      %v2683 = vrot.slane %v2681, 4
      %v2684 = vshll.u32 %v2628, 16
      %v2686 = vrot.slane %v2684, 5
      %v2687 = vor.u32 %v2683, %v2686
      %v2688 = vrot.slane %v2687, 4
      %v2690 = vshll.u32 %v2629, 16
      %v2692 = vrot.slane %v2690, 5
      %v2693 = vsel %vm485, %v2688, %v2692
      %v2695 = vshrl.u32 %v2630, 16
      %v2697 = vrot.slane %v2695, 4
      %v2698 = vshll.u32 %v2630, 16
      %v2700 = vrot.slane %v2698, 5
      %v2701 = vor.u32 %v2697, %v2700
      %v2702 = vrot.slane %v2701, 4
      %v2704 = vshll.u32 %v2631, 16
      %v2706 = vrot.slane %v2704, 5
      %v2707 = vsel %vm485, %v2702, %v2706
      %v2709 = vshrl.u32 %v2632, 16
      %v2711 = vrot.slane %v2709, 4
      %v2712 = vshll.u32 %v2632, 16
      %v2714 = vrot.slane %v2712, 5
      %v2715 = vor.u32 %v2711, %v2714
      %v2716 = vrot.slane %v2715, 4
      %v2718 = vshll.u32 %v2633, 16
      %v2720 = vrot.slane %v2718, 5
      %v2721 = vsel %vm485, %v2716, %v2720
      %v2723 = vshrl.u32 %v2634, 16
      %v2725 = vrot.slane %v2723, 4
      %v2726 = vshll.u32 %v2634, 16
      %v2728 = vrot.slane %v2726, 5
      %v2729 = vor.u32 %v2725, %v2728
      %v2730 = vrot.slane %v2729, 4
      %v2732 = vshll.u32 %v2635, 16
      %v2734 = vrot.slane %v2732, 5
      %v2735 = vsel %vm485, %v2730, %v2734
      %v2737 = vshrl.u32 %v2636, 16
      %v2739 = vrot.slane %v2737, 4
      %v2740 = vshll.u32 %v2636, 16
      %v2742 = vrot.slane %v2740, 5
      %v2743 = vor.u32 %v2739, %v2742
      %v2744 = vrot.slane %v2743, 4
      %v2746 = vshll.u32 %v2637, 16
      %v2748 = vrot.slane %v2746, 5
      %v2749 = vsel %vm485, %v2744, %v2748
      %s2750 = scalar_lea.vmem %s2, 16
      %v2751 = vld [vmem:[%s2750] sm:$0x3]
      %v2752 = vunpack.c.l.b16 %v2651
      %v2753 = vunpack.c.l.b16 %v2665
      %v2754 = vunpack.c.l.b16 %v2679
      %v2755 = vunpack.c.l.b16 %v2693
      %v2756 = vunpack.c.l.b16 %v2707
      %v2757 = vunpack.c.l.b16 %v2721
      %v2758 = vunpack.c.l.b16 %v2735
      %v2759 = vunpack.c.l.b16 %v2749
      %v2760 = vpack.c.b16 %v2753, %v2752
      %v2761 = vpack.c.b16 %v2755, %v2754
      %v2762 = vpack.c.b16 %v2757, %v2756
      %v2763 = vpack.c.b16 %v2759, %v2758
      %v2765 = vsel %vm1796, %v2760, 0
      %v2768 = vsel %vm1796, %v2761, 0
      %v2771 = vsel %vm1796, %v2762, 0
      %v2774 = vsel %vm1796, %v2763, 0
      %v2777 = vsel %vm1809, %v2751, 0
      %2779 = vmatpush.bf16.msra.mxu0 0
      %2780 = vmatpush.bf16.msra.mxu0 0
      %2781 = vmatpush.bf16.msra.mxu0 0
      %2782 = vmatpush.bf16.msra.mxu0 0
      %2783 = vmatpush.bf16.msra.mxu0 0
      %2784 = vmatpush.bf16.msra.mxu0 0
      %2785 = vmatpush.bf16.msra.mxu0 0
      %2786 = vmatpush.bf16.msra.mxu0 %v2777
      %2787 = vmatmul.bf16.gmra.mxu0 %v2765
      %v2788 = vpop.f32.mrf.mxu0
      %v2789 = vadd.f32 0.0, %v2788
      %v2790 = vpop.f32.mrf.mxu0
      %v2791 = vadd.f32 0.0, %v2790
      %2792 = vmatmul.bf16.gmra.mxu0 %v2768
      %v2793 = vpop.f32.mrf.mxu0
      %v2794 = vadd.f32 0.0, %v2793
      %v2795 = vpop.f32.mrf.mxu0
      %v2796 = vadd.f32 0.0, %v2795
      %2797 = vmatmul.bf16.gmra.mxu0 %v2771
      %v2798 = vpop.f32.mrf.mxu0
      %v2799 = vadd.f32 0.0, %v2798
      %v2800 = vpop.f32.mrf.mxu0
      %v2801 = vadd.f32 0.0, %v2800
      %2802 = vmatmul.bf16.gmra.mxu0 %v2774
      %v2803 = vpop.f32.mrf.mxu0
      %v2804 = vadd.f32 0.0, %v2803
      %v2805 = vpop.f32.mrf.mxu0
      %v2806 = vadd.f32 0.0, %v2805
      %2807 = vdwg.mxu0
      %v2808 = vadd.f32 %v2614, %v2789
      %v2809 = vadd.f32 %v2615, %v2791
      %v2810 = vadd.f32 %v2616, %v2794
      %v2811 = vadd.f32 %v2617, %v2796
      %v2812 = vadd.f32 %v2618, %v2799
      %v2813 = vadd.f32 %v2619, %v2801
      %v2814 = vadd.f32 %v2620, %v2804
      %v2815 = vadd.f32 %v2621, %v2806
      %v2817 = vperm.slane %v729, 0
      %v2819 = vmul.f32 %v2808, %v2817
      %v2820 = vmul.f32 %v2809, %v2817
      %v2821 = vmul.f32 %v2810, %v2817
      %v2822 = vmul.f32 %v2811, %v2817
      %v2823 = vmul.f32 %v2812, %v2817
      %v2824 = vmul.f32 %v2813, %v2817
      %v2825 = vmul.f32 %v2814, %v2817
      %v2826 = vmul.f32 %v2815, %v2817
      %v2828 = vperm.slane %v730, 0
      %v2830 = vadd.f32 %v2819, %v2828
      %v2831 = vadd.f32 %v2820, %v2828
      %v2832 = vadd.f32 %v2821, %v2828
      %v2833 = vadd.f32 %v2822, %v2828
      %v2834 = vadd.f32 %v2823, %v2828
      %v2835 = vadd.f32 %v2824, %v2828
      %v2836 = vadd.f32 %v2825, %v2828
      %v2837 = vadd.f32 %v2826, %v2828
      %v2838 = vmax.f32 %v2830, 0.0
      %v2839 = vmax.f32 %v2831, 0.0
      %v2840 = vmax.f32 %v2832, 0.0
      %v2841 = vmax.f32 %v2833, 0.0
      %v2842 = vmax.f32 %v2834, 0.0
      %v2843 = vmax.f32 %v2835, 0.0
      %v2844 = vmax.f32 %v2836, 0.0
      %v2845 = vmax.f32 %v2837, 0.0
      %v2846 = vpack.c.bf16 %v2839, %v2838
      %v2847 = vpack.c.bf16 %v2841, %v2840
      %v2848 = vpack.c.bf16 %v2843, %v2842
      %v2849 = vpack.c.bf16 %v2845, %v2844
      %v2850 = vld [vmem:[%s7] sm:$0xf]
      %v2852 = vperm.slane %v731, 0
      %vm2854 = vcmask 64512
      %v2856 = vsel %vm2854, %v2846, 0
      %v2859 = vsel %vm2854, %v2847, 0
      %v2862 = vsel %vm2854, %v2848, 0
      %v2865 = vsel %vm2854, %v2849, 0
      %vm2867 = vcmask 1043456
      %v2869 = vsel %vm2867, %v2850, 0
      %2871 = vmatpush.bf16.msra.mxu0 0
      %2872 = vmatpush.bf16.msra.mxu0 0
      %2873 = vmatpush.bf16.msra.mxu0 0
      %2874 = vmatpush.bf16.msra.mxu0 0
      %2875 = vmatpush.bf16.msra.mxu0 0
      %2876 = vmatpush.bf16.msra.mxu0 0
      %2877 = vmatpush.bf16.msra.mxu0 0
      %2878 = vmatpush.bf16.msra.mxu0 %v2869
      %2879 = vmatmul.bf16.gmra.mxu0 %v2856
      %v2880 = vpop.f32.mrf.mxu0
      %v2881 = vadd.f32 %v2852, %v2880
      %v2882 = vpop.f32.mrf.mxu0
      %v2883 = vadd.f32 %v2852, %v2882
      %2884 = vmatmul.bf16.gmra.mxu0 %v2859
      %v2885 = vpop.f32.mrf.mxu0
      %v2886 = vadd.f32 %v2852, %v2885
      %v2887 = vpop.f32.mrf.mxu0
      %v2888 = vadd.f32 %v2852, %v2887
      %2889 = vmatmul.bf16.gmra.mxu0 %v2862
      %v2890 = vpop.f32.mrf.mxu0
      %v2891 = vadd.f32 %v2852, %v2890
      %v2892 = vpop.f32.mrf.mxu0
      %v2893 = vadd.f32 %v2852, %v2892
      %2894 = vmatmul.bf16.gmra.mxu0 %v2865
      %v2895 = vpop.f32.mrf.mxu0
      %v2896 = vadd.f32 %v2852, %v2895
      %v2897 = vpop.f32.mrf.mxu0
      %v2898 = vadd.f32 %v2852, %v2897
      %2899 = vdwg.mxu0
      %2900 = vst [vmem:[%s332] sm:$0xff] %v2881
      %2901 = vst [vmem:[%s332 + $0x8] sm:$0xff] %v2883
      %2902 = vst [vmem:[%s332 + $0x10] sm:$0xff] %v2886
      %2903 = vst [vmem:[%s332 + $0x18] sm:$0xff] %v2888
      %2904 = vst [vmem:[%s332 + $0x20] sm:$0xff] %v2891
      %2905 = vst [vmem:[%s332 + $0x28] sm:$0xff] %v2893
      %2906 = vst [vmem:[%s332 + $0x30] sm:$0xff] %v2896
      %2907 = vst [vmem:[%s332 + $0x38] sm:$0xff] %v2898
      %p2908 = scmp.lt.s32.totalorder %s20, 1
      %s2909 = scalar_select %p2908, %s20, 1
      %s2910 = smul.addr %s2909, 8
      %s2911 = smul.addr %s2910, 8
      %s2912 = scalar_lea.vmem %s9, %s2911
      // Predicated region
      $region57: #{conv_stem_forward.1} parent=55 // pred_check
        %p2913 = pneg %p232
      $region58: #{conv_stem_forward.1} parent=55 // pred_check_branch
        %2915 = sbr.rel (%p2913) target = $region60
      $region59: #{conv_stem_forward.1} parent=55 // pred_region
        _
      $region60: #{conv_stem_forward.1} parent=55 // pred_fallthru
        _
    $region56: #{conv_stem_forward.1} parent=5 // pred_fallthru
      _
    %p2916 = scmp.le.s32.totalorder 2, %s15
    // Predicated region
    $region61: #{conv_stem_forward.1} parent=5 // pred_check
      %p2917 = pneg %p2916
    $region62: #{conv_stem_forward.1} parent=5 // pred_check_branch
      %2919 = sbr.rel (%p2917) target = $region64
    $region63: #{conv_stem_forward.1} parent=5 // pred_region
      %s2920 = ssub.s32 %s15, 2
      // Predicated region
      $region65: #{conv_stem_forward.1} parent=63 // pred_check
        %p2921 = pneg %p238
      $region66: #{conv_stem_forward.1} parent=63 // pred_check_branch
        %2923 = sbr.rel (%p2921) target = $region68
      $region67: #{conv_stem_forward.1} parent=63 // pred_region
        %p2924 = scmp.lt.s32.totalorder %s21, 1
        %s2925 = scalar_select %p2924, %s21, 1
        %s2926 = smul.addr %s2925, 8
        %s2927 = smul.addr %s2926, 8
        %s2928 = scalar_lea.vmem %s9, %s2927
      $region68: #{conv_stem_forward.1} parent=63 // pred_fallthru
        _
    $region64: #{conv_stem_forward.1} parent=5 // pred_fallthru
      _
  $region6: #{conv_stem_forward.1} parent=0 // loop_footer
    %s19 = sadd.s32 1, %s15
  $region7: #{conv_stem_forward.1} parent=0 // loop_footer_branch
    %14 = sbr.rel target = $region3
  $region8: #{conv_stem_forward.1} parent=0 // loop_exit
    _

</llo_original>
